<compile_context>
chip_gen: v6e
topology: v6e:2x2x1
jax: 0.10.0
libtpu: 0.0.40
codegen_flags: <defaults>
</compile_context>

<pallas_src>
import functools
import math

import jax
import jax.numpy as jnp
from jax.experimental import pallas as pl
from jax.experimental.pallas import tpu as pltpu

_TWO_PI = 2.0 * math.pi
_HALF_PI = 0.5 * math.pi


# ---------------------------------------------------------------------------
# Kernel
# ---------------------------------------------------------------------------
def _mlp_kernel(coords_ref, bmat_ref, w0_ref, b0_ref, wstk_ref, bstk_ref,
                w4_ref, b4_ref, out_ref, *, n_chunks):
    # coords_ref: (C, TM)        lane-major tile of flattened query coords
    # bmat_ref:   (EMB, C)       2*pi * Gaussian projection matrix (f32)
    # w0_ref:     (HID, 2*EMB)   first Linear weight, transposed (bf16),
    #                            columns ordered [sin | cos]
    # b0_ref:     (HID, 1)       f32
    # wstk_ref:   (L, HID, HID)  hidden Linear weights, transposed (bf16)
    # bstk_ref:   (L, HID, 1)    f32
    # w4_ref:     (HID, 1)       final Linear weight (f32, used on the VPU)
    # b4_ref:     (1, 1)         f32
    # out_ref:    (1, TM)        lane-dense output tile (f32)
    tm = coords_ref.shape[1]
    cw = tm // n_chunks

    bm = bmat_ref[...]            # (EMB, C)     f32
    b0 = b0_ref[...]              # (HID, 1)     f32
    w4 = w4_ref[...]              # (HID, 1)     f32
    b4 = b4_ref[...]              # (1, 1)       f32
    n_coord = bm.shape[1]
    n_hidden = wstk_ref.shape[0]

    # Independent lane sub-chunks: separate matmul chains the scheduler can
    # interleave (hides sin / bias+ReLU / cast / reduce behind MXU work).
    for ci in range(n_chunks):
        lo, hi = ci * cw, (ci + 1) * cw
        x = coords_ref[:, lo:hi].astype(jnp.float32)          # (C, cw)

        # Fourier projection: proj[e, n] = sum_c (2*pi*B)[e, c] * x[c, n]
        # via VPU broadcast-FMAs (K=2 is far too small for the MXU).
        proj = bm[:, 0:1] * x[0:1, :]
        for c in range(1, n_coord):
            proj = proj + bm[:, c:c + 1] * x[c:c + 1, :]

        # Shared range reduction (sin is periodic, so exact), then one stacked
        # sin() giving [sin(proj); cos(proj)] in the row order matching w0.
        r = proj - _TWO_PI * jnp.floor(proj * (1.0 / _TWO_PI) + 0.5)
        arg = jnp.concatenate([r, r + _HALF_PI], axis=0)      # (2*EMB, cw)
        sc = jnp.sin(arg).astype(jnp.bfloat16)

        # Layer 0: single K=2*EMB matmul (sin/cos halves merged).
        h = jnp.dot(w0_ref[...], sc, preferred_element_type=jnp.float32)
        h = jnp.maximum(h + b0, 0.0)                           # (HID, cw) f32

        # Hidden Linear + ReLU stack (statically unrolled, weights stacked).
        for l in range(n_hidden):
            h = jnp.dot(wstk_ref[l], h.astype(jnp.bfloat16),
                        preferred_element_type=jnp.float32)
            h = jnp.maximum(h + bstk_ref[l], 0.0)

        # Final Linear(HID -> 1) as VPU multiply + sublane reduce -> (1, cw).
        y = jnp.sum(h * w4, axis=0, keepdims=True) + b4
        out_ref[:, lo:hi] = y.astype(out_ref.dtype)


# ---------------------------------------------------------------------------
# Parameter prep: module-style params -> kernel layout / dtypes
# ---------------------------------------------------------------------------
def _prepare_kernel_params(params):
    bmat, rest = params[0], params[1:]
    ws, bs = rest[0::2], rest[1::2]

    bmat2pi = _TWO_PI * bmat.astype(jnp.float32)                       # (EMB, C)
    # Module input feature order is concat(sin, cos); transposing the first
    # Linear weight keeps that order along the contraction columns.
    w0t = ws[0].T.astype(jnp.bfloat16)                                  # (HID, 2*EMB)
    b0c = bs[0].reshape(-1, 1).astype(jnp.float32)                      # (HID, 1)
    wstk = jnp.stack([w.T for w in ws[1:-1]]).astype(jnp.bfloat16)      # (L, HID, HID)
    bstk = jnp.stack([b.reshape(-1, 1) for b in bs[1:-1]]
                     ).astype(jnp.float32)                              # (L, HID, 1)
    w4c = ws[-1].astype(jnp.float32)                                    # (HID, 1)
    b4c = bs[-1].reshape(1, 1).astype(jnp.float32)                      # (1, 1)
    return bmat2pi, w0t, b0c, wstk, bstk, w4c, b4c


# ---------------------------------------------------------------------------
# Wrapper
# ---------------------------------------------------------------------------
def model_forward(query_coords, params, *, tile_m=4096, n_chunks=2):
    """query_coords: (B, H, W, C_coord) float32 -> (B, H, W, 1) float32."""
    B, H, W, C = query_coords.shape
    n_rows = B * H * W

    # Lane-major layout: rows of the flattened coordinate matrix on lanes.
    coords_t = query_coords.reshape(n_rows, C).T.astype(jnp.float32)   # (C, n_rows)

    bmat2pi, w0t, b0c, wstk, bstk, w4c, b4c = _prepare_kernel_params(params)

    # Tile selection: lane tiles are multiples of n_chunks*128, as large as
    # possible (VMEM use is only a few MiB even at 8192 lanes), but shrunk --
    # never below 2048 lanes -- until there are >= 8 grid steps so both v7x
    # TensorCores get several pipelined steps each.
    lane_q = n_chunks * 128
    tile_m = max(lane_q, (tile_m // lane_q) * lane_q)
    tile_m = min(tile_m, pl.cdiv(n_rows, lane_q) * lane_q)
    while pl.cdiv(n_rows, tile_m) < 8:
        nt = ((tile_m // 2) // lane_q) * lane_q
        if nt < 2048:
            break
        tile_m = nt
    grid = (pl.cdiv(n_rows, tile_m),)

    row_tile = lambda i: (0, i)       # coords / output: tile along lanes
    full2 = lambda i: (0, 0)          # resident 2-D weights
    full3 = lambda i: (0, 0, 0)       # resident stacked weights

    kernel = functools.partial(_mlp_kernel, n_chunks=n_chunks)

    out = pl.pallas_call(
        kernel,
        out_shape=jax.ShapeDtypeStruct((1, n_rows), jnp.float32),
        grid_spec=pltpu.PrefetchScalarGridSpec(
            num_scalar_prefetch=0,
            grid=grid,
            in_specs=[
                pl.BlockSpec((C, tile_m), row_tile),   # coords (lane-dense)
                pl.BlockSpec(bmat2pi.shape, full2),    # 2*pi * Gaussian B
                pl.BlockSpec(w0t.shape, full2),
                pl.BlockSpec(b0c.shape, full2),
                pl.BlockSpec(wstk.shape, full3),
                pl.BlockSpec(bstk.shape, full3),
                pl.BlockSpec(w4c.shape, full2),
                pl.BlockSpec(b4c.shape, full2),
            ],
            out_specs=pl.BlockSpec((1, tile_m), row_tile),
        ),
        compiler_params=pltpu.CompilerParams(
            dimension_semantics=("parallel",),
            # Explicit limit so the large lane tile also fits under v5e's
            # 16 MiB default scoped-VMEM budget (actual use is a few MiB).
            vmem_limit_bytes=32 * 1024 * 1024,
        ),
    )(coords_t, bmat2pi, w0t, b0c, wstk, bstk, w4c, b4c)

    return out.reshape(B, H, W, 1)


# ---------------------------------------------------------------------------
# Deterministic parameter init (mirrors the PyTorch module's __init__ shapes)
# ---------------------------------------------------------------------------
def init_params(key, coord_dim=2, embedding_size=32,
                hidden_list=(128, 128, 128, 128), out_dim=1, gauss_scale=10.0):
    keys = jax.random.split(key, 2 + 2 * (len(hidden_list) + 1))
    ki = iter(keys)

    # Positional_Encoder (gauss): B ~ N(0, scale^2), shape (embedding_size, coord_dim).
    bmat = jax.random.normal(next(ki), (embedding_size, coord_dim),
                             dtype=jnp.float32) * gauss_scale

    pos_out_dim = 2 * embedding_size  # sin & cos
    dims = [pos_out_dim] + list(hidden_list) + [out_dim]

    def linear(kw, kb, fan_in, fan_out):
        bound = 1.0 / math.sqrt(fan_in)  # torch.nn.Linear default init
        w = jax.random.uniform(kw, (fan_in, fan_out), jnp.float32, -bound, bound)
        b = jax.random.uniform(kb, (fan_out,), jnp.float32, -bound, bound)
        return w, b

    weights = []
    for i in range(len(dims) - 1):
        w, b = linear(next(ki), next(ki), dims[i], dims[i + 1])
        weights += [w, b]

    return (bmat, *weights)


# ---------------------------------------------------------------------------
# References for validation
# ---------------------------------------------------------------------------
def reference_forward(query_coords, params):
    """Plain-JAX f32 reference, faithful to the PyTorch module formulation."""
    bmat, rest = params[0], params[1:]
    ws, bs = rest[0::2], rest[1::2]
    B, H, W, C = query_coords.shape
    x = query_coords.reshape(B * H * W, C).astype(jnp.float32)
    proj = _TWO_PI * (x @ bmat.T)
    h = jnp.concatenate([jnp.sin(proj), jnp.cos(proj)], axis=-1)
    for w, b in zip(ws[:-1], bs[:-1]):
        h = jnp.maximum(h @ w + b, 0.0)
    y = h @ ws[-1] + bs[-1]
    return y.reshape(B, H, W, -1)


def reference_forward_matched(query_coords, params):
    """Plain-JAX reference mirroring the kernel's bf16-operand math exactly."""
    bmat2pi, w0t, b0c, wstk, bstk, w4c, b4c = _prepare_kernel_params(params)
    B, H, W, C = query_coords.shape
    x = query_coords.reshape(B * H * W, C).T.astype(jnp.float32)   # (C, N)
    proj = bmat2pi[:, 0:1] * x[0:1, :]
    for c in range(1, C):
        proj = proj + bmat2pi[:, c:c + 1] * x[c:c + 1, :]
    r = proj - _TWO_PI * jnp.floor(proj * (1.0 / _TWO_PI) + 0.5)
    arg = jnp.concatenate([r, r + _HALF_PI], axis=0)
    sc = jnp.sin(arg).astype(jnp.bfloat16)
    h = jnp.dot(w0t, sc, preferred_element_type=jnp.float32)
    h = jnp.maximum(h + b0c, 0.0)
    for l in range(wstk.shape[0]):
        h = jnp.dot(wstk[l], h.astype(jnp.bfloat16),
                    preferred_element_type=jnp.float32)
        h = jnp.maximum(h + bstk[l], 0.0)
    y = jnp.sum(h * w4c, axis=0, keepdims=True) + b4c
    return y.reshape(B, H, W, 1)


if __name__ == "__main__":
    key = jax.random.PRNGKey(0)
    k_param, k_coord = jax.random.split(key)

    params = init_params(k_param, coord_dim=2, embedding_size=32,
                         hidden_list=(128, 128, 128, 128), out_dim=1)

    # Small example: B=2, H=16, W=16, coord_dim=2 (query coords in [-1, 1]).
    B, H, W = 2, 16, 16
    query_coords = jax.random.uniform(k_coord, (B, H, W, 2), jnp.float32, -1.0, 1.0)

    y = model_forward(query_coords, params)
    y = jax.block_until_ready(y)
    assert y.shape == (B, H, W, 1)

    # Tight check against a reference that mirrors the kernel's bf16-operand math.
    y_matched = reference_forward_matched(query_coords, params)
    assert jnp.allclose(y, y_matched, atol=5e-3, rtol=5e-3)

    # Looser check against the full-f32 module-faithful reference
    # (bf16 MXU operands introduce ~1e-3-level differences).
    y_f32 = reference_forward(query_coords, params)
    assert jnp.allclose(y, y_f32, atol=2e-2, rtol=2e-2)

    print("KERNEL_OK")
</pallas_src>

<mosaic_0001>
module attributes {stable_mosaic.version = 11 : i64} {
  func.func @_mlp_kernel(%arg0: i32, %arg1: memref<2x512xf32, #tpu.memory_space<vmem>>, %arg2: memref<32x2xf32, #tpu.memory_space<vmem>>, %arg3: memref<128x64xbf16, #tpu.memory_space<vmem>>, %arg4: memref<128x1xf32, #tpu.memory_space<vmem>>, %arg5: memref<3x128x128xbf16, #tpu.memory_space<vmem>>, %arg6: memref<3x128x1xf32, #tpu.memory_space<vmem>>, %arg7: memref<128x1xf32, #tpu.memory_space<vmem>>, %arg8: memref<1x1xf32, #tpu.memory_space<vmem>>, %arg9: memref<1x512xf32, #tpu.memory_space<vmem>>) attributes {dimension_semantics = [#tpu.dimension_semantics<parallel>], iteration_bounds = array<i64: 1>, scalar_prefetch = 0 : i64, scratch_operands = 0 : i64, tpu.core_type = #tpu.core_type<tc>, window_params = [{transform_indices = @transform_0, window_bounds = array<i64: 2, 512>}, {pipeline_mode = #tpu.pipeline_mode<synchronous>, transform_indices = @transform_1, window_bounds = array<i64: 32, 2>}, {pipeline_mode = #tpu.pipeline_mode<synchronous>, transform_indices = @transform_2, window_bounds = array<i64: 128, 64>}, {pipeline_mode = #tpu.pipeline_mode<synchronous>, transform_indices = @transform_3, window_bounds = array<i64: 128, 1>}, {pipeline_mode = #tpu.pipeline_mode<synchronous>, transform_indices = @transform_4, window_bounds = array<i64: 3, 128, 128>}, {pipeline_mode = #tpu.pipeline_mode<synchronous>, transform_indices = @transform_5, window_bounds = array<i64: 3, 128, 1>}, {pipeline_mode = #tpu.pipeline_mode<synchronous>, transform_indices = @transform_6, window_bounds = array<i64: 128, 1>}, {pipeline_mode = #tpu.pipeline_mode<synchronous>, transform_indices = @transform_7, window_bounds = array<i64: 1, 1>}, {transform_indices = @transform_8, window_bounds = array<i64: 1, 512>}]} {
    %c0 = arith.constant 0 : index
    %c0_0 = arith.constant 0 : index
    %0 = vector.load %arg2[%c0, %c0_0] : memref<32x2xf32, #tpu.memory_space<vmem>>, vector<32x2xf32>
    %c0_1 = arith.constant 0 : index
    %c0_2 = arith.constant 0 : index
    %1 = vector.load %arg4[%c0_1, %c0_2] : memref<128x1xf32, #tpu.memory_space<vmem>>, vector<128x1xf32>
    %c0_3 = arith.constant 0 : index
    %c0_4 = arith.constant 0 : index
    %2 = vector.load %arg7[%c0_3, %c0_4] : memref<128x1xf32, #tpu.memory_space<vmem>>, vector<128x1xf32>
    %c0_5 = arith.constant 0 : index
    %c0_6 = arith.constant 0 : index
    %3 = vector.load %arg8[%c0_5, %c0_6] : memref<1x1xf32, #tpu.memory_space<vmem>>, vector<1x1xf32>
    %c0_7 = arith.constant 0 : index
    %c0_8 = arith.constant 0 : index
    %4 = vector.load %arg1[%c0_7, %c0_8] : memref<2x512xf32, #tpu.memory_space<vmem>>, vector<2x256xf32>
    %5 = vector.extract_strided_slice %0 {offsets = [0, 0], sizes = [32, 1], strides = [1, 1]} : vector<32x2xf32> to vector<32x1xf32>
    %6 = vector.extract_strided_slice %4 {offsets = [0, 0], sizes = [1, 256], strides = [1, 1]} : vector<2x256xf32> to vector<1x256xf32>
    %7 = vector.broadcast %5 : vector<32x1xf32> to vector<32x256xf32>
    %8 = vector.broadcast %6 : vector<1x256xf32> to vector<32x256xf32>
    %9 = arith.mulf %7, %8 : vector<32x256xf32>
    %10 = vector.extract_strided_slice %0 {offsets = [0, 1], sizes = [32, 1], strides = [1, 1]} : vector<32x2xf32> to vector<32x1xf32>
    %11 = vector.extract_strided_slice %4 {offsets = [1, 0], sizes = [1, 256], strides = [1, 1]} : vector<2x256xf32> to vector<1x256xf32>
    %12 = vector.broadcast %10 : vector<32x1xf32> to vector<32x256xf32>
    %13 = vector.broadcast %11 : vector<1x256xf32> to vector<32x256xf32>
    %14 = arith.mulf %12, %13 : vector<32x256xf32>
    %15 = arith.addf %9, %14 : vector<32x256xf32>
    %cst = arith.constant 0.159154937 : f32
    %16 = vector.broadcast %cst : f32 to vector<32x256xf32>
    %17 = arith.mulf %15, %16 : vector<32x256xf32>
    %cst_9 = arith.constant 5.000000e-01 : f32
    %18 = vector.broadcast %cst_9 : f32 to vector<32x256xf32>
    %19 = arith.addf %17, %18 : vector<32x256xf32>
    %20 = math.floor %19 : vector<32x256xf32>
    %cst_10 = arith.constant 6.28318548 : f32
    %21 = vector.broadcast %cst_10 : f32 to vector<32x256xf32>
    %22 = arith.mulf %21, %20 : vector<32x256xf32>
    %23 = arith.subf %15, %22 : vector<32x256xf32>
    %cst_11 = arith.constant 1.57079637 : f32
    %24 = vector.broadcast %cst_11 : f32 to vector<32x256xf32>
    %25 = arith.addf %23, %24 : vector<32x256xf32>
    %26 = tpu.concatenate %23, %25 in 0 : vector<32x256xf32>, vector<32x256xf32> -> vector<64x256xf32>
    %27 = math.sin %26 : vector<64x256xf32>
    %28 = arith.truncf %27 : vector<64x256xf32> to vector<64x256xbf16>
    %c0_12 = arith.constant 0 : index
    %c0_13 = arith.constant 0 : index
    %29 = vector.load %arg3[%c0_12, %c0_13] : memref<128x64xbf16, #tpu.memory_space<vmem>>, vector<128x64xbf16>
    %cst_14 = arith.constant dense<0.000000e+00> : vector<128x256xf32>
    %30 = tpu.matmul %29, %28, %cst_14 {dimension_numbers = #tpu.dot_dimension_numbers<[1], [0], [0], [1], [0, 0, 1, 1], [], []>} : vector<128x64xbf16>, vector<64x256xbf16>, vector<128x256xf32> -> vector<128x256xf32>
    %31 = vector.broadcast %1 : vector<128x1xf32> to vector<128x256xf32>
    %32 = arith.addf %30, %31 : vector<128x256xf32>
    %cst_15 = arith.constant 0.000000e+00 : f32
    %33 = vector.broadcast %cst_15 : f32 to vector<128x256xf32>
    %34 = arith.maximumf %32, %33 : vector<128x256xf32>
    %c0_16 = arith.constant 0 : index
    %c0_17 = arith.constant 0 : index
    %c0_18 = arith.constant 0 : index
    %35 = vector.load %arg5[%c0_16, %c0_17, %c0_18] : memref<3x128x128xbf16, #tpu.memory_space<vmem>>, vector<1x128x128xbf16>
    %36 = vector.shape_cast %35 : vector<1x128x128xbf16> to vector<128x128xbf16>
    %37 = arith.truncf %34 : vector<128x256xf32> to vector<128x256xbf16>
    %cst_19 = arith.constant dense<0.000000e+00> : vector<128x256xf32>
    %38 = tpu.matmul %36, %37, %cst_19 {dimension_numbers = #tpu.dot_dimension_numbers<[1], [0], [0], [1], [0, 0, 1, 1], [], []>} : vector<128x128xbf16>, vector<128x256xbf16>, vector<128x256xf32> -> vector<128x256xf32>
    %c0_20 = arith.constant 0 : index
    %c0_21 = arith.constant 0 : index
    %c0_22 = arith.constant 0 : index
    %39 = vector.load %arg6[%c0_20, %c0_21, %c0_22] : memref<3x128x1xf32, #tpu.memory_space<vmem>>, vector<1x128x1xf32>
    %40 = vector.shape_cast %39 : vector<1x128x1xf32> to vector<128x1xf32>
    %41 = vector.broadcast %40 : vector<128x1xf32> to vector<128x256xf32>
    %42 = arith.addf %38, %41 : vector<128x256xf32>
    %cst_23 = arith.constant 0.000000e+00 : f32
    %43 = vector.broadcast %cst_23 : f32 to vector<128x256xf32>
    %44 = arith.maximumf %42, %43 : vector<128x256xf32>
    %c1 = arith.constant 1 : index
    %c0_24 = arith.constant 0 : index
    %c0_25 = arith.constant 0 : index
    %45 = vector.load %arg5[%c1, %c0_24, %c0_25] : memref<3x128x128xbf16, #tpu.memory_space<vmem>>, vector<1x128x128xbf16>
    %46 = vector.shape_cast %45 : vector<1x128x128xbf16> to vector<128x128xbf16>
    %47 = arith.truncf %44 : vector<128x256xf32> to vector<128x256xbf16>
    %cst_26 = arith.constant dense<0.000000e+00> : vector<128x256xf32>
    %48 = tpu.matmul %46, %47, %cst_26 {dimension_numbers = #tpu.dot_dimension_numbers<[1], [0], [0], [1], [0, 0, 1, 1], [], []>} : vector<128x128xbf16>, vector<128x256xbf16>, vector<128x256xf32> -> vector<128x256xf32>
    %c1_27 = arith.constant 1 : index
    %c0_28 = arith.constant 0 : index
    %c0_29 = arith.constant 0 : index
    %49 = vector.load %arg6[%c1_27, %c0_28, %c0_29] : memref<3x128x1xf32, #tpu.memory_space<vmem>>, vector<1x128x1xf32>
    %50 = vector.shape_cast %49 : vector<1x128x1xf32> to vector<128x1xf32>
    %51 = vector.broadcast %50 : vector<128x1xf32> to vector<128x256xf32>
    %52 = arith.addf %48, %51 : vector<128x256xf32>
    %cst_30 = arith.constant 0.000000e+00 : f32
    %53 = vector.broadcast %cst_30 : f32 to vector<128x256xf32>
    %54 = arith.maximumf %52, %53 : vector<128x256xf32>
    %c2 = arith.constant 2 : index
    %c0_31 = arith.constant 0 : index
    %c0_32 = arith.constant 0 : index
    %55 = vector.load %arg5[%c2, %c0_31, %c0_32] : memref<3x128x128xbf16, #tpu.memory_space<vmem>>, vector<1x128x128xbf16>
    %56 = vector.shape_cast %55 : vector<1x128x128xbf16> to vector<128x128xbf16>
    %57 = arith.truncf %54 : vector<128x256xf32> to vector<128x256xbf16>
    %cst_33 = arith.constant dense<0.000000e+00> : vector<128x256xf32>
    %58 = tpu.matmul %56, %57, %cst_33 {dimension_numbers = #tpu.dot_dimension_numbers<[1], [0], [0], [1], [0, 0, 1, 1], [], []>} : vector<128x128xbf16>, vector<128x256xbf16>, vector<128x256xf32> -> vector<128x256xf32>
    %c2_34 = arith.constant 2 : index
    %c0_35 = arith.constant 0 : index
    %c0_36 = arith.constant 0 : index
    %59 = vector.load %arg6[%c2_34, %c0_35, %c0_36] : memref<3x128x1xf32, #tpu.memory_space<vmem>>, vector<1x128x1xf32>
    %60 = vector.shape_cast %59 : vector<1x128x1xf32> to vector<128x1xf32>
    %61 = vector.broadcast %60 : vector<128x1xf32> to vector<128x256xf32>
    %62 = arith.addf %58, %61 : vector<128x256xf32>
    %cst_37 = arith.constant 0.000000e+00 : f32
    %63 = vector.broadcast %cst_37 : f32 to vector<128x256xf32>
    %64 = arith.maximumf %62, %63 : vector<128x256xf32>
    %65 = vector.broadcast %2 : vector<128x1xf32> to vector<128x256xf32>
    %66 = arith.mulf %64, %65 : vector<128x256xf32>
    %cst_38 = arith.constant dense<0.000000e+00> : vector<256xf32>
    %67 = vector.multi_reduction <add>, %66, %cst_38 [0] : vector<128x256xf32> to vector<256xf32>
    %68 = vector.shape_cast %67 : vector<256xf32> to vector<1x256xf32>
    %69 = vector.broadcast %3 : vector<1x1xf32> to vector<1x256xf32>
    %70 = arith.addf %68, %69 : vector<1x256xf32>
    %c0_39 = arith.constant 0 : index
    %c0_40 = arith.constant 0 : index
    %71 = vector.load %arg9[%c0_39, %c0_40] : memref<1x512xf32, #tpu.memory_space<vmem>>, vector<1x256xf32>
    tpu.vector_store %arg9[%c0_39, %c0_40], %70 {strides = array<i32>} : memref<1x512xf32, #tpu.memory_space<vmem>>, vector<1x256xf32>,
    %c0_41 = arith.constant 0 : index
    %c256 = arith.constant 256 : index
    %72 = vector.load %arg1[%c0_41, %c256] : memref<2x512xf32, #tpu.memory_space<vmem>>, vector<2x256xf32>
    %73 = vector.extract_strided_slice %0 {offsets = [0, 0], sizes = [32, 1], strides = [1, 1]} : vector<32x2xf32> to vector<32x1xf32>
    %74 = vector.extract_strided_slice %72 {offsets = [0, 0], sizes = [1, 256], strides = [1, 1]} : vector<2x256xf32> to vector<1x256xf32>
    %75 = vector.broadcast %73 : vector<32x1xf32> to vector<32x256xf32>
    %76 = vector.broadcast %74 : vector<1x256xf32> to vector<32x256xf32>
    %77 = arith.mulf %75, %76 : vector<32x256xf32>
    %78 = vector.extract_strided_slice %0 {offsets = [0, 1], sizes = [32, 1], strides = [1, 1]} : vector<32x2xf32> to vector<32x1xf32>
    %79 = vector.extract_strided_slice %72 {offsets = [1, 0], sizes = [1, 256], strides = [1, 1]} : vector<2x256xf32> to vector<1x256xf32>
    %80 = vector.broadcast %78 : vector<32x1xf32> to vector<32x256xf32>
    %81 = vector.broadcast %79 : vector<1x256xf32> to vector<32x256xf32>
    %82 = arith.mulf %80, %81 : vector<32x256xf32>
    %83 = arith.addf %77, %82 : vector<32x256xf32>
    %cst_42 = arith.constant 0.159154937 : f32
    %84 = vector.broadcast %cst_42 : f32 to vector<32x256xf32>
    %85 = arith.mulf %83, %84 : vector<32x256xf32>
    %cst_43 = arith.constant 5.000000e-01 : f32
    %86 = vector.broadcast %cst_43 : f32 to vector<32x256xf32>
    %87 = arith.addf %85, %86 : vector<32x256xf32>
    %88 = math.floor %87 : vector<32x256xf32>
    %cst_44 = arith.constant 6.28318548 : f32
    %89 = vector.broadcast %cst_44 : f32 to vector<32x256xf32>
    %90 = arith.mulf %89, %88 : vector<32x256xf32>
    %91 = arith.subf %83, %90 : vector<32x256xf32>
    %cst_45 = arith.constant 1.57079637 : f32
    %92 = vector.broadcast %cst_45 : f32 to vector<32x256xf32>
    %93 = arith.addf %91, %92 : vector<32x256xf32>
    %94 = tpu.concatenate %91, %93 in 0 : vector<32x256xf32>, vector<32x256xf32> -> vector<64x256xf32>
    %95 = math.sin %94 : vector<64x256xf32>
    %96 = arith.truncf %95 : vector<64x256xf32> to vector<64x256xbf16>
    %c0_46 = arith.constant 0 : index
    %c0_47 = arith.constant 0 : index
    %97 = vector.load %arg3[%c0_46, %c0_47] : memref<128x64xbf16, #tpu.memory_space<vmem>>, vector<128x64xbf16>
    %cst_48 = arith.constant dense<0.000000e+00> : vector<128x256xf32>
    %98 = tpu.matmul %97, %96, %cst_48 {dimension_numbers = #tpu.dot_dimension_numbers<[1], [0], [0], [1], [0, 0, 1, 1], [], []>} : vector<128x64xbf16>, vector<64x256xbf16>, vector<128x256xf32> -> vector<128x256xf32>
    %99 = vector.broadcast %1 : vector<128x1xf32> to vector<128x256xf32>
    %100 = arith.addf %98, %99 : vector<128x256xf32>
    %cst_49 = arith.constant 0.000000e+00 : f32
    %101 = vector.broadcast %cst_49 : f32 to vector<128x256xf32>
    %102 = arith.maximumf %100, %101 : vector<128x256xf32>
    %c0_50 = arith.constant 0 : index
    %c0_51 = arith.constant 0 : index
    %c0_52 = arith.constant 0 : index
    %103 = vector.load %arg5[%c0_50, %c0_51, %c0_52] : memref<3x128x128xbf16, #tpu.memory_space<vmem>>, vector<1x128x128xbf16>
    %104 = vector.shape_cast %103 : vector<1x128x128xbf16> to vector<128x128xbf16>
    %105 = arith.truncf %102 : vector<128x256xf32> to vector<128x256xbf16>
    %cst_53 = arith.constant dense<0.000000e+00> : vector<128x256xf32>
    %106 = tpu.matmul %104, %105, %cst_53 {dimension_numbers = #tpu.dot_dimension_numbers<[1], [0], [0], [1], [0, 0, 1, 1], [], []>} : vector<128x128xbf16>, vector<128x256xbf16>, vector<128x256xf32> -> vector<128x256xf32>
    %c0_54 = arith.constant 0 : index
    %c0_55 = arith.constant 0 : index
    %c0_56 = arith.constant 0 : index
    %107 = vector.load %arg6[%c0_54, %c0_55, %c0_56] : memref<3x128x1xf32, #tpu.memory_space<vmem>>, vector<1x128x1xf32>
    %108 = vector.shape_cast %107 : vector<1x128x1xf32> to vector<128x1xf32>
    %109 = vector.broadcast %108 : vector<128x1xf32> to vector<128x256xf32>
    %110 = arith.addf %106, %109 : vector<128x256xf32>
    %cst_57 = arith.constant 0.000000e+00 : f32
    %111 = vector.broadcast %cst_57 : f32 to vector<128x256xf32>
    %112 = arith.maximumf %110, %111 : vector<128x256xf32>
    %c1_58 = arith.constant 1 : index
    %c0_59 = arith.constant 0 : index
    %c0_60 = arith.constant 0 : index
    %113 = vector.load %arg5[%c1_58, %c0_59, %c0_60] : memref<3x128x128xbf16, #tpu.memory_space<vmem>>, vector<1x128x128xbf16>
    %114 = vector.shape_cast %113 : vector<1x128x128xbf16> to vector<128x128xbf16>
    %115 = arith.truncf %112 : vector<128x256xf32> to vector<128x256xbf16>
    %cst_61 = arith.constant dense<0.000000e+00> : vector<128x256xf32>
    %116 = tpu.matmul %114, %115, %cst_61 {dimension_numbers = #tpu.dot_dimension_numbers<[1], [0], [0], [1], [0, 0, 1, 1], [], []>} : vector<128x128xbf16>, vector<128x256xbf16>, vector<128x256xf32> -> vector<128x256xf32>
    %c1_62 = arith.constant 1 : index
    %c0_63 = arith.constant 0 : index
    %c0_64 = arith.constant 0 : index
    %117 = vector.load %arg6[%c1_62, %c0_63, %c0_64] : memref<3x128x1xf32, #tpu.memory_space<vmem>>, vector<1x128x1xf32>
    %118 = vector.shape_cast %117 : vector<1x128x1xf32> to vector<128x1xf32>
    %119 = vector.broadcast %118 : vector<128x1xf32> to vector<128x256xf32>
    %120 = arith.addf %116, %119 : vector<128x256xf32>
    %cst_65 = arith.constant 0.000000e+00 : f32
    %121 = vector.broadcast %cst_65 : f32 to vector<128x256xf32>
    %122 = arith.maximumf %120, %121 : vector<128x256xf32>
    %c2_66 = arith.constant 2 : index
    %c0_67 = arith.constant 0 : index
    %c0_68 = arith.constant 0 : index
    %123 = vector.load %arg5[%c2_66, %c0_67, %c0_68] : memref<3x128x128xbf16, #tpu.memory_space<vmem>>, vector<1x128x128xbf16>
    %124 = vector.shape_cast %123 : vector<1x128x128xbf16> to vector<128x128xbf16>
    %125 = arith.truncf %122 : vector<128x256xf32> to vector<128x256xbf16>
    %cst_69 = arith.constant dense<0.000000e+00> : vector<128x256xf32>
    %126 = tpu.matmul %124, %125, %cst_69 {dimension_numbers = #tpu.dot_dimension_numbers<[1], [0], [0], [1], [0, 0, 1, 1], [], []>} : vector<128x128xbf16>, vector<128x256xbf16>, vector<128x256xf32> -> vector<128x256xf32>
    %c2_70 = arith.constant 2 : index
    %c0_71 = arith.constant 0 : index
    %c0_72 = arith.constant 0 : index
    %127 = vector.load %arg6[%c2_70, %c0_71, %c0_72] : memref<3x128x1xf32, #tpu.memory_space<vmem>>, vector<1x128x1xf32>
    %128 = vector.shape_cast %127 : vector<1x128x1xf32> to vector<128x1xf32>
    %129 = vector.broadcast %128 : vector<128x1xf32> to vector<128x256xf32>
    %130 = arith.addf %126, %129 : vector<128x256xf32>
    %cst_73 = arith.constant 0.000000e+00 : f32
    %131 = vector.broadcast %cst_73 : f32 to vector<128x256xf32>
    %132 = arith.maximumf %130, %131 : vector<128x256xf32>
    %133 = vector.broadcast %2 : vector<128x1xf32> to vector<128x256xf32>
    %134 = arith.mulf %132, %133 : vector<128x256xf32>
    %cst_74 = arith.constant dense<0.000000e+00> : vector<256xf32>
    %135 = vector.multi_reduction <add>, %134, %cst_74 [0] : vector<128x256xf32> to vector<256xf32>
    %136 = vector.shape_cast %135 : vector<256xf32> to vector<1x256xf32>
    %137 = vector.broadcast %3 : vector<1x1xf32> to vector<1x256xf32>
    %138 = arith.addf %136, %137 : vector<1x256xf32>
    %c0_75 = arith.constant 0 : index
    %c256_76 = arith.constant 256 : index
    %139 = vector.load %arg9[%c0_75, %c256_76] : memref<1x512xf32, #tpu.memory_space<vmem>>, vector<1x256xf32>
    tpu.vector_store %arg9[%c0_75, %c256_76], %138 {strides = array<i32>} : memref<1x512xf32, #tpu.memory_space<vmem>>, vector<1x256xf32>,
    return
  }
  func.func @transform_0(%arg0: i32) -> (i32, i32) {
    %c0_i32 = arith.constant 0 : i32
    %c0_i32_0 = arith.constant 0 : i32
    return %c0_i32, %arg0 : i32, i32
  }
  func.func @transform_1(%arg0: i32) -> (i32, i32) {
    %c0_i32 = arith.constant 0 : i32
    %c0_i32_0 = arith.constant 0 : i32
    %c0_i32_1 = arith.constant 0 : i32
    return %c0_i32, %c0_i32_0 : i32, i32
  }
  func.func @transform_2(%arg0: i32) -> (i32, i32) {
    %c0_i32 = arith.constant 0 : i32
    %c0_i32_0 = arith.constant 0 : i32
    %c0_i32_1 = arith.constant 0 : i32
    return %c0_i32, %c0_i32_0 : i32, i32
  }
  func.func @transform_3(%arg0: i32) -> (i32, i32) {
    %c0_i32 = arith.constant 0 : i32
    %c0_i32_0 = arith.constant 0 : i32
    %c0_i32_1 = arith.constant 0 : i32
    return %c0_i32, %c0_i32_0 : i32, i32
  }
  func.func @transform_4(%arg0: i32) -> (i32, i32, i32) {
    %c0_i32 = arith.constant 0 : i32
    %c0_i32_0 = arith.constant 0 : i32
    %c0_i32_1 = arith.constant 0 : i32
    %c0_i32_2 = arith.constant 0 : i32
    return %c0_i32, %c0_i32_0, %c0_i32_1 : i32, i32, i32
  }
  func.func @transform_5(%arg0: i32) -> (i32, i32, i32) {
    %c0_i32 = arith.constant 0 : i32
    %c0_i32_0 = arith.constant 0 : i32
    %c0_i32_1 = arith.constant 0 : i32
    %c0_i32_2 = arith.constant 0 : i32
    return %c0_i32, %c0_i32_0, %c0_i32_1 : i32, i32, i32
  }
  func.func @transform_6(%arg0: i32) -> (i32, i32) {
    %c0_i32 = arith.constant 0 : i32
    %c0_i32_0 = arith.constant 0 : i32
    %c0_i32_1 = arith.constant 0 : i32
    return %c0_i32, %c0_i32_0 : i32, i32
  }
  func.func @transform_7(%arg0: i32) -> (i32, i32) {
    %c0_i32 = arith.constant 0 : i32
    %c0_i32_0 = arith.constant 0 : i32
    %c0_i32_1 = arith.constant 0 : i32
    return %c0_i32, %c0_i32_0 : i32, i32
  }
  func.func @transform_8(%arg0: i32) -> (i32, i32) {
    %c0_i32 = arith.constant 0 : i32
    %c0_i32_0 = arith.constant 0 : i32
    return %c0_i32, %arg0 : i32, i32
  }
}

</mosaic_0001>

<llo_original>
// kernel: tpu_custom_call.1
$region0: #{tpu_custom_call.1}
  #allocation0 [shape = 'u32[]', space=smem, size = 0x4, offset = 0x4, fixed_abs, tag = 'smem constant byte address 0x4 - core index']
  #allocation1 [shape = 'u32[144,128]{1,0:T(1,128)}', space=vmem, size = 0x12000, scoped, tag = 'internal scratch']
  #allocation2 [shape = 'f32[1,1]{1,0:T(1,128)S(1)}', space=vmem, size = 0x200, scoped, tag = 'scoped memory for tpu_custom_call.1']
  %s0 = inlined_call_operand.vmem [shape: f32[2,512], index: 0, kind: input, shape index: {}]
  %s1 = inlined_call_operand.vmem [shape: f32[32,2], index: 1, kind: input, shape index: {}]
  %s2 = inlined_call_operand.vmem [shape: bf16[128,64], index: 2, kind: input, shape index: {}]
  %s3 = inlined_call_operand.vmem [shape: f32[128,1], index: 3, kind: input, shape index: {}]
  %s4 = inlined_call_operand.vmem [shape: bf16[3,128,128], index: 4, kind: input, shape index: {}]
  %s5 = inlined_call_operand.vmem [shape: f32[3,128,1], index: 5, kind: input, shape index: {}]
  %s6 = inlined_call_operand.vmem [shape: f32[128,1], index: 6, kind: input, shape index: {}]
  %s7 = inlined_call_operand.<no memory space> [shape: f32[1,1], index: 7, kind: input, shape index: {}]
  %s8 = inlined_call_operand.hbm [shape: f32[1,512], index: 8, kind: output, shape index: {}]
  %s9 = sld [smem:[#allocation0]]
  $region42: #{tpu_custom_call.1} parent=0
    _
  %s11 = ssub.s32 1, %s9
  %s12 = scalar_select 0, %s11, %s9
  %v13 = vstv %s7
  %14 = vst [vmem:[#allocation2] sm:$0x1] %v13
  $region1: #{tpu_custom_call.1} parent=0
    #allocation3 [shape = 'u8[2048]{0}', space=vmem, size = 0x800, scoped, tag = 'output window, operand 0, single buffered']
    #allocation4 [shape = 's32[1]{0}', space=sflag, size = 0x4, scoped, tag = 'scoped memory for tpu_custom_call.1']
    %15 = vsyncpa [#allocation4], 0
    // Predicated region
    $region2: #{tpu_custom_call.1} parent=1 // pred_check
      _
    $region3: #{tpu_custom_call.1} parent=1 // pred_check_branch
      %17 = sbr.rel (0) target = $region5
    $region4: #{tpu_custom_call.1} parent=1 // pred_region
      _
    $region5: #{tpu_custom_call.1} parent=1 // pred_fallthru
      _
    // Predicated region
    $region6: #{tpu_custom_call.1} parent=1 // pred_check
      _
    $region7: #{tpu_custom_call.1} parent=1 // pred_check_branch
      %19 = sbr.rel (0) target = $region9
    $region8: #{tpu_custom_call.1} parent=1 // pred_region
      _
    $region9: #{tpu_custom_call.1} parent=1 // pred_fallthru
      _
    // Predicated region
    $region10: #{tpu_custom_call.1} parent=1 // pred_check
      _
    $region11: #{tpu_custom_call.1} parent=1 // pred_check_branch
      %21 = sbr.rel (0) target = $region13
    $region12: #{tpu_custom_call.1} parent=1 // pred_region
      _
    $region13: #{tpu_custom_call.1} parent=1 // pred_fallthru
      _
    // Predicated region
    $region14: #{tpu_custom_call.1} parent=1 // pred_check
      _
    $region15: #{tpu_custom_call.1} parent=1 // pred_check_branch
      %23 = sbr.rel (0) target = $region17
    $region16: #{tpu_custom_call.1} parent=1 // pred_region
      _
    $region17: #{tpu_custom_call.1} parent=1 // pred_fallthru
      _
    // Predicated region
    $region18: #{tpu_custom_call.1} parent=1 // pred_check
      _
    $region19: #{tpu_custom_call.1} parent=1 // pred_check_branch
      %25 = sbr.rel (0) target = $region21
    $region20: #{tpu_custom_call.1} parent=1 // pred_region
      _
    $region21: #{tpu_custom_call.1} parent=1 // pred_fallthru
      _
    // Predicated region
    $region22: #{tpu_custom_call.1} parent=1 // pred_check
      _
    $region23: #{tpu_custom_call.1} parent=1 // pred_check_branch
      %27 = sbr.rel (0) target = $region25
    $region24: #{tpu_custom_call.1} parent=1 // pred_region
      _
    $region25: #{tpu_custom_call.1} parent=1 // pred_fallthru
      _
    // Predicated region
    $region26: #{tpu_custom_call.1} parent=1 // pred_check
      _
    $region27: #{tpu_custom_call.1} parent=1 // pred_check_branch
      %29 = sbr.rel (0) target = $region29
    $region28: #{tpu_custom_call.1} parent=1 // pred_region
      _
    $region29: #{tpu_custom_call.1} parent=1 // pred_fallthru
      _
    // Predicated region
    $region30: #{tpu_custom_call.1} parent=1 // pred_check
      _
    $region31: #{tpu_custom_call.1} parent=1 // pred_check_branch
      %31 = sbr.rel (0) target = $region33
    $region32: #{tpu_custom_call.1} parent=1 // pred_region
      _
    $region33: #{tpu_custom_call.1} parent=1 // pred_fallthru
      _
    %v33 = vld [vmem:[%s1] sm:$0xff]
    %v34 = vld [vmem:[%s1 + $0x8] sm:$0xff]
    %v35 = vld [vmem:[%s1 + $0x10] sm:$0xff]
    %v36 = vld [vmem:[%s1 + $0x18] sm:$0xff]
    %v37 = vld [vmem:[%s3] sm:$0xff]
    %v38 = vld [vmem:[%s3 + $0x8] sm:$0xff]
    %v39 = vld [vmem:[%s3 + $0x10] sm:$0xff]
    %v40 = vld [vmem:[%s3 + $0x18] sm:$0xff]
    %v41 = vld [vmem:[%s3 + $0x20] sm:$0xff]
    %v42 = vld [vmem:[%s3 + $0x28] sm:$0xff]
    %v43 = vld [vmem:[%s3 + $0x30] sm:$0xff]
    %v44 = vld [vmem:[%s3 + $0x38] sm:$0xff]
    %v45 = vld [vmem:[%s3 + $0x40] sm:$0xff]
    %v46 = vld [vmem:[%s3 + $0x48] sm:$0xff]
    %v47 = vld [vmem:[%s3 + $0x50] sm:$0xff]
    %v48 = vld [vmem:[%s3 + $0x58] sm:$0xff]
    %v49 = vld [vmem:[%s3 + $0x60] sm:$0xff]
    %v50 = vld [vmem:[%s3 + $0x68] sm:$0xff]
    %v51 = vld [vmem:[%s3 + $0x70] sm:$0xff]
    %v52 = vld [vmem:[%s3 + $0x78] sm:$0xff]
    %v53 = vld [vmem:[%s6] sm:$0xff]
    %v54 = vld [vmem:[%s6 + $0x8] sm:$0xff]
    %v55 = vld [vmem:[%s6 + $0x10] sm:$0xff]
    %v56 = vld [vmem:[%s6 + $0x18] sm:$0xff]
    %v57 = vld [vmem:[%s6 + $0x20] sm:$0xff]
    %v58 = vld [vmem:[%s6 + $0x28] sm:$0xff]
    %v59 = vld [vmem:[%s6 + $0x30] sm:$0xff]
    %v60 = vld [vmem:[%s6 + $0x38] sm:$0xff]
    %v61 = vld [vmem:[%s6 + $0x40] sm:$0xff]
    %v62 = vld [vmem:[%s6 + $0x48] sm:$0xff]
    %v63 = vld [vmem:[%s6 + $0x50] sm:$0xff]
    %v64 = vld [vmem:[%s6 + $0x58] sm:$0xff]
    %v65 = vld [vmem:[%s6 + $0x60] sm:$0xff]
    %v66 = vld [vmem:[%s6 + $0x68] sm:$0xff]
    %v67 = vld [vmem:[%s6 + $0x70] sm:$0xff]
    %v68 = vld [vmem:[%s6 + $0x78] sm:$0xff]
    %v69 = vld [vmem:[#allocation2] sm:$0x1]
    %v70 = vld [vmem:[%s0] sm:$0xf]
    %72 = vset.pattern.permute.xlu0 0
    %73 = vperm.xlu0 %72, %v33
    %v74 = vpop.permute.xlu0 %73
    %77 = vset.pattern.permute.xlu0 0
    %78 = vperm.xlu0 %77, %v34
    %v79 = vpop.permute.xlu0 %78
    %82 = vset.pattern.permute.xlu0 0
    %83 = vperm.xlu0 %82, %v35
    %v84 = vpop.permute.xlu0 %83
    %87 = vset.pattern.permute.xlu0 0
    %88 = vperm.xlu0 %87, %v36
    %v89 = vpop.permute.xlu0 %88
    %v92 = vlaneseq
    %v93 = vshrl.u32 %v92, 7
    %v94 = vsub.s32 0, %v93
    %v95 = vrot.slane %v70, %v94
    %v96 = vlaneseq
    %v97 = vshrl.u32 %v96, 7
    %v98 = vsub.s32 2, %v97
    %v99 = vrot.slane %v70, %v98
    %v102 = vlaneseq
    %v103 = vshrl.u32 %v102, 7
    %v104 = vsub.s32 0, %v103
    %v105 = vrot.slane %v95, %v104
    %v106 = vlaneseq
    %v107 = vshrl.u32 %v106, 7
    %v108 = vsub.s32 0, %v107
    %v109 = vrot.slane %v99, %v108
    %v110 = vmul.f32 %v74, %v105
    %v111 = vmul.f32 %v74, %v109
    %v112 = vmul.f32 %v79, %v105
    %v113 = vmul.f32 %v79, %v109
    %v114 = vmul.f32 %v84, %v105
    %v115 = vmul.f32 %v84, %v109
    %v116 = vmul.f32 %v89, %v105
    %v117 = vmul.f32 %v89, %v109
    %118 = vset.pattern.permute.xlu0 1
    %119 = vperm.xlu0 %118, %v33
    %v120 = vpop.permute.xlu0 %119
    %122 = vset.pattern.permute.xlu0 1
    %123 = vperm.xlu0 %122, %v34
    %v124 = vpop.permute.xlu0 %123
    %126 = vset.pattern.permute.xlu0 1
    %127 = vperm.xlu0 %126, %v35
    %v128 = vpop.permute.xlu0 %127
    %130 = vset.pattern.permute.xlu0 1
    %131 = vperm.xlu0 %130, %v36
    %v132 = vpop.permute.xlu0 %131
    %v134 = vlaneseq
    %v135 = vshrl.u32 %v134, 7
    %v136 = vsub.s32 1, %v135
    %v137 = vrot.slane %v70, %v136
    %v138 = vlaneseq
    %v139 = vshrl.u32 %v138, 7
    %v140 = vsub.s32 3, %v139
    %v141 = vrot.slane %v70, %v140
    %v144 = vlaneseq
    %v145 = vshrl.u32 %v144, 7
    %v146 = vsub.s32 1, %v145
    %v147 = vrot.slane %v137, %v146
    %v148 = vlaneseq
    %v149 = vshrl.u32 %v148, 7
    %v150 = vsub.s32 1, %v149
    %v151 = vrot.slane %v141, %v150
    %v152 = vmul.f32 %v120, %v147
    %v153 = vmul.f32 %v120, %v151
    %v154 = vmul.f32 %v124, %v147
    %v155 = vmul.f32 %v124, %v151
    %v156 = vmul.f32 %v128, %v147
    %v157 = vmul.f32 %v128, %v151
    %v158 = vmul.f32 %v132, %v147
    %v159 = vmul.f32 %v132, %v151
    %v160 = vadd.f32 %v110, %v152
    %v161 = vadd.f32 %v111, %v153
    %v162 = vadd.f32 %v112, %v154
    %v163 = vadd.f32 %v113, %v155
    %v164 = vadd.f32 %v114, %v156
    %v165 = vadd.f32 %v115, %v157
    %v166 = vadd.f32 %v116, %v158
    %v167 = vadd.f32 %v117, %v159
    %v168 = vmul.f32 %v160, 0.15915494
    %v169 = vmul.f32 %v161, 0.15915494
    %v170 = vmul.f32 %v162, 0.15915494
    %v171 = vmul.f32 %v163, 0.15915494
    %v172 = vmul.f32 %v164, 0.15915494
    %v173 = vmul.f32 %v165, 0.15915494
    %v174 = vmul.f32 %v166, 0.15915494
    %v175 = vmul.f32 %v167, 0.15915494
    %v176 = vadd.f32 %v168, 0.5
    %v177 = vadd.f32 %v169, 0.5
    %v178 = vadd.f32 %v170, 0.5
    %v179 = vadd.f32 %v171, 0.5
    %v180 = vadd.f32 %v172, 0.5
    %v181 = vadd.f32 %v173, 0.5
    %v182 = vadd.f32 %v174, 0.5
    %v183 = vadd.f32 %v175, 0.5
    %v184 = vfloor.f32 %v176
    %v185 = vfloor.f32 %v177
    %v186 = vfloor.f32 %v178
    %v187 = vfloor.f32 %v179
    %v188 = vfloor.f32 %v180
    %v189 = vfloor.f32 %v181
    %v190 = vfloor.f32 %v182
    %v191 = vfloor.f32 %v183
    %v192 = vmul.f32 %v184, 6.2831855
    %v193 = vmul.f32 %v185, 6.2831855
    %v194 = vmul.f32 %v186, 6.2831855
    %v195 = vmul.f32 %v187, 6.2831855
    %v196 = vmul.f32 %v188, 6.2831855
    %v197 = vmul.f32 %v189, 6.2831855
    %v198 = vmul.f32 %v190, 6.2831855
    %v199 = vmul.f32 %v191, 6.2831855
    %v200 = vsub.f32 %v160, %v192
    %v201 = vsub.f32 %v161, %v193
    %v202 = vsub.f32 %v162, %v194
    %v203 = vsub.f32 %v163, %v195
    %v204 = vsub.f32 %v164, %v196
    %v205 = vsub.f32 %v165, %v197
    %v206 = vsub.f32 %v166, %v198
    %v207 = vsub.f32 %v167, %v199
    %v208 = vadd.f32 %v200, 1.5707964
    %v209 = vadd.f32 %v201, 1.5707964
    %v210 = vadd.f32 %v202, 1.5707964
    %v211 = vadd.f32 %v203, 1.5707964
    %v212 = vadd.f32 %v204, 1.5707964
    %v213 = vadd.f32 %v205, 1.5707964
    %v214 = vadd.f32 %v206, 1.5707964
    %v215 = vadd.f32 %v207, 1.5707964
    %v216 = vand.u32 2147483647, %v200
    %vm217 = vcmp.le.f32.partialorder %v216, 0.7853982
    %vm218 = vcmp.lt.s32.totalorder %v200, 0
    %v219 = vand.u32 %v200, 2139095040
    %v220 = vshrl.u32 %v219, 23
    %v221 = vsub.s32 %v220, 127
    %v222 = vand.u32 2147483647, %v200
    %v223 = vand.u32 %v222, 8388607
    %v224 = vor.u32 %v223, 8388608
    %v225 = vsub.s32 0, %v224
    %v226 = vadd.s32 %v221, 1
    %vm227 = vcmp.gt.s32.totalorder %v226, 0
    %v228 = vsel %vm227, %v226, 0
    %v229 = vshrl.u32 %v228, 5
    %v230 = vand.u32 %v228, 31
    %v231 = vsub.s32 32, %v230
    %v232 = vshrl.u32 683565275, %v231
    %v233 = vshll.u32 683565275, %v230
    %v234 = vshrl.u32 2475754826, %v231
    %v235 = vor.u32 %v233, %v234
    %v236 = vshll.u32 2475754826, %v230
    %v237 = vshrl.u32 2131351028, %v231
    %v238 = vor.u32 %v236, %v237
    %v239 = vshll.u32 2131351028, %v230
    %v240 = vshrl.u32 2102212464, %v231
    %v241 = vor.u32 %v239, %v240
    %v242 = vshll.u32 2102212464, %v230
    %v243 = vshrl.u32 920167782, %v231
    %v244 = vor.u32 %v242, %v243
    %v245 = vshll.u32 920167782, %v230
    %v246 = vshrl.u32 1326507024, %v231
    %v247 = vor.u32 %v245, %v246
    %vm248 = vcmp.lt.s32.totalorder %v229, 1
    %vm249 = vcmp.lt.s32.totalorder %v229, 2
    %vm250 = vcmp.lt.s32.totalorder %v229, 3
    %vm251 = vcmp.lt.s32.totalorder %v229, 4
    %v252 = vsel %vm248, %v232, %v235
    %v253 = vsel %vm251, %v241, 2102212464
    %v254 = vsel %vm250, %v238, %v253
    %v255 = vsel %vm249, %v252, %v254
    %v256 = vsel %vm248, %v235, %v238
    %v257 = vsel %vm251, %v244, 920167782
    %v258 = vsel %vm250, %v241, %v257
    %v259 = vsel %vm249, %v256, %v258
    %v260 = vsel %vm248, %v238, %v241
    %v261 = vsel %vm251, %v247, 1326507024
    %v262 = vsel %vm250, %v244, %v261
    %v263 = vsel %vm249, %v260, %v262
    %v264 = vshll.u32 %v224, 8
    %v265 = vmul.u32.u64.compose %v264, %v263
    %v266 = vextract.low.u32 %v265
    %v267 = vextract.high.u32 %v265
    %v268 = vmul.u32.u64.compose %v264, %v259
    %v269 = vextract.low.u32 %v268
    %v270 = vextract.high.u32 %v268
    %v271 = vmul.u32 %v264, %v255
    %v272 = vadd.s32 %v267, %v269
    %vm273 = vc.u32 %v267, %v269
    %v274 = vadd.s32 %v270, 1
    %v275 = vsel %vm273, %v274, %v270
    %v276 = vadd.s32 %v271, %v275
    %v277 = vadd.s32 %v276, 536870912
    %v278 = vshrl.u32 %v277, 30
    %v279 = vshll.u32 %v278, 30
    %v280 = vsub.s32 %v276, %v279
    %vm281 = vcmp.lt.s32.totalorder %v280, 0
    %v282 = vsub.s32 0, %v280
    %v283 = vsel %vm281, %v282, %v280
    %v284 = vclz %v283
    %v285 = vsub.s32 %v284, 2
    %vm286 = vcmp.gt.s32.totalorder 0, %v285
    %v287 = vsel %vm286, 0, %v285
    %v288 = vsub.s32 32, %v287
    %v289 = vshll.u32 %v280, %v287
    %v290 = vshrl.u32 %v272, %v288
    %v291 = vor.u32 %v289, %v290
    %v292 = vsub.s32 4294967266, %v287
    %v293 = vadd.s32 %v292, 127
    %v294 = vshll.u32 %v293, 23
    %v295 = vor.u32 4788187, %v294
    %v296 = vand.u32 2147483647, %v295
    %v298 = vcvt.s32.f32 %v291
    %v299 = vmul.f32 %v298, %v296
    %v300 = vxor.u32 %v299, 2147483648
    %v301 = vsel %vm218, %v300, %v299
    %v302 = vsub.s32 4, %v278
    %v303 = vsel %vm218, %v302, %v278
    %v304 = vsel %vm217, %v200, %v301
    %v305 = vsel %vm217, 0, %v303
    %v306 = vcosq.f32.pop %v304
    %v307 = vsinq.f32.pop %v304
    %vm308 = vweird.f32 %v200
    %v309 = vadd.s32 %v305, 3
    %v310 = vand.u32 %v309, 3
    %vm311 = vcmp.lt.s32.totalorder %v310, 2
    %vm312 = vcmp.eq.s32.totalorder %v310, 0
    %v313 = vxor.u32 %v307, 2147483648
    %v314 = vsel %vm312, %v306, %v313
    %vm315 = vcmp.eq.s32.totalorder %v310, 2
    %v316 = vxor.u32 %v306, 2147483648
    %v317 = vsel %vm315, %v316, %v307
    %v318 = vsel %vm311, %v314, %v317
    %v319 = vsel %vm308, nan, %v318
    %v320 = vand.u32 2147483647, %v201
    %vm321 = vcmp.le.f32.partialorder %v320, 0.7853982
    %vm322 = vcmp.lt.s32.totalorder %v201, 0
    %v323 = vand.u32 %v201, 2139095040
    %v324 = vshrl.u32 %v323, 23
    %v325 = vsub.s32 %v324, 127
    %v326 = vand.u32 2147483647, %v201
    %v327 = vand.u32 %v326, 8388607
    %v328 = vor.u32 %v327, 8388608
    %v329 = vsub.s32 0, %v328
    %v330 = vadd.s32 %v325, 1
    %vm331 = vcmp.gt.s32.totalorder %v330, 0
    %v332 = vsel %vm331, %v330, 0
    %v333 = vshrl.u32 %v332, 5
    %v334 = vand.u32 %v332, 31
    %v335 = vsub.s32 32, %v334
    %v336 = vshrl.u32 683565275, %v335
    %v337 = vshll.u32 683565275, %v334
    %v338 = vshrl.u32 2475754826, %v335
    %v339 = vor.u32 %v337, %v338
    %v340 = vshll.u32 2475754826, %v334
    %v341 = vshrl.u32 2131351028, %v335
    %v342 = vor.u32 %v340, %v341
    %v343 = vshll.u32 2131351028, %v334
    %v344 = vshrl.u32 2102212464, %v335
    %v345 = vor.u32 %v343, %v344
    %v346 = vshll.u32 2102212464, %v334
    %v347 = vshrl.u32 920167782, %v335
    %v348 = vor.u32 %v346, %v347
    %v349 = vshll.u32 920167782, %v334
    %v350 = vshrl.u32 1326507024, %v335
    %v351 = vor.u32 %v349, %v350
    %vm352 = vcmp.lt.s32.totalorder %v333, 1
    %vm353 = vcmp.lt.s32.totalorder %v333, 2
    %vm354 = vcmp.lt.s32.totalorder %v333, 3
    %vm355 = vcmp.lt.s32.totalorder %v333, 4
    %v356 = vsel %vm352, %v336, %v339
    %v357 = vsel %vm355, %v345, 2102212464
    %v358 = vsel %vm354, %v342, %v357
    %v359 = vsel %vm353, %v356, %v358
    %v360 = vsel %vm352, %v339, %v342
    %v361 = vsel %vm355, %v348, 920167782
    %v362 = vsel %vm354, %v345, %v361
    %v363 = vsel %vm353, %v360, %v362
    %v364 = vsel %vm352, %v342, %v345
    %v365 = vsel %vm355, %v351, 1326507024
    %v366 = vsel %vm354, %v348, %v365
    %v367 = vsel %vm353, %v364, %v366
    %v368 = vshll.u32 %v328, 8
    %v369 = vmul.u32.u64.compose %v368, %v367
    %v370 = vextract.low.u32 %v369
    %v371 = vextract.high.u32 %v369
    %v372 = vmul.u32.u64.compose %v368, %v363
    %v373 = vextract.low.u32 %v372
    %v374 = vextract.high.u32 %v372
    %v375 = vmul.u32 %v368, %v359
    %v376 = vadd.s32 %v371, %v373
    %vm377 = vc.u32 %v371, %v373
    %v378 = vadd.s32 %v374, 1
    %v379 = vsel %vm377, %v378, %v374
    %v380 = vadd.s32 %v375, %v379
    %v381 = vadd.s32 %v380, 536870912
    %v382 = vshrl.u32 %v381, 30
    %v383 = vshll.u32 %v382, 30
    %v384 = vsub.s32 %v380, %v383
    %vm385 = vcmp.lt.s32.totalorder %v384, 0
    %v386 = vsub.s32 0, %v384
    %v387 = vsel %vm385, %v386, %v384
    %v388 = vclz %v387
    %v389 = vsub.s32 %v388, 2
    %vm390 = vcmp.gt.s32.totalorder 0, %v389
    %v391 = vsel %vm390, 0, %v389
    %v392 = vsub.s32 32, %v391
    %v393 = vshll.u32 %v384, %v391
    %v394 = vshrl.u32 %v376, %v392
    %v395 = vor.u32 %v393, %v394
    %v396 = vsub.s32 4294967266, %v391
    %v397 = vadd.s32 %v396, 127
    %v398 = vshll.u32 %v397, 23
    %v399 = vor.u32 4788187, %v398
    %v400 = vand.u32 2147483647, %v399
    %v402 = vcvt.s32.f32 %v395
    %v403 = vmul.f32 %v402, %v400
    %v404 = vxor.u32 %v403, 2147483648
    %v405 = vsel %vm322, %v404, %v403
    %v406 = vsub.s32 4, %v382
    %v407 = vsel %vm322, %v406, %v382
    %v408 = vsel %vm321, %v201, %v405
    %v409 = vsel %vm321, 0, %v407
    %v410 = vcosq.f32.pop %v408
    %v411 = vsinq.f32.pop %v408
    %vm412 = vweird.f32 %v201
    %v413 = vadd.s32 %v409, 3
    %v414 = vand.u32 %v413, 3
    %vm415 = vcmp.lt.s32.totalorder %v414, 2
    %vm416 = vcmp.eq.s32.totalorder %v414, 0
    %v417 = vxor.u32 %v411, 2147483648
    %v418 = vsel %vm416, %v410, %v417
    %vm419 = vcmp.eq.s32.totalorder %v414, 2
    %v420 = vxor.u32 %v410, 2147483648
    %v421 = vsel %vm419, %v420, %v411
    %v422 = vsel %vm415, %v418, %v421
    %v423 = vsel %vm412, nan, %v422
    %v424 = vand.u32 2147483647, %v202
    %vm425 = vcmp.le.f32.partialorder %v424, 0.7853982
    %vm426 = vcmp.lt.s32.totalorder %v202, 0
    %v427 = vand.u32 %v202, 2139095040
    %v428 = vshrl.u32 %v427, 23
    %v429 = vsub.s32 %v428, 127
    %v430 = vand.u32 2147483647, %v202
    %v431 = vand.u32 %v430, 8388607
    %v432 = vor.u32 %v431, 8388608
    %v433 = vsub.s32 0, %v432
    %v434 = vadd.s32 %v429, 1
    %vm435 = vcmp.gt.s32.totalorder %v434, 0
    %v436 = vsel %vm435, %v434, 0
    %v437 = vshrl.u32 %v436, 5
    %v438 = vand.u32 %v436, 31
    %v439 = vsub.s32 32, %v438
    %v440 = vshrl.u32 683565275, %v439
    %v441 = vshll.u32 683565275, %v438
    %v442 = vshrl.u32 2475754826, %v439
    %v443 = vor.u32 %v441, %v442
    %v444 = vshll.u32 2475754826, %v438
    %v445 = vshrl.u32 2131351028, %v439
    %v446 = vor.u32 %v444, %v445
    %v447 = vshll.u32 2131351028, %v438
    %v448 = vshrl.u32 2102212464, %v439
    %v449 = vor.u32 %v447, %v448
    %v450 = vshll.u32 2102212464, %v438
    %v451 = vshrl.u32 920167782, %v439
    %v452 = vor.u32 %v450, %v451
    %v453 = vshll.u32 920167782, %v438
    %v454 = vshrl.u32 1326507024, %v439
    %v455 = vor.u32 %v453, %v454
    %vm456 = vcmp.lt.s32.totalorder %v437, 1
    %vm457 = vcmp.lt.s32.totalorder %v437, 2
    %vm458 = vcmp.lt.s32.totalorder %v437, 3
    %vm459 = vcmp.lt.s32.totalorder %v437, 4
    %v460 = vsel %vm456, %v440, %v443
    %v461 = vsel %vm459, %v449, 2102212464
    %v462 = vsel %vm458, %v446, %v461
    %v463 = vsel %vm457, %v460, %v462
    %v464 = vsel %vm456, %v443, %v446
    %v465 = vsel %vm459, %v452, 920167782
    %v466 = vsel %vm458, %v449, %v465
    %v467 = vsel %vm457, %v464, %v466
    %v468 = vsel %vm456, %v446, %v449
    %v469 = vsel %vm459, %v455, 1326507024
    %v470 = vsel %vm458, %v452, %v469
    %v471 = vsel %vm457, %v468, %v470
    %v472 = vshll.u32 %v432, 8
    %v473 = vmul.u32.u64.compose %v472, %v471
    %v474 = vextract.low.u32 %v473
    %v475 = vextract.high.u32 %v473
    %v476 = vmul.u32.u64.compose %v472, %v467
    %v477 = vextract.low.u32 %v476
    %v478 = vextract.high.u32 %v476
    %v479 = vmul.u32 %v472, %v463
    %v480 = vadd.s32 %v475, %v477
    %vm481 = vc.u32 %v475, %v477
    %v482 = vadd.s32 %v478, 1
    %v483 = vsel %vm481, %v482, %v478
    %v484 = vadd.s32 %v479, %v483
    %v485 = vadd.s32 %v484, 536870912
    %v486 = vshrl.u32 %v485, 30
    %v487 = vshll.u32 %v486, 30
    %v488 = vsub.s32 %v484, %v487
    %vm489 = vcmp.lt.s32.totalorder %v488, 0
    %v490 = vsub.s32 0, %v488
    %v491 = vsel %vm489, %v490, %v488
    %v492 = vclz %v491
    %v493 = vsub.s32 %v492, 2
    %vm494 = vcmp.gt.s32.totalorder 0, %v493
    %v495 = vsel %vm494, 0, %v493
    %v496 = vsub.s32 32, %v495
    %v497 = vshll.u32 %v488, %v495
    %v498 = vshrl.u32 %v480, %v496
    %v499 = vor.u32 %v497, %v498
    %v500 = vsub.s32 4294967266, %v495
    %v501 = vadd.s32 %v500, 127
    %v502 = vshll.u32 %v501, 23
    %v503 = vor.u32 4788187, %v502
    %v504 = vand.u32 2147483647, %v503
    %v506 = vcvt.s32.f32 %v499
    %v507 = vmul.f32 %v506, %v504
    %v508 = vxor.u32 %v507, 2147483648
    %v509 = vsel %vm426, %v508, %v507
    %v510 = vsub.s32 4, %v486
    %v511 = vsel %vm426, %v510, %v486
    %v512 = vsel %vm425, %v202, %v509
    %v513 = vsel %vm425, 0, %v511
    %v514 = vcosq.f32.pop %v512
    %v515 = vsinq.f32.pop %v512
    %vm516 = vweird.f32 %v202
    %v517 = vadd.s32 %v513, 3
    %v518 = vand.u32 %v517, 3
    %vm519 = vcmp.lt.s32.totalorder %v518, 2
    %vm520 = vcmp.eq.s32.totalorder %v518, 0
    %v521 = vxor.u32 %v515, 2147483648
    %v522 = vsel %vm520, %v514, %v521
    %vm523 = vcmp.eq.s32.totalorder %v518, 2
    %v524 = vxor.u32 %v514, 2147483648
    %v525 = vsel %vm523, %v524, %v515
    %v526 = vsel %vm519, %v522, %v525
    %v527 = vsel %vm516, nan, %v526
    %v528 = vand.u32 2147483647, %v203
    %vm529 = vcmp.le.f32.partialorder %v528, 0.7853982
    %vm530 = vcmp.lt.s32.totalorder %v203, 0
    %v531 = vand.u32 %v203, 2139095040
    %v532 = vshrl.u32 %v531, 23
    %v533 = vsub.s32 %v532, 127
    %v534 = vand.u32 2147483647, %v203
    %v535 = vand.u32 %v534, 8388607
    %v536 = vor.u32 %v535, 8388608
    %v537 = vsub.s32 0, %v536
    %v538 = vadd.s32 %v533, 1
    %vm539 = vcmp.gt.s32.totalorder %v538, 0
    %v540 = vsel %vm539, %v538, 0
    %v541 = vshrl.u32 %v540, 5
    %v542 = vand.u32 %v540, 31
    %v543 = vsub.s32 32, %v542
    %v544 = vshrl.u32 683565275, %v543
    %v545 = vshll.u32 683565275, %v542
    %v546 = vshrl.u32 2475754826, %v543
    %v547 = vor.u32 %v545, %v546
    %v548 = vshll.u32 2475754826, %v542
    %v549 = vshrl.u32 2131351028, %v543
    %v550 = vor.u32 %v548, %v549
    %v551 = vshll.u32 2131351028, %v542
    %v552 = vshrl.u32 2102212464, %v543
    %v553 = vor.u32 %v551, %v552
    %v554 = vshll.u32 2102212464, %v542
    %v555 = vshrl.u32 920167782, %v543
    %v556 = vor.u32 %v554, %v555
    %v557 = vshll.u32 920167782, %v542
    %v558 = vshrl.u32 1326507024, %v543
    %v559 = vor.u32 %v557, %v558
    %vm560 = vcmp.lt.s32.totalorder %v541, 1
    %vm561 = vcmp.lt.s32.totalorder %v541, 2
    %vm562 = vcmp.lt.s32.totalorder %v541, 3
    %vm563 = vcmp.lt.s32.totalorder %v541, 4
    %v564 = vsel %vm560, %v544, %v547
    %v565 = vsel %vm563, %v553, 2102212464
    %v566 = vsel %vm562, %v550, %v565
    %v567 = vsel %vm561, %v564, %v566
    %v568 = vsel %vm560, %v547, %v550
    %v569 = vsel %vm563, %v556, 920167782
    %v570 = vsel %vm562, %v553, %v569
    %v571 = vsel %vm561, %v568, %v570
    %v572 = vsel %vm560, %v550, %v553
    %v573 = vsel %vm563, %v559, 1326507024
    %v574 = vsel %vm562, %v556, %v573
    %v575 = vsel %vm561, %v572, %v574
    %v576 = vshll.u32 %v536, 8
    %v577 = vmul.u32.u64.compose %v576, %v575
    %v578 = vextract.low.u32 %v577
    %v579 = vextract.high.u32 %v577
    %v580 = vmul.u32.u64.compose %v576, %v571
    %v581 = vextract.low.u32 %v580
    %v582 = vextract.high.u32 %v580
    %v583 = vmul.u32 %v576, %v567
    %v584 = vadd.s32 %v579, %v581
    %vm585 = vc.u32 %v579, %v581
    %v586 = vadd.s32 %v582, 1
    %v587 = vsel %vm585, %v586, %v582
    %v588 = vadd.s32 %v583, %v587
    %v589 = vadd.s32 %v588, 536870912
    %v590 = vshrl.u32 %v589, 30
    %v591 = vshll.u32 %v590, 30
    %v592 = vsub.s32 %v588, %v591
    %vm593 = vcmp.lt.s32.totalorder %v592, 0
    %v594 = vsub.s32 0, %v592
    %v595 = vsel %vm593, %v594, %v592
    %v596 = vclz %v595
    %v597 = vsub.s32 %v596, 2
    %vm598 = vcmp.gt.s32.totalorder 0, %v597
    %v599 = vsel %vm598, 0, %v597
    %v600 = vsub.s32 32, %v599
    %v601 = vshll.u32 %v592, %v599
    %v602 = vshrl.u32 %v584, %v600
    %v603 = vor.u32 %v601, %v602
    %v604 = vsub.s32 4294967266, %v599
    %v605 = vadd.s32 %v604, 127
    %v606 = vshll.u32 %v605, 23
    %v607 = vor.u32 4788187, %v606
    %v608 = vand.u32 2147483647, %v607
    %v610 = vcvt.s32.f32 %v603
    %v611 = vmul.f32 %v610, %v608
    %v612 = vxor.u32 %v611, 2147483648
    %v613 = vsel %vm530, %v612, %v611
    %v614 = vsub.s32 4, %v590
    %v615 = vsel %vm530, %v614, %v590
    %v616 = vsel %vm529, %v203, %v613
    %v617 = vsel %vm529, 0, %v615
    %v618 = vcosq.f32.pop %v616
    %v619 = vsinq.f32.pop %v616
    %vm620 = vweird.f32 %v203
    %v621 = vadd.s32 %v617, 3
    %v622 = vand.u32 %v621, 3
    %vm623 = vcmp.lt.s32.totalorder %v622, 2
    %vm624 = vcmp.eq.s32.totalorder %v622, 0
    %v625 = vxor.u32 %v619, 2147483648
    %v626 = vsel %vm624, %v618, %v625
    %vm627 = vcmp.eq.s32.totalorder %v622, 2
    %v628 = vxor.u32 %v618, 2147483648
    %v629 = vsel %vm627, %v628, %v619
    %v630 = vsel %vm623, %v626, %v629
    %v631 = vsel %vm620, nan, %v630
    %v632 = vand.u32 2147483647, %v204
    %vm633 = vcmp.le.f32.partialorder %v632, 0.7853982
    %vm634 = vcmp.lt.s32.totalorder %v204, 0
    %v635 = vand.u32 %v204, 2139095040
    %v636 = vshrl.u32 %v635, 23
    %v637 = vsub.s32 %v636, 127
    %v638 = vand.u32 2147483647, %v204
    %v639 = vand.u32 %v638, 8388607
    %v640 = vor.u32 %v639, 8388608
    %v641 = vsub.s32 0, %v640
    %v642 = vadd.s32 %v637, 1
    %vm643 = vcmp.gt.s32.totalorder %v642, 0
    %v644 = vsel %vm643, %v642, 0
    %v645 = vshrl.u32 %v644, 5
    %v646 = vand.u32 %v644, 31
    %v647 = vsub.s32 32, %v646
    %v648 = vshrl.u32 683565275, %v647
    %v649 = vshll.u32 683565275, %v646
    %v650 = vshrl.u32 2475754826, %v647
    %v651 = vor.u32 %v649, %v650
    %v652 = vshll.u32 2475754826, %v646
    %v653 = vshrl.u32 2131351028, %v647
    %v654 = vor.u32 %v652, %v653
    %v655 = vshll.u32 2131351028, %v646
    %v656 = vshrl.u32 2102212464, %v647
    %v657 = vor.u32 %v655, %v656
    %v658 = vshll.u32 2102212464, %v646
    %v659 = vshrl.u32 920167782, %v647
    %v660 = vor.u32 %v658, %v659
    %v661 = vshll.u32 920167782, %v646
    %v662 = vshrl.u32 1326507024, %v647
    %v663 = vor.u32 %v661, %v662
    %vm664 = vcmp.lt.s32.totalorder %v645, 1
    %vm665 = vcmp.lt.s32.totalorder %v645, 2
    %vm666 = vcmp.lt.s32.totalorder %v645, 3
    %vm667 = vcmp.lt.s32.totalorder %v645, 4
    %v668 = vsel %vm664, %v648, %v651
    %v669 = vsel %vm667, %v657, 2102212464
    %v670 = vsel %vm666, %v654, %v669
    %v671 = vsel %vm665, %v668, %v670
    %v672 = vsel %vm664, %v651, %v654
    %v673 = vsel %vm667, %v660, 920167782
    %v674 = vsel %vm666, %v657, %v673
    %v675 = vsel %vm665, %v672, %v674
    %v676 = vsel %vm664, %v654, %v657
    %v677 = vsel %vm667, %v663, 1326507024
    %v678 = vsel %vm666, %v660, %v677
    %v679 = vsel %vm665, %v676, %v678
    %v680 = vshll.u32 %v640, 8
    %v681 = vmul.u32.u64.compose %v680, %v679
    %v682 = vextract.low.u32 %v681
    %v683 = vextract.high.u32 %v681
    %v684 = vmul.u32.u64.compose %v680, %v675
    %v685 = vextract.low.u32 %v684
    %v686 = vextract.high.u32 %v684
    %v687 = vmul.u32 %v680, %v671
    %v688 = vadd.s32 %v683, %v685
    %vm689 = vc.u32 %v683, %v685
    %v690 = vadd.s32 %v686, 1
    %v691 = vsel %vm689, %v690, %v686
    %v692 = vadd.s32 %v687, %v691
    %v693 = vadd.s32 %v692, 536870912
    %v694 = vshrl.u32 %v693, 30
    %v695 = vshll.u32 %v694, 30
    %v696 = vsub.s32 %v692, %v695
    %vm697 = vcmp.lt.s32.totalorder %v696, 0
    %v698 = vsub.s32 0, %v696
    %v699 = vsel %vm697, %v698, %v696
    %v700 = vclz %v699
    %v701 = vsub.s32 %v700, 2
    %vm702 = vcmp.gt.s32.totalorder 0, %v701
    %v703 = vsel %vm702, 0, %v701
    %v704 = vsub.s32 32, %v703
    %v705 = vshll.u32 %v696, %v703
    %v706 = vshrl.u32 %v688, %v704
    %v707 = vor.u32 %v705, %v706
    %v708 = vsub.s32 4294967266, %v703
    %v709 = vadd.s32 %v708, 127
    %v710 = vshll.u32 %v709, 23
    %v711 = vor.u32 4788187, %v710
    %v712 = vand.u32 2147483647, %v711
    %v714 = vcvt.s32.f32 %v707
    %v715 = vmul.f32 %v714, %v712
    %v716 = vxor.u32 %v715, 2147483648
    %v717 = vsel %vm634, %v716, %v715
    %v718 = vsub.s32 4, %v694
    %v719 = vsel %vm634, %v718, %v694
    %v720 = vsel %vm633, %v204, %v717
    %v721 = vsel %vm633, 0, %v719
    %v722 = vcosq.f32.pop %v720
    %v723 = vsinq.f32.pop %v720
    %vm724 = vweird.f32 %v204
    %v725 = vadd.s32 %v721, 3
    %v726 = vand.u32 %v725, 3
    %vm727 = vcmp.lt.s32.totalorder %v726, 2
    %vm728 = vcmp.eq.s32.totalorder %v726, 0
    %v729 = vxor.u32 %v723, 2147483648
    %v730 = vsel %vm728, %v722, %v729
    %vm731 = vcmp.eq.s32.totalorder %v726, 2
    %v732 = vxor.u32 %v722, 2147483648
    %v733 = vsel %vm731, %v732, %v723
    %v734 = vsel %vm727, %v730, %v733
    %v735 = vsel %vm724, nan, %v734
    %v736 = vand.u32 2147483647, %v205
    %vm737 = vcmp.le.f32.partialorder %v736, 0.7853982
    %vm738 = vcmp.lt.s32.totalorder %v205, 0
    %v739 = vand.u32 %v205, 2139095040
    %v740 = vshrl.u32 %v739, 23
    %v741 = vsub.s32 %v740, 127
    %v742 = vand.u32 2147483647, %v205
    %v743 = vand.u32 %v742, 8388607
    %v744 = vor.u32 %v743, 8388608
    %v745 = vsub.s32 0, %v744
    %v746 = vadd.s32 %v741, 1
    %vm747 = vcmp.gt.s32.totalorder %v746, 0
    %v748 = vsel %vm747, %v746, 0
    %v749 = vshrl.u32 %v748, 5
    %v750 = vand.u32 %v748, 31
    %v751 = vsub.s32 32, %v750
    %v752 = vshrl.u32 683565275, %v751
    %v753 = vshll.u32 683565275, %v750
    %v754 = vshrl.u32 2475754826, %v751
    %v755 = vor.u32 %v753, %v754
    %v756 = vshll.u32 2475754826, %v750
    %v757 = vshrl.u32 2131351028, %v751
    %v758 = vor.u32 %v756, %v757
    %v759 = vshll.u32 2131351028, %v750
    %v760 = vshrl.u32 2102212464, %v751
    %v761 = vor.u32 %v759, %v760
    %v762 = vshll.u32 2102212464, %v750
    %v763 = vshrl.u32 920167782, %v751
    %v764 = vor.u32 %v762, %v763
    %v765 = vshll.u32 920167782, %v750
    %v766 = vshrl.u32 1326507024, %v751
    %v767 = vor.u32 %v765, %v766
    %vm768 = vcmp.lt.s32.totalorder %v749, 1
    %vm769 = vcmp.lt.s32.totalorder %v749, 2
    %vm770 = vcmp.lt.s32.totalorder %v749, 3
    %vm771 = vcmp.lt.s32.totalorder %v749, 4
    %v772 = vsel %vm768, %v752, %v755
    %v773 = vsel %vm771, %v761, 2102212464
    %v774 = vsel %vm770, %v758, %v773
    %v775 = vsel %vm769, %v772, %v774
    %v776 = vsel %vm768, %v755, %v758
    %v777 = vsel %vm771, %v764, 920167782
    %v778 = vsel %vm770, %v761, %v777
    %v779 = vsel %vm769, %v776, %v778
    %v780 = vsel %vm768, %v758, %v761
    %v781 = vsel %vm771, %v767, 1326507024
    %v782 = vsel %vm770, %v764, %v781
    %v783 = vsel %vm769, %v780, %v782
    %v784 = vshll.u32 %v744, 8
    %v785 = vmul.u32.u64.compose %v784, %v783
    %v786 = vextract.low.u32 %v785
    %v787 = vextract.high.u32 %v785
    %v788 = vmul.u32.u64.compose %v784, %v779
    %v789 = vextract.low.u32 %v788
    %v790 = vextract.high.u32 %v788
    %v791 = vmul.u32 %v784, %v775
    %v792 = vadd.s32 %v787, %v789
    %vm793 = vc.u32 %v787, %v789
    %v794 = vadd.s32 %v790, 1
    %v795 = vsel %vm793, %v794, %v790
    %v796 = vadd.s32 %v791, %v795
    %v797 = vadd.s32 %v796, 536870912
    %v798 = vshrl.u32 %v797, 30
    %v799 = vshll.u32 %v798, 30
    %v800 = vsub.s32 %v796, %v799
    %vm801 = vcmp.lt.s32.totalorder %v800, 0
    %v802 = vsub.s32 0, %v800
    %v803 = vsel %vm801, %v802, %v800
    %v804 = vclz %v803
    %v805 = vsub.s32 %v804, 2
    %vm806 = vcmp.gt.s32.totalorder 0, %v805
    %v807 = vsel %vm806, 0, %v805
    %v808 = vsub.s32 32, %v807
    %v809 = vshll.u32 %v800, %v807
    %v810 = vshrl.u32 %v792, %v808
    %v811 = vor.u32 %v809, %v810
    %v812 = vsub.s32 4294967266, %v807
    %v813 = vadd.s32 %v812, 127
    %v814 = vshll.u32 %v813, 23
    %v815 = vor.u32 4788187, %v814
    %v816 = vand.u32 2147483647, %v815
    %v818 = vcvt.s32.f32 %v811
    %v819 = vmul.f32 %v818, %v816
    %v820 = vxor.u32 %v819, 2147483648
    %v821 = vsel %vm738, %v820, %v819
    %v822 = vsub.s32 4, %v798
    %v823 = vsel %vm738, %v822, %v798
    %v824 = vsel %vm737, %v205, %v821
    %v825 = vsel %vm737, 0, %v823
    %v826 = vcosq.f32.pop %v824
    %v827 = vsinq.f32.pop %v824
    %vm828 = vweird.f32 %v205
    %v829 = vadd.s32 %v825, 3
    %v830 = vand.u32 %v829, 3
    %vm831 = vcmp.lt.s32.totalorder %v830, 2
    %vm832 = vcmp.eq.s32.totalorder %v830, 0
    %v833 = vxor.u32 %v827, 2147483648
    %v834 = vsel %vm832, %v826, %v833
    %vm835 = vcmp.eq.s32.totalorder %v830, 2
    %v836 = vxor.u32 %v826, 2147483648
    %v837 = vsel %vm835, %v836, %v827
    %v838 = vsel %vm831, %v834, %v837
    %v839 = vsel %vm828, nan, %v838
    %v840 = vand.u32 2147483647, %v206
    %vm841 = vcmp.le.f32.partialorder %v840, 0.7853982
    %vm842 = vcmp.lt.s32.totalorder %v206, 0
    %v843 = vand.u32 %v206, 2139095040
    %v844 = vshrl.u32 %v843, 23
    %v845 = vsub.s32 %v844, 127
    %v846 = vand.u32 2147483647, %v206
    %v847 = vand.u32 %v846, 8388607
    %v848 = vor.u32 %v847, 8388608
    %v849 = vsub.s32 0, %v848
    %v850 = vadd.s32 %v845, 1
    %vm851 = vcmp.gt.s32.totalorder %v850, 0
    %v852 = vsel %vm851, %v850, 0
    %v853 = vshrl.u32 %v852, 5
    %v854 = vand.u32 %v852, 31
    %v855 = vsub.s32 32, %v854
    %v856 = vshrl.u32 683565275, %v855
    %v857 = vshll.u32 683565275, %v854
    %v858 = vshrl.u32 2475754826, %v855
    %v859 = vor.u32 %v857, %v858
    %v860 = vshll.u32 2475754826, %v854
    %v861 = vshrl.u32 2131351028, %v855
    %v862 = vor.u32 %v860, %v861
    %v863 = vshll.u32 2131351028, %v854
    %v864 = vshrl.u32 2102212464, %v855
    %v865 = vor.u32 %v863, %v864
    %v866 = vshll.u32 2102212464, %v854
    %v867 = vshrl.u32 920167782, %v855
    %v868 = vor.u32 %v866, %v867
    %v869 = vshll.u32 920167782, %v854
    %v870 = vshrl.u32 1326507024, %v855
    %v871 = vor.u32 %v869, %v870
    %vm872 = vcmp.lt.s32.totalorder %v853, 1
    %vm873 = vcmp.lt.s32.totalorder %v853, 2
    %vm874 = vcmp.lt.s32.totalorder %v853, 3
    %vm875 = vcmp.lt.s32.totalorder %v853, 4
    %v876 = vsel %vm872, %v856, %v859
    %v877 = vsel %vm875, %v865, 2102212464
    %v878 = vsel %vm874, %v862, %v877
    %v879 = vsel %vm873, %v876, %v878
    %v880 = vsel %vm872, %v859, %v862
    %v881 = vsel %vm875, %v868, 920167782
    %v882 = vsel %vm874, %v865, %v881
    %v883 = vsel %vm873, %v880, %v882
    %v884 = vsel %vm872, %v862, %v865
    %v885 = vsel %vm875, %v871, 1326507024
    %v886 = vsel %vm874, %v868, %v885
    %v887 = vsel %vm873, %v884, %v886
    %v888 = vshll.u32 %v848, 8
    %v889 = vmul.u32.u64.compose %v888, %v887
    %v890 = vextract.low.u32 %v889
    %v891 = vextract.high.u32 %v889
    %v892 = vmul.u32.u64.compose %v888, %v883
    %v893 = vextract.low.u32 %v892
    %v894 = vextract.high.u32 %v892
    %v895 = vmul.u32 %v888, %v879
    %v896 = vadd.s32 %v891, %v893
    %vm897 = vc.u32 %v891, %v893
    %v898 = vadd.s32 %v894, 1
    %v899 = vsel %vm897, %v898, %v894
    %v900 = vadd.s32 %v895, %v899
    %v901 = vadd.s32 %v900, 536870912
    %v902 = vshrl.u32 %v901, 30
    %v903 = vshll.u32 %v902, 30
    %v904 = vsub.s32 %v900, %v903
    %vm905 = vcmp.lt.s32.totalorder %v904, 0
    %v906 = vsub.s32 0, %v904
    %v907 = vsel %vm905, %v906, %v904
    %v908 = vclz %v907
    %v909 = vsub.s32 %v908, 2
    %vm910 = vcmp.gt.s32.totalorder 0, %v909
    %v911 = vsel %vm910, 0, %v909
    %v912 = vsub.s32 32, %v911
    %v913 = vshll.u32 %v904, %v911
    %v914 = vshrl.u32 %v896, %v912
    %v915 = vor.u32 %v913, %v914
    %v916 = vsub.s32 4294967266, %v911
    %v917 = vadd.s32 %v916, 127
    %v918 = vshll.u32 %v917, 23
    %v919 = vor.u32 4788187, %v918
    %v920 = vand.u32 2147483647, %v919
    %v922 = vcvt.s32.f32 %v915
    %v923 = vmul.f32 %v922, %v920
    %v924 = vxor.u32 %v923, 2147483648
    %v925 = vsel %vm842, %v924, %v923
    %v926 = vsub.s32 4, %v902
    %v927 = vsel %vm842, %v926, %v902
    %v928 = vsel %vm841, %v206, %v925
    %v929 = vsel %vm841, 0, %v927
    %v930 = vcosq.f32.pop %v928
    %v931 = vsinq.f32.pop %v928
    %vm932 = vweird.f32 %v206
    %v933 = vadd.s32 %v929, 3
    %v934 = vand.u32 %v933, 3
    %vm935 = vcmp.lt.s32.totalorder %v934, 2
    %vm936 = vcmp.eq.s32.totalorder %v934, 0
    %v937 = vxor.u32 %v931, 2147483648
    %v938 = vsel %vm936, %v930, %v937
    %vm939 = vcmp.eq.s32.totalorder %v934, 2
    %v940 = vxor.u32 %v930, 2147483648
    %v941 = vsel %vm939, %v940, %v931
    %v942 = vsel %vm935, %v938, %v941
    %v943 = vsel %vm932, nan, %v942
    %v944 = vand.u32 2147483647, %v207
    %vm945 = vcmp.le.f32.partialorder %v944, 0.7853982
    %vm946 = vcmp.lt.s32.totalorder %v207, 0
    %v947 = vand.u32 %v207, 2139095040
    %v948 = vshrl.u32 %v947, 23
    %v949 = vsub.s32 %v948, 127
    %v950 = vand.u32 2147483647, %v207
    %v951 = vand.u32 %v950, 8388607
    %v952 = vor.u32 %v951, 8388608
    %v953 = vsub.s32 0, %v952
    %v954 = vadd.s32 %v949, 1
    %vm955 = vcmp.gt.s32.totalorder %v954, 0
    %v956 = vsel %vm955, %v954, 0
    %v957 = vshrl.u32 %v956, 5
    %v958 = vand.u32 %v956, 31
    %v959 = vsub.s32 32, %v958
    %v960 = vshrl.u32 683565275, %v959
    %v961 = vshll.u32 683565275, %v958
    %v962 = vshrl.u32 2475754826, %v959
    %v963 = vor.u32 %v961, %v962
    %v964 = vshll.u32 2475754826, %v958
    %v965 = vshrl.u32 2131351028, %v959
    %v966 = vor.u32 %v964, %v965
    %v967 = vshll.u32 2131351028, %v958
    %v968 = vshrl.u32 2102212464, %v959
    %v969 = vor.u32 %v967, %v968
    %v970 = vshll.u32 2102212464, %v958
    %v971 = vshrl.u32 920167782, %v959
    %v972 = vor.u32 %v970, %v971
    %v973 = vshll.u32 920167782, %v958
    %v974 = vshrl.u32 1326507024, %v959
    %v975 = vor.u32 %v973, %v974
    %vm976 = vcmp.lt.s32.totalorder %v957, 1
    %vm977 = vcmp.lt.s32.totalorder %v957, 2
    %vm978 = vcmp.lt.s32.totalorder %v957, 3
    %vm979 = vcmp.lt.s32.totalorder %v957, 4
    %v980 = vsel %vm976, %v960, %v963
    %v981 = vsel %vm979, %v969, 2102212464
    %v982 = vsel %vm978, %v966, %v981
    %v983 = vsel %vm977, %v980, %v982
    %v984 = vsel %vm976, %v963, %v966
    %v985 = vsel %vm979, %v972, 920167782
    %v986 = vsel %vm978, %v969, %v985
    %v987 = vsel %vm977, %v984, %v986
    %v988 = vsel %vm976, %v966, %v969
    %v989 = vsel %vm979, %v975, 1326507024
    %v990 = vsel %vm978, %v972, %v989
    %v991 = vsel %vm977, %v988, %v990
    %v992 = vshll.u32 %v952, 8
    %v993 = vmul.u32.u64.compose %v992, %v991
    %v994 = vextract.low.u32 %v993
    %v995 = vextract.high.u32 %v993
    %v996 = vmul.u32.u64.compose %v992, %v987
    %v997 = vextract.low.u32 %v996
    %v998 = vextract.high.u32 %v996
    %v999 = vmul.u32 %v992, %v983
    %v1000 = vadd.s32 %v995, %v997
    %vm1001 = vc.u32 %v995, %v997
    %v1002 = vadd.s32 %v998, 1
    %v1003 = vsel %vm1001, %v1002, %v998
    %v1004 = vadd.s32 %v999, %v1003
    %v1005 = vadd.s32 %v1004, 536870912
    %v1006 = vshrl.u32 %v1005, 30
    %v1007 = vshll.u32 %v1006, 30
    %v1008 = vsub.s32 %v1004, %v1007
    %vm1009 = vcmp.lt.s32.totalorder %v1008, 0
    %v1010 = vsub.s32 0, %v1008
    %v1011 = vsel %vm1009, %v1010, %v1008
    %v1012 = vclz %v1011
    %v1013 = vsub.s32 %v1012, 2
    %vm1014 = vcmp.gt.s32.totalorder 0, %v1013
    %v1015 = vsel %vm1014, 0, %v1013
    %v1016 = vsub.s32 32, %v1015
    %v1017 = vshll.u32 %v1008, %v1015
    %v1018 = vshrl.u32 %v1000, %v1016
    %v1019 = vor.u32 %v1017, %v1018
    %v1020 = vsub.s32 4294967266, %v1015
    %v1021 = vadd.s32 %v1020, 127
    %v1022 = vshll.u32 %v1021, 23
    %v1023 = vor.u32 4788187, %v1022
    %v1024 = vand.u32 2147483647, %v1023
    %v1026 = vcvt.s32.f32 %v1019
    %v1027 = vmul.f32 %v1026, %v1024
    %v1028 = vxor.u32 %v1027, 2147483648
    %v1029 = vsel %vm946, %v1028, %v1027
    %v1030 = vsub.s32 4, %v1006
    %v1031 = vsel %vm946, %v1030, %v1006
    %v1032 = vsel %vm945, %v207, %v1029
    %v1033 = vsel %vm945, 0, %v1031
    %v1034 = vcosq.f32.pop %v1032
    %v1035 = vsinq.f32.pop %v1032
    %vm1036 = vweird.f32 %v207
    %v1037 = vadd.s32 %v1033, 3
    %v1038 = vand.u32 %v1037, 3
    %vm1039 = vcmp.lt.s32.totalorder %v1038, 2
    %vm1040 = vcmp.eq.s32.totalorder %v1038, 0
    %v1041 = vxor.u32 %v1035, 2147483648
    %v1042 = vsel %vm1040, %v1034, %v1041
    %vm1043 = vcmp.eq.s32.totalorder %v1038, 2
    %v1044 = vxor.u32 %v1034, 2147483648
    %v1045 = vsel %vm1043, %v1044, %v1035
    %v1046 = vsel %vm1039, %v1042, %v1045
    %v1047 = vsel %vm1036, nan, %v1046
    %v1048 = vand.u32 2147483647, %v208
    %vm1049 = vcmp.le.f32.partialorder %v1048, 0.7853982
    %vm1050 = vcmp.lt.s32.totalorder %v208, 0
    %v1051 = vand.u32 %v208, 2139095040
    %v1052 = vshrl.u32 %v1051, 23
    %v1053 = vsub.s32 %v1052, 127
    %v1054 = vand.u32 2147483647, %v208
    %v1055 = vand.u32 %v1054, 8388607
    %v1056 = vor.u32 %v1055, 8388608
    %v1057 = vsub.s32 0, %v1056
    %v1058 = vadd.s32 %v1053, 1
    %vm1059 = vcmp.gt.s32.totalorder %v1058, 0
    %v1060 = vsel %vm1059, %v1058, 0
    %v1061 = vshrl.u32 %v1060, 5
    %v1062 = vand.u32 %v1060, 31
    %v1063 = vsub.s32 32, %v1062
    %v1064 = vshrl.u32 683565275, %v1063
    %v1065 = vshll.u32 683565275, %v1062
    %v1066 = vshrl.u32 2475754826, %v1063
    %v1067 = vor.u32 %v1065, %v1066
    %v1068 = vshll.u32 2475754826, %v1062
    %v1069 = vshrl.u32 2131351028, %v1063
    %v1070 = vor.u32 %v1068, %v1069
    %v1071 = vshll.u32 2131351028, %v1062
    %v1072 = vshrl.u32 2102212464, %v1063
    %v1073 = vor.u32 %v1071, %v1072
    %v1074 = vshll.u32 2102212464, %v1062
    %v1075 = vshrl.u32 920167782, %v1063
    %v1076 = vor.u32 %v1074, %v1075
    %v1077 = vshll.u32 920167782, %v1062
    %v1078 = vshrl.u32 1326507024, %v1063
    %v1079 = vor.u32 %v1077, %v1078
    %vm1080 = vcmp.lt.s32.totalorder %v1061, 1
    %vm1081 = vcmp.lt.s32.totalorder %v1061, 2
    %vm1082 = vcmp.lt.s32.totalorder %v1061, 3
    %vm1083 = vcmp.lt.s32.totalorder %v1061, 4
    %v1084 = vsel %vm1080, %v1064, %v1067
    %v1085 = vsel %vm1083, %v1073, 2102212464
    %v1086 = vsel %vm1082, %v1070, %v1085
    %v1087 = vsel %vm1081, %v1084, %v1086
    %v1088 = vsel %vm1080, %v1067, %v1070
    %v1089 = vsel %vm1083, %v1076, 920167782
    %v1090 = vsel %vm1082, %v1073, %v1089
    %v1091 = vsel %vm1081, %v1088, %v1090
    %v1092 = vsel %vm1080, %v1070, %v1073
    %v1093 = vsel %vm1083, %v1079, 1326507024
    %v1094 = vsel %vm1082, %v1076, %v1093
    %v1095 = vsel %vm1081, %v1092, %v1094
    %v1096 = vshll.u32 %v1056, 8
    %v1097 = vmul.u32.u64.compose %v1096, %v1095
    %v1098 = vextract.low.u32 %v1097
    %v1099 = vextract.high.u32 %v1097
    %v1100 = vmul.u32.u64.compose %v1096, %v1091
    %v1101 = vextract.low.u32 %v1100
    %v1102 = vextract.high.u32 %v1100
    %v1103 = vmul.u32 %v1096, %v1087
    %v1104 = vadd.s32 %v1099, %v1101
    %vm1105 = vc.u32 %v1099, %v1101
    %v1106 = vadd.s32 %v1102, 1
    %v1107 = vsel %vm1105, %v1106, %v1102
    %v1108 = vadd.s32 %v1103, %v1107
    %v1109 = vadd.s32 %v1108, 536870912
    %v1110 = vshrl.u32 %v1109, 30
    %v1111 = vshll.u32 %v1110, 30
    %v1112 = vsub.s32 %v1108, %v1111
    %vm1113 = vcmp.lt.s32.totalorder %v1112, 0
    %v1114 = vsub.s32 0, %v1112
    %v1115 = vsel %vm1113, %v1114, %v1112
    %v1116 = vclz %v1115
    %v1117 = vsub.s32 %v1116, 2
    %vm1118 = vcmp.gt.s32.totalorder 0, %v1117
    %v1119 = vsel %vm1118, 0, %v1117
    %v1120 = vsub.s32 32, %v1119
    %v1121 = vshll.u32 %v1112, %v1119
    %v1122 = vshrl.u32 %v1104, %v1120
    %v1123 = vor.u32 %v1121, %v1122
    %v1124 = vsub.s32 4294967266, %v1119
    %v1125 = vadd.s32 %v1124, 127
    %v1126 = vshll.u32 %v1125, 23
    %v1127 = vor.u32 4788187, %v1126
    %v1128 = vand.u32 2147483647, %v1127
    %v1130 = vcvt.s32.f32 %v1123
    %v1131 = vmul.f32 %v1130, %v1128
    %v1132 = vxor.u32 %v1131, 2147483648
    %v1133 = vsel %vm1050, %v1132, %v1131
    %v1134 = vsub.s32 4, %v1110
    %v1135 = vsel %vm1050, %v1134, %v1110
    %v1136 = vsel %vm1049, %v208, %v1133
    %v1137 = vsel %vm1049, 0, %v1135
    %v1138 = vcosq.f32.pop %v1136
    %v1139 = vsinq.f32.pop %v1136
    %vm1140 = vweird.f32 %v208
    %v1141 = vadd.s32 %v1137, 3
    %v1142 = vand.u32 %v1141, 3
    %vm1143 = vcmp.lt.s32.totalorder %v1142, 2
    %vm1144 = vcmp.eq.s32.totalorder %v1142, 0
    %v1145 = vxor.u32 %v1139, 2147483648
    %v1146 = vsel %vm1144, %v1138, %v1145
    %vm1147 = vcmp.eq.s32.totalorder %v1142, 2
    %v1148 = vxor.u32 %v1138, 2147483648
    %v1149 = vsel %vm1147, %v1148, %v1139
    %v1150 = vsel %vm1143, %v1146, %v1149
    %v1151 = vsel %vm1140, nan, %v1150
    %v1152 = vand.u32 2147483647, %v209
    %vm1153 = vcmp.le.f32.partialorder %v1152, 0.7853982
    %vm1154 = vcmp.lt.s32.totalorder %v209, 0
    %v1155 = vand.u32 %v209, 2139095040
    %v1156 = vshrl.u32 %v1155, 23
    %v1157 = vsub.s32 %v1156, 127
    %v1158 = vand.u32 2147483647, %v209
    %v1159 = vand.u32 %v1158, 8388607
    %v1160 = vor.u32 %v1159, 8388608
    %v1161 = vsub.s32 0, %v1160
    %v1162 = vadd.s32 %v1157, 1
    %vm1163 = vcmp.gt.s32.totalorder %v1162, 0
    %v1164 = vsel %vm1163, %v1162, 0
    %v1165 = vshrl.u32 %v1164, 5
    %v1166 = vand.u32 %v1164, 31
    %v1167 = vsub.s32 32, %v1166
    %v1168 = vshrl.u32 683565275, %v1167
    %v1169 = vshll.u32 683565275, %v1166
    %v1170 = vshrl.u32 2475754826, %v1167
    %v1171 = vor.u32 %v1169, %v1170
    %v1172 = vshll.u32 2475754826, %v1166
    %v1173 = vshrl.u32 2131351028, %v1167
    %v1174 = vor.u32 %v1172, %v1173
    %v1175 = vshll.u32 2131351028, %v1166
    %v1176 = vshrl.u32 2102212464, %v1167
    %v1177 = vor.u32 %v1175, %v1176
    %v1178 = vshll.u32 2102212464, %v1166
    %v1179 = vshrl.u32 920167782, %v1167
    %v1180 = vor.u32 %v1178, %v1179
    %v1181 = vshll.u32 920167782, %v1166
    %v1182 = vshrl.u32 1326507024, %v1167
    %v1183 = vor.u32 %v1181, %v1182
    %vm1184 = vcmp.lt.s32.totalorder %v1165, 1
    %vm1185 = vcmp.lt.s32.totalorder %v1165, 2
    %vm1186 = vcmp.lt.s32.totalorder %v1165, 3
    %vm1187 = vcmp.lt.s32.totalorder %v1165, 4
    %v1188 = vsel %vm1184, %v1168, %v1171
    %v1189 = vsel %vm1187, %v1177, 2102212464
    %v1190 = vsel %vm1186, %v1174, %v1189
    %v1191 = vsel %vm1185, %v1188, %v1190
    %v1192 = vsel %vm1184, %v1171, %v1174
    %v1193 = vsel %vm1187, %v1180, 920167782
    %v1194 = vsel %vm1186, %v1177, %v1193
    %v1195 = vsel %vm1185, %v1192, %v1194
    %v1196 = vsel %vm1184, %v1174, %v1177
    %v1197 = vsel %vm1187, %v1183, 1326507024
    %v1198 = vsel %vm1186, %v1180, %v1197
    %v1199 = vsel %vm1185, %v1196, %v1198
    %v1200 = vshll.u32 %v1160, 8
    %v1201 = vmul.u32.u64.compose %v1200, %v1199
    %v1202 = vextract.low.u32 %v1201
    %v1203 = vextract.high.u32 %v1201
    %v1204 = vmul.u32.u64.compose %v1200, %v1195
    %v1205 = vextract.low.u32 %v1204
    %v1206 = vextract.high.u32 %v1204
    %v1207 = vmul.u32 %v1200, %v1191
    %v1208 = vadd.s32 %v1203, %v1205
    %vm1209 = vc.u32 %v1203, %v1205
    %v1210 = vadd.s32 %v1206, 1
    %v1211 = vsel %vm1209, %v1210, %v1206
    %v1212 = vadd.s32 %v1207, %v1211
    %v1213 = vadd.s32 %v1212, 536870912
    %v1214 = vshrl.u32 %v1213, 30
    %v1215 = vshll.u32 %v1214, 30
    %v1216 = vsub.s32 %v1212, %v1215
    %vm1217 = vcmp.lt.s32.totalorder %v1216, 0
    %v1218 = vsub.s32 0, %v1216
    %v1219 = vsel %vm1217, %v1218, %v1216
    %v1220 = vclz %v1219
    %v1221 = vsub.s32 %v1220, 2
    %vm1222 = vcmp.gt.s32.totalorder 0, %v1221
    %v1223 = vsel %vm1222, 0, %v1221
    %v1224 = vsub.s32 32, %v1223
    %v1225 = vshll.u32 %v1216, %v1223
    %v1226 = vshrl.u32 %v1208, %v1224
    %v1227 = vor.u32 %v1225, %v1226
    %v1228 = vsub.s32 4294967266, %v1223
    %v1229 = vadd.s32 %v1228, 127
    %v1230 = vshll.u32 %v1229, 23
    %v1231 = vor.u32 4788187, %v1230
    %v1232 = vand.u32 2147483647, %v1231
    %v1234 = vcvt.s32.f32 %v1227
    %v1235 = vmul.f32 %v1234, %v1232
    %v1236 = vxor.u32 %v1235, 2147483648
    %v1237 = vsel %vm1154, %v1236, %v1235
    %v1238 = vsub.s32 4, %v1214
    %v1239 = vsel %vm1154, %v1238, %v1214
    %v1240 = vsel %vm1153, %v209, %v1237
    %v1241 = vsel %vm1153, 0, %v1239
    %v1242 = vcosq.f32.pop %v1240
    %v1243 = vsinq.f32.pop %v1240
    %vm1244 = vweird.f32 %v209
    %v1245 = vadd.s32 %v1241, 3
    %v1246 = vand.u32 %v1245, 3
    %vm1247 = vcmp.lt.s32.totalorder %v1246, 2
    %vm1248 = vcmp.eq.s32.totalorder %v1246, 0
    %v1249 = vxor.u32 %v1243, 2147483648
    %v1250 = vsel %vm1248, %v1242, %v1249
    %vm1251 = vcmp.eq.s32.totalorder %v1246, 2
    %v1252 = vxor.u32 %v1242, 2147483648
    %v1253 = vsel %vm1251, %v1252, %v1243
    %v1254 = vsel %vm1247, %v1250, %v1253
    %v1255 = vsel %vm1244, nan, %v1254
    %v1256 = vand.u32 2147483647, %v210
    %vm1257 = vcmp.le.f32.partialorder %v1256, 0.7853982
    %vm1258 = vcmp.lt.s32.totalorder %v210, 0
    %v1259 = vand.u32 %v210, 2139095040
    %v1260 = vshrl.u32 %v1259, 23
    %v1261 = vsub.s32 %v1260, 127
    %v1262 = vand.u32 2147483647, %v210
    %v1263 = vand.u32 %v1262, 8388607
    %v1264 = vor.u32 %v1263, 8388608
    %v1265 = vsub.s32 0, %v1264
    %v1266 = vadd.s32 %v1261, 1
    %vm1267 = vcmp.gt.s32.totalorder %v1266, 0
    %v1268 = vsel %vm1267, %v1266, 0
    %v1269 = vshrl.u32 %v1268, 5
    %v1270 = vand.u32 %v1268, 31
    %v1271 = vsub.s32 32, %v1270
    %v1272 = vshrl.u32 683565275, %v1271
    %v1273 = vshll.u32 683565275, %v1270
    %v1274 = vshrl.u32 2475754826, %v1271
    %v1275 = vor.u32 %v1273, %v1274
    %v1276 = vshll.u32 2475754826, %v1270
    %v1277 = vshrl.u32 2131351028, %v1271
    %v1278 = vor.u32 %v1276, %v1277
    %v1279 = vshll.u32 2131351028, %v1270
    %v1280 = vshrl.u32 2102212464, %v1271
    %v1281 = vor.u32 %v1279, %v1280
    %v1282 = vshll.u32 2102212464, %v1270
    %v1283 = vshrl.u32 920167782, %v1271
    %v1284 = vor.u32 %v1282, %v1283
    %v1285 = vshll.u32 920167782, %v1270
    %v1286 = vshrl.u32 1326507024, %v1271
    %v1287 = vor.u32 %v1285, %v1286
    %vm1288 = vcmp.lt.s32.totalorder %v1269, 1
    %vm1289 = vcmp.lt.s32.totalorder %v1269, 2
    %vm1290 = vcmp.lt.s32.totalorder %v1269, 3
    %vm1291 = vcmp.lt.s32.totalorder %v1269, 4
    %v1292 = vsel %vm1288, %v1272, %v1275
    %v1293 = vsel %vm1291, %v1281, 2102212464
    %v1294 = vsel %vm1290, %v1278, %v1293
    %v1295 = vsel %vm1289, %v1292, %v1294
    %v1296 = vsel %vm1288, %v1275, %v1278
    %v1297 = vsel %vm1291, %v1284, 920167782
    %v1298 = vsel %vm1290, %v1281, %v1297
    %v1299 = vsel %vm1289, %v1296, %v1298
    %v1300 = vsel %vm1288, %v1278, %v1281
    %v1301 = vsel %vm1291, %v1287, 1326507024
    %v1302 = vsel %vm1290, %v1284, %v1301
    %v1303 = vsel %vm1289, %v1300, %v1302
    %v1304 = vshll.u32 %v1264, 8
    %v1305 = vmul.u32.u64.compose %v1304, %v1303
    %v1306 = vextract.low.u32 %v1305
    %v1307 = vextract.high.u32 %v1305
    %v1308 = vmul.u32.u64.compose %v1304, %v1299
    %v1309 = vextract.low.u32 %v1308
    %v1310 = vextract.high.u32 %v1308
    %v1311 = vmul.u32 %v1304, %v1295
    %v1312 = vadd.s32 %v1307, %v1309
    %vm1313 = vc.u32 %v1307, %v1309
    %v1314 = vadd.s32 %v1310, 1
    %v1315 = vsel %vm1313, %v1314, %v1310
    %v1316 = vadd.s32 %v1311, %v1315
    %v1317 = vadd.s32 %v1316, 536870912
    %v1318 = vshrl.u32 %v1317, 30
    %v1319 = vshll.u32 %v1318, 30
    %v1320 = vsub.s32 %v1316, %v1319
    %vm1321 = vcmp.lt.s32.totalorder %v1320, 0
    %v1322 = vsub.s32 0, %v1320
    %v1323 = vsel %vm1321, %v1322, %v1320
    %v1324 = vclz %v1323
    %v1325 = vsub.s32 %v1324, 2
    %vm1326 = vcmp.gt.s32.totalorder 0, %v1325
    %v1327 = vsel %vm1326, 0, %v1325
    %v1328 = vsub.s32 32, %v1327
    %v1329 = vshll.u32 %v1320, %v1327
    %v1330 = vshrl.u32 %v1312, %v1328
    %v1331 = vor.u32 %v1329, %v1330
    %v1332 = vsub.s32 4294967266, %v1327
    %v1333 = vadd.s32 %v1332, 127
    %v1334 = vshll.u32 %v1333, 23
    %v1335 = vor.u32 4788187, %v1334
    %v1336 = vand.u32 2147483647, %v1335
    %v1338 = vcvt.s32.f32 %v1331
    %v1339 = vmul.f32 %v1338, %v1336
    %v1340 = vxor.u32 %v1339, 2147483648
    %v1341 = vsel %vm1258, %v1340, %v1339
    %v1342 = vsub.s32 4, %v1318
    %v1343 = vsel %vm1258, %v1342, %v1318
    %v1344 = vsel %vm1257, %v210, %v1341
    %v1345 = vsel %vm1257, 0, %v1343
    %v1346 = vcosq.f32.pop %v1344
    %v1347 = vsinq.f32.pop %v1344
    %vm1348 = vweird.f32 %v210
    %v1349 = vadd.s32 %v1345, 3
    %v1350 = vand.u32 %v1349, 3
    %vm1351 = vcmp.lt.s32.totalorder %v1350, 2
    %vm1352 = vcmp.eq.s32.totalorder %v1350, 0
    %v1353 = vxor.u32 %v1347, 2147483648
    %v1354 = vsel %vm1352, %v1346, %v1353
    %vm1355 = vcmp.eq.s32.totalorder %v1350, 2
    %v1356 = vxor.u32 %v1346, 2147483648
    %v1357 = vsel %vm1355, %v1356, %v1347
    %v1358 = vsel %vm1351, %v1354, %v1357
    %v1359 = vsel %vm1348, nan, %v1358
    %v1360 = vand.u32 2147483647, %v211
    %vm1361 = vcmp.le.f32.partialorder %v1360, 0.7853982
    %vm1362 = vcmp.lt.s32.totalorder %v211, 0
    %v1363 = vand.u32 %v211, 2139095040
    %v1364 = vshrl.u32 %v1363, 23
    %v1365 = vsub.s32 %v1364, 127
    %v1366 = vand.u32 2147483647, %v211
    %v1367 = vand.u32 %v1366, 8388607
    %v1368 = vor.u32 %v1367, 8388608
    %v1369 = vsub.s32 0, %v1368
    %v1370 = vadd.s32 %v1365, 1
    %vm1371 = vcmp.gt.s32.totalorder %v1370, 0
    %v1372 = vsel %vm1371, %v1370, 0
    %v1373 = vshrl.u32 %v1372, 5
    %v1374 = vand.u32 %v1372, 31
    %v1375 = vsub.s32 32, %v1374
    %v1376 = vshrl.u32 683565275, %v1375
    %v1377 = vshll.u32 683565275, %v1374
    %v1378 = vshrl.u32 2475754826, %v1375
    %v1379 = vor.u32 %v1377, %v1378
    %v1380 = vshll.u32 2475754826, %v1374
    %v1381 = vshrl.u32 2131351028, %v1375
    %v1382 = vor.u32 %v1380, %v1381
    %v1383 = vshll.u32 2131351028, %v1374
    %v1384 = vshrl.u32 2102212464, %v1375
    %v1385 = vor.u32 %v1383, %v1384
    %v1386 = vshll.u32 2102212464, %v1374
    %v1387 = vshrl.u32 920167782, %v1375
    %v1388 = vor.u32 %v1386, %v1387
    %v1389 = vshll.u32 920167782, %v1374
    %v1390 = vshrl.u32 1326507024, %v1375
    %v1391 = vor.u32 %v1389, %v1390
    %vm1392 = vcmp.lt.s32.totalorder %v1373, 1
    %vm1393 = vcmp.lt.s32.totalorder %v1373, 2
    %vm1394 = vcmp.lt.s32.totalorder %v1373, 3
    %vm1395 = vcmp.lt.s32.totalorder %v1373, 4
    %v1396 = vsel %vm1392, %v1376, %v1379
    %v1397 = vsel %vm1395, %v1385, 2102212464
    %v1398 = vsel %vm1394, %v1382, %v1397
    %v1399 = vsel %vm1393, %v1396, %v1398
    %v1400 = vsel %vm1392, %v1379, %v1382
    %v1401 = vsel %vm1395, %v1388, 920167782
    %v1402 = vsel %vm1394, %v1385, %v1401
    %v1403 = vsel %vm1393, %v1400, %v1402
    %v1404 = vsel %vm1392, %v1382, %v1385
    %v1405 = vsel %vm1395, %v1391, 1326507024
    %v1406 = vsel %vm1394, %v1388, %v1405
    %v1407 = vsel %vm1393, %v1404, %v1406
    %v1408 = vshll.u32 %v1368, 8
    %v1409 = vmul.u32.u64.compose %v1408, %v1407
    %v1410 = vextract.low.u32 %v1409
    %v1411 = vextract.high.u32 %v1409
    %v1412 = vmul.u32.u64.compose %v1408, %v1403
    %v1413 = vextract.low.u32 %v1412
    %v1414 = vextract.high.u32 %v1412
    %v1415 = vmul.u32 %v1408, %v1399
    %v1416 = vadd.s32 %v1411, %v1413
    %vm1417 = vc.u32 %v1411, %v1413
    %v1418 = vadd.s32 %v1414, 1
    %v1419 = vsel %vm1417, %v1418, %v1414
    %v1420 = vadd.s32 %v1415, %v1419
    %v1421 = vadd.s32 %v1420, 536870912
    %v1422 = vshrl.u32 %v1421, 30
    %v1423 = vshll.u32 %v1422, 30
    %v1424 = vsub.s32 %v1420, %v1423
    %vm1425 = vcmp.lt.s32.totalorder %v1424, 0
    %v1426 = vsub.s32 0, %v1424
    %v1427 = vsel %vm1425, %v1426, %v1424
    %v1428 = vclz %v1427
    %v1429 = vsub.s32 %v1428, 2
    %vm1430 = vcmp.gt.s32.totalorder 0, %v1429
    %v1431 = vsel %vm1430, 0, %v1429
    %v1432 = vsub.s32 32, %v1431
    %v1433 = vshll.u32 %v1424, %v1431
    %v1434 = vshrl.u32 %v1416, %v1432
    %v1435 = vor.u32 %v1433, %v1434
    %v1436 = vsub.s32 4294967266, %v1431
    %v1437 = vadd.s32 %v1436, 127
    %v1438 = vshll.u32 %v1437, 23
    %v1439 = vor.u32 4788187, %v1438
    %v1440 = vand.u32 2147483647, %v1439
    %v1442 = vcvt.s32.f32 %v1435
    %v1443 = vmul.f32 %v1442, %v1440
    %v1444 = vxor.u32 %v1443, 2147483648
    %v1445 = vsel %vm1362, %v1444, %v1443
    %v1446 = vsub.s32 4, %v1422
    %v1447 = vsel %vm1362, %v1446, %v1422
    %v1448 = vsel %vm1361, %v211, %v1445
    %v1449 = vsel %vm1361, 0, %v1447
    %v1450 = vcosq.f32.pop %v1448
    %v1451 = vsinq.f32.pop %v1448
    %vm1452 = vweird.f32 %v211
    %v1453 = vadd.s32 %v1449, 3
    %v1454 = vand.u32 %v1453, 3
    %vm1455 = vcmp.lt.s32.totalorder %v1454, 2
    %vm1456 = vcmp.eq.s32.totalorder %v1454, 0
    %v1457 = vxor.u32 %v1451, 2147483648
    %v1458 = vsel %vm1456, %v1450, %v1457
    %vm1459 = vcmp.eq.s32.totalorder %v1454, 2
    %v1460 = vxor.u32 %v1450, 2147483648
    %v1461 = vsel %vm1459, %v1460, %v1451
    %v1462 = vsel %vm1455, %v1458, %v1461
    %v1463 = vsel %vm1452, nan, %v1462
    %v1464 = vand.u32 2147483647, %v212
    %vm1465 = vcmp.le.f32.partialorder %v1464, 0.7853982
    %vm1466 = vcmp.lt.s32.totalorder %v212, 0
    %v1467 = vand.u32 %v212, 2139095040
    %v1468 = vshrl.u32 %v1467, 23
    %v1469 = vsub.s32 %v1468, 127
    %v1470 = vand.u32 2147483647, %v212
    %v1471 = vand.u32 %v1470, 8388607
    %v1472 = vor.u32 %v1471, 8388608
    %v1473 = vsub.s32 0, %v1472
    %v1474 = vadd.s32 %v1469, 1
    %vm1475 = vcmp.gt.s32.totalorder %v1474, 0
    %v1476 = vsel %vm1475, %v1474, 0
    %v1477 = vshrl.u32 %v1476, 5
    %v1478 = vand.u32 %v1476, 31
    %v1479 = vsub.s32 32, %v1478
    %v1480 = vshrl.u32 683565275, %v1479
    %v1481 = vshll.u32 683565275, %v1478
    %v1482 = vshrl.u32 2475754826, %v1479
    %v1483 = vor.u32 %v1481, %v1482
    %v1484 = vshll.u32 2475754826, %v1478
    %v1485 = vshrl.u32 2131351028, %v1479
    %v1486 = vor.u32 %v1484, %v1485
    %v1487 = vshll.u32 2131351028, %v1478
    %v1488 = vshrl.u32 2102212464, %v1479
    %v1489 = vor.u32 %v1487, %v1488
    %v1490 = vshll.u32 2102212464, %v1478
    %v1491 = vshrl.u32 920167782, %v1479
    %v1492 = vor.u32 %v1490, %v1491
    %v1493 = vshll.u32 920167782, %v1478
    %v1494 = vshrl.u32 1326507024, %v1479
    %v1495 = vor.u32 %v1493, %v1494
    %vm1496 = vcmp.lt.s32.totalorder %v1477, 1
    %vm1497 = vcmp.lt.s32.totalorder %v1477, 2
    %vm1498 = vcmp.lt.s32.totalorder %v1477, 3
    %vm1499 = vcmp.lt.s32.totalorder %v1477, 4
    %v1500 = vsel %vm1496, %v1480, %v1483
    %v1501 = vsel %vm1499, %v1489, 2102212464
    %v1502 = vsel %vm1498, %v1486, %v1501
    %v1503 = vsel %vm1497, %v1500, %v1502
    %v1504 = vsel %vm1496, %v1483, %v1486
    %v1505 = vsel %vm1499, %v1492, 920167782
    %v1506 = vsel %vm1498, %v1489, %v1505
    %v1507 = vsel %vm1497, %v1504, %v1506
    %v1508 = vsel %vm1496, %v1486, %v1489
    %v1509 = vsel %vm1499, %v1495, 1326507024
    %v1510 = vsel %vm1498, %v1492, %v1509
    %v1511 = vsel %vm1497, %v1508, %v1510
    %v1512 = vshll.u32 %v1472, 8
    %v1513 = vmul.u32.u64.compose %v1512, %v1511
    %v1514 = vextract.low.u32 %v1513
    %v1515 = vextract.high.u32 %v1513
    %v1516 = vmul.u32.u64.compose %v1512, %v1507
    %v1517 = vextract.low.u32 %v1516
    %v1518 = vextract.high.u32 %v1516
    %v1519 = vmul.u32 %v1512, %v1503
    %v1520 = vadd.s32 %v1515, %v1517
    %vm1521 = vc.u32 %v1515, %v1517
    %v1522 = vadd.s32 %v1518, 1
    %v1523 = vsel %vm1521, %v1522, %v1518
    %v1524 = vadd.s32 %v1519, %v1523
    %v1525 = vadd.s32 %v1524, 536870912
    %v1526 = vshrl.u32 %v1525, 30
    %v1527 = vshll.u32 %v1526, 30
    %v1528 = vsub.s32 %v1524, %v1527
    %vm1529 = vcmp.lt.s32.totalorder %v1528, 0
    %v1530 = vsub.s32 0, %v1528
    %v1531 = vsel %vm1529, %v1530, %v1528
    %v1532 = vclz %v1531
    %v1533 = vsub.s32 %v1532, 2
    %vm1534 = vcmp.gt.s32.totalorder 0, %v1533
    %v1535 = vsel %vm1534, 0, %v1533
    %v1536 = vsub.s32 32, %v1535
    %v1537 = vshll.u32 %v1528, %v1535
    %v1538 = vshrl.u32 %v1520, %v1536
    %v1539 = vor.u32 %v1537, %v1538
    %v1540 = vsub.s32 4294967266, %v1535
    %v1541 = vadd.s32 %v1540, 127
    %v1542 = vshll.u32 %v1541, 23
    %v1543 = vor.u32 4788187, %v1542
    %v1544 = vand.u32 2147483647, %v1543
    %v1546 = vcvt.s32.f32 %v1539
    %v1547 = vmul.f32 %v1546, %v1544
    %v1548 = vxor.u32 %v1547, 2147483648
    %v1549 = vsel %vm1466, %v1548, %v1547
    %v1550 = vsub.s32 4, %v1526
    %v1551 = vsel %vm1466, %v1550, %v1526
    %v1552 = vsel %vm1465, %v212, %v1549
    %v1553 = vsel %vm1465, 0, %v1551
    %v1554 = vcosq.f32.pop %v1552
    %v1555 = vsinq.f32.pop %v1552
    %vm1556 = vweird.f32 %v212
    %v1557 = vadd.s32 %v1553, 3
    %v1558 = vand.u32 %v1557, 3
    %vm1559 = vcmp.lt.s32.totalorder %v1558, 2
    %vm1560 = vcmp.eq.s32.totalorder %v1558, 0
    %v1561 = vxor.u32 %v1555, 2147483648
    %v1562 = vsel %vm1560, %v1554, %v1561
    %vm1563 = vcmp.eq.s32.totalorder %v1558, 2
    %v1564 = vxor.u32 %v1554, 2147483648
    %v1565 = vsel %vm1563, %v1564, %v1555
    %v1566 = vsel %vm1559, %v1562, %v1565
    %v1567 = vsel %vm1556, nan, %v1566
    %v1568 = vand.u32 2147483647, %v213
    %vm1569 = vcmp.le.f32.partialorder %v1568, 0.7853982
    %vm1570 = vcmp.lt.s32.totalorder %v213, 0
    %v1571 = vand.u32 %v213, 2139095040
    %v1572 = vshrl.u32 %v1571, 23
    %v1573 = vsub.s32 %v1572, 127
    %v1574 = vand.u32 2147483647, %v213
    %v1575 = vand.u32 %v1574, 8388607
    %v1576 = vor.u32 %v1575, 8388608
    %v1577 = vsub.s32 0, %v1576
    %v1578 = vadd.s32 %v1573, 1
    %vm1579 = vcmp.gt.s32.totalorder %v1578, 0
    %v1580 = vsel %vm1579, %v1578, 0
    %v1581 = vshrl.u32 %v1580, 5
    %v1582 = vand.u32 %v1580, 31
    %v1583 = vsub.s32 32, %v1582
    %v1584 = vshrl.u32 683565275, %v1583
    %v1585 = vshll.u32 683565275, %v1582
    %v1586 = vshrl.u32 2475754826, %v1583
    %v1587 = vor.u32 %v1585, %v1586
    %v1588 = vshll.u32 2475754826, %v1582
    %v1589 = vshrl.u32 2131351028, %v1583
    %v1590 = vor.u32 %v1588, %v1589
    %v1591 = vshll.u32 2131351028, %v1582
    %v1592 = vshrl.u32 2102212464, %v1583
    %v1593 = vor.u32 %v1591, %v1592
    %v1594 = vshll.u32 2102212464, %v1582
    %v1595 = vshrl.u32 920167782, %v1583
    %v1596 = vor.u32 %v1594, %v1595
    %v1597 = vshll.u32 920167782, %v1582
    %v1598 = vshrl.u32 1326507024, %v1583
    %v1599 = vor.u32 %v1597, %v1598
    %vm1600 = vcmp.lt.s32.totalorder %v1581, 1
    %vm1601 = vcmp.lt.s32.totalorder %v1581, 2
    %vm1602 = vcmp.lt.s32.totalorder %v1581, 3
    %vm1603 = vcmp.lt.s32.totalorder %v1581, 4
    %v1604 = vsel %vm1600, %v1584, %v1587
    %v1605 = vsel %vm1603, %v1593, 2102212464
    %v1606 = vsel %vm1602, %v1590, %v1605
    %v1607 = vsel %vm1601, %v1604, %v1606
    %v1608 = vsel %vm1600, %v1587, %v1590
    %v1609 = vsel %vm1603, %v1596, 920167782
    %v1610 = vsel %vm1602, %v1593, %v1609
    %v1611 = vsel %vm1601, %v1608, %v1610
    %v1612 = vsel %vm1600, %v1590, %v1593
    %v1613 = vsel %vm1603, %v1599, 1326507024
    %v1614 = vsel %vm1602, %v1596, %v1613
    %v1615 = vsel %vm1601, %v1612, %v1614
    %v1616 = vshll.u32 %v1576, 8
    %v1617 = vmul.u32.u64.compose %v1616, %v1615
    %v1618 = vextract.low.u32 %v1617
    %v1619 = vextract.high.u32 %v1617
    %v1620 = vmul.u32.u64.compose %v1616, %v1611
    %v1621 = vextract.low.u32 %v1620
    %v1622 = vextract.high.u32 %v1620
    %v1623 = vmul.u32 %v1616, %v1607
    %v1624 = vadd.s32 %v1619, %v1621
    %vm1625 = vc.u32 %v1619, %v1621
    %v1626 = vadd.s32 %v1622, 1
    %v1627 = vsel %vm1625, %v1626, %v1622
    %v1628 = vadd.s32 %v1623, %v1627
    %v1629 = vadd.s32 %v1628, 536870912
    %v1630 = vshrl.u32 %v1629, 30
    %v1631 = vshll.u32 %v1630, 30
    %v1632 = vsub.s32 %v1628, %v1631
    %vm1633 = vcmp.lt.s32.totalorder %v1632, 0
    %v1634 = vsub.s32 0, %v1632
    %v1635 = vsel %vm1633, %v1634, %v1632
    %v1636 = vclz %v1635
    %v1637 = vsub.s32 %v1636, 2
    %vm1638 = vcmp.gt.s32.totalorder 0, %v1637
    %v1639 = vsel %vm1638, 0, %v1637
    %v1640 = vsub.s32 32, %v1639
    %v1641 = vshll.u32 %v1632, %v1639
    %v1642 = vshrl.u32 %v1624, %v1640
    %v1643 = vor.u32 %v1641, %v1642
    %v1644 = vsub.s32 4294967266, %v1639
    %v1645 = vadd.s32 %v1644, 127
    %v1646 = vshll.u32 %v1645, 23
    %v1647 = vor.u32 4788187, %v1646
    %v1648 = vand.u32 2147483647, %v1647
    %v1650 = vcvt.s32.f32 %v1643
    %v1651 = vmul.f32 %v1650, %v1648
    %v1652 = vxor.u32 %v1651, 2147483648
    %v1653 = vsel %vm1570, %v1652, %v1651
    %v1654 = vsub.s32 4, %v1630
    %v1655 = vsel %vm1570, %v1654, %v1630
    %v1656 = vsel %vm1569, %v213, %v1653
    %v1657 = vsel %vm1569, 0, %v1655
    %v1658 = vcosq.f32.pop %v1656
    %v1659 = vsinq.f32.pop %v1656
    %vm1660 = vweird.f32 %v213
    %v1661 = vadd.s32 %v1657, 3
    %v1662 = vand.u32 %v1661, 3
    %vm1663 = vcmp.lt.s32.totalorder %v1662, 2
    %vm1664 = vcmp.eq.s32.totalorder %v1662, 0
    %v1665 = vxor.u32 %v1659, 2147483648
    %v1666 = vsel %vm1664, %v1658, %v1665
    %vm1667 = vcmp.eq.s32.totalorder %v1662, 2
    %v1668 = vxor.u32 %v1658, 2147483648
    %v1669 = vsel %vm1667, %v1668, %v1659
    %v1670 = vsel %vm1663, %v1666, %v1669
    %v1671 = vsel %vm1660, nan, %v1670
    %v1672 = vand.u32 2147483647, %v214
    %vm1673 = vcmp.le.f32.partialorder %v1672, 0.7853982
    %vm1674 = vcmp.lt.s32.totalorder %v214, 0
    %v1675 = vand.u32 %v214, 2139095040
    %v1676 = vshrl.u32 %v1675, 23
    %v1677 = vsub.s32 %v1676, 127
    %v1678 = vand.u32 2147483647, %v214
    %v1679 = vand.u32 %v1678, 8388607
    %v1680 = vor.u32 %v1679, 8388608
    %v1681 = vsub.s32 0, %v1680
    %v1682 = vadd.s32 %v1677, 1
    %vm1683 = vcmp.gt.s32.totalorder %v1682, 0
    %v1684 = vsel %vm1683, %v1682, 0
    %v1685 = vshrl.u32 %v1684, 5
    %v1686 = vand.u32 %v1684, 31
    %v1687 = vsub.s32 32, %v1686
    %v1688 = vshrl.u32 683565275, %v1687
    %v1689 = vshll.u32 683565275, %v1686
    %v1690 = vshrl.u32 2475754826, %v1687
    %v1691 = vor.u32 %v1689, %v1690
    %v1692 = vshll.u32 2475754826, %v1686
    %v1693 = vshrl.u32 2131351028, %v1687
    %v1694 = vor.u32 %v1692, %v1693
    %v1695 = vshll.u32 2131351028, %v1686
    %v1696 = vshrl.u32 2102212464, %v1687
    %v1697 = vor.u32 %v1695, %v1696
    %v1698 = vshll.u32 2102212464, %v1686
    %v1699 = vshrl.u32 920167782, %v1687
    %v1700 = vor.u32 %v1698, %v1699
    %v1701 = vshll.u32 920167782, %v1686
    %v1702 = vshrl.u32 1326507024, %v1687
    %v1703 = vor.u32 %v1701, %v1702
    %vm1704 = vcmp.lt.s32.totalorder %v1685, 1
    %vm1705 = vcmp.lt.s32.totalorder %v1685, 2
    %vm1706 = vcmp.lt.s32.totalorder %v1685, 3
    %vm1707 = vcmp.lt.s32.totalorder %v1685, 4
    %v1708 = vsel %vm1704, %v1688, %v1691
    %v1709 = vsel %vm1707, %v1697, 2102212464
    %v1710 = vsel %vm1706, %v1694, %v1709
    %v1711 = vsel %vm1705, %v1708, %v1710
    %v1712 = vsel %vm1704, %v1691, %v1694
    %v1713 = vsel %vm1707, %v1700, 920167782
    %v1714 = vsel %vm1706, %v1697, %v1713
    %v1715 = vsel %vm1705, %v1712, %v1714
    %v1716 = vsel %vm1704, %v1694, %v1697
    %v1717 = vsel %vm1707, %v1703, 1326507024
    %v1718 = vsel %vm1706, %v1700, %v1717
    %v1719 = vsel %vm1705, %v1716, %v1718
    %v1720 = vshll.u32 %v1680, 8
    %v1721 = vmul.u32.u64.compose %v1720, %v1719
    %v1722 = vextract.low.u32 %v1721
    %v1723 = vextract.high.u32 %v1721
    %v1724 = vmul.u32.u64.compose %v1720, %v1715
    %v1725 = vextract.low.u32 %v1724
    %v1726 = vextract.high.u32 %v1724
    %v1727 = vmul.u32 %v1720, %v1711
    %v1728 = vadd.s32 %v1723, %v1725
    %vm1729 = vc.u32 %v1723, %v1725
    %v1730 = vadd.s32 %v1726, 1
    %v1731 = vsel %vm1729, %v1730, %v1726
    %v1732 = vadd.s32 %v1727, %v1731
    %v1733 = vadd.s32 %v1732, 536870912
    %v1734 = vshrl.u32 %v1733, 30
    %v1735 = vshll.u32 %v1734, 30
    %v1736 = vsub.s32 %v1732, %v1735
    %vm1737 = vcmp.lt.s32.totalorder %v1736, 0
    %v1738 = vsub.s32 0, %v1736
    %v1739 = vsel %vm1737, %v1738, %v1736
    %v1740 = vclz %v1739
    %v1741 = vsub.s32 %v1740, 2
    %vm1742 = vcmp.gt.s32.totalorder 0, %v1741
    %v1743 = vsel %vm1742, 0, %v1741
    %v1744 = vsub.s32 32, %v1743
    %v1745 = vshll.u32 %v1736, %v1743
    %v1746 = vshrl.u32 %v1728, %v1744
    %v1747 = vor.u32 %v1745, %v1746
    %v1748 = vsub.s32 4294967266, %v1743
    %v1749 = vadd.s32 %v1748, 127
    %v1750 = vshll.u32 %v1749, 23
    %v1751 = vor.u32 4788187, %v1750
    %v1752 = vand.u32 2147483647, %v1751
    %v1754 = vcvt.s32.f32 %v1747
    %v1755 = vmul.f32 %v1754, %v1752
    %v1756 = vxor.u32 %v1755, 2147483648
    %v1757 = vsel %vm1674, %v1756, %v1755
    %v1758 = vsub.s32 4, %v1734
    %v1759 = vsel %vm1674, %v1758, %v1734
    %v1760 = vsel %vm1673, %v214, %v1757
    %v1761 = vsel %vm1673, 0, %v1759
    %v1762 = vcosq.f32.pop %v1760
    %v1763 = vsinq.f32.pop %v1760
    %vm1764 = vweird.f32 %v214
    %v1765 = vadd.s32 %v1761, 3
    %v1766 = vand.u32 %v1765, 3
    %vm1767 = vcmp.lt.s32.totalorder %v1766, 2
    %vm1768 = vcmp.eq.s32.totalorder %v1766, 0
    %v1769 = vxor.u32 %v1763, 2147483648
    %v1770 = vsel %vm1768, %v1762, %v1769
    %vm1771 = vcmp.eq.s32.totalorder %v1766, 2
    %v1772 = vxor.u32 %v1762, 2147483648
    %v1773 = vsel %vm1771, %v1772, %v1763
    %v1774 = vsel %vm1767, %v1770, %v1773
    %v1775 = vsel %vm1764, nan, %v1774
    %v1776 = vand.u32 2147483647, %v215
    %vm1777 = vcmp.le.f32.partialorder %v1776, 0.7853982
    %vm1778 = vcmp.lt.s32.totalorder %v215, 0
    %v1779 = vand.u32 %v215, 2139095040
    %v1780 = vshrl.u32 %v1779, 23
    %v1781 = vsub.s32 %v1780, 127
    %v1782 = vand.u32 2147483647, %v215
    %v1783 = vand.u32 %v1782, 8388607
    %v1784 = vor.u32 %v1783, 8388608
    %v1785 = vsub.s32 0, %v1784
    %v1786 = vadd.s32 %v1781, 1
    %vm1787 = vcmp.gt.s32.totalorder %v1786, 0
    %v1788 = vsel %vm1787, %v1786, 0
    %v1789 = vshrl.u32 %v1788, 5
    %v1790 = vand.u32 %v1788, 31
    %v1791 = vsub.s32 32, %v1790
    %v1792 = vshrl.u32 683565275, %v1791
    %v1793 = vshll.u32 683565275, %v1790
    %v1794 = vshrl.u32 2475754826, %v1791
    %v1795 = vor.u32 %v1793, %v1794
    %v1796 = vshll.u32 2475754826, %v1790
    %v1797 = vshrl.u32 2131351028, %v1791
    %v1798 = vor.u32 %v1796, %v1797
    %v1799 = vshll.u32 2131351028, %v1790
    %v1800 = vshrl.u32 2102212464, %v1791
    %v1801 = vor.u32 %v1799, %v1800
    %v1802 = vshll.u32 2102212464, %v1790
    %v1803 = vshrl.u32 920167782, %v1791
    %v1804 = vor.u32 %v1802, %v1803
    %v1805 = vshll.u32 920167782, %v1790
    %v1806 = vshrl.u32 1326507024, %v1791
    %v1807 = vor.u32 %v1805, %v1806
    %vm1808 = vcmp.lt.s32.totalorder %v1789, 1
    %vm1809 = vcmp.lt.s32.totalorder %v1789, 2
    %vm1810 = vcmp.lt.s32.totalorder %v1789, 3
    %vm1811 = vcmp.lt.s32.totalorder %v1789, 4
    %v1812 = vsel %vm1808, %v1792, %v1795
    %v1813 = vsel %vm1811, %v1801, 2102212464
    %v1814 = vsel %vm1810, %v1798, %v1813
    %v1815 = vsel %vm1809, %v1812, %v1814
    %v1816 = vsel %vm1808, %v1795, %v1798
    %v1817 = vsel %vm1811, %v1804, 920167782
    %v1818 = vsel %vm1810, %v1801, %v1817
    %v1819 = vsel %vm1809, %v1816, %v1818
    %v1820 = vsel %vm1808, %v1798, %v1801
    %v1821 = vsel %vm1811, %v1807, 1326507024
    %v1822 = vsel %vm1810, %v1804, %v1821
    %v1823 = vsel %vm1809, %v1820, %v1822
    %v1824 = vshll.u32 %v1784, 8
    %v1825 = vmul.u32.u64.compose %v1824, %v1823
    %v1826 = vextract.low.u32 %v1825
    %v1827 = vextract.high.u32 %v1825
    %v1828 = vmul.u32.u64.compose %v1824, %v1819
    %v1829 = vextract.low.u32 %v1828
    %v1830 = vextract.high.u32 %v1828
    %v1831 = vmul.u32 %v1824, %v1815
    %v1832 = vadd.s32 %v1827, %v1829
    %vm1833 = vc.u32 %v1827, %v1829
    %v1834 = vadd.s32 %v1830, 1
    %v1835 = vsel %vm1833, %v1834, %v1830
    %v1836 = vadd.s32 %v1831, %v1835
    %v1837 = vadd.s32 %v1836, 536870912
    %v1838 = vshrl.u32 %v1837, 30
    %v1839 = vshll.u32 %v1838, 30
    %v1840 = vsub.s32 %v1836, %v1839
    %vm1841 = vcmp.lt.s32.totalorder %v1840, 0
    %v1842 = vsub.s32 0, %v1840
    %v1843 = vsel %vm1841, %v1842, %v1840
    %v1844 = vclz %v1843
    %v1845 = vsub.s32 %v1844, 2
    %vm1846 = vcmp.gt.s32.totalorder 0, %v1845
    %v1847 = vsel %vm1846, 0, %v1845
    %v1848 = vsub.s32 32, %v1847
    %v1849 = vshll.u32 %v1840, %v1847
    %v1850 = vshrl.u32 %v1832, %v1848
    %v1851 = vor.u32 %v1849, %v1850
    %v1852 = vsub.s32 4294967266, %v1847
    %v1853 = vadd.s32 %v1852, 127
    %v1854 = vshll.u32 %v1853, 23
    %v1855 = vor.u32 4788187, %v1854
    %v1856 = vand.u32 2147483647, %v1855
    %v1858 = vcvt.s32.f32 %v1851
    %v1859 = vmul.f32 %v1858, %v1856
    %v1860 = vxor.u32 %v1859, 2147483648
    %v1861 = vsel %vm1778, %v1860, %v1859
    %v1862 = vsub.s32 4, %v1838
    %v1863 = vsel %vm1778, %v1862, %v1838
    %v1864 = vsel %vm1777, %v215, %v1861
    %v1865 = vsel %vm1777, 0, %v1863
    %v1866 = vcosq.f32.pop %v1864
    %v1867 = vsinq.f32.pop %v1864
    %vm1868 = vweird.f32 %v215
    %v1869 = vadd.s32 %v1865, 3
    %v1870 = vand.u32 %v1869, 3
    %vm1871 = vcmp.lt.s32.totalorder %v1870, 2
    %vm1872 = vcmp.eq.s32.totalorder %v1870, 0
    %v1873 = vxor.u32 %v1867, 2147483648
    %v1874 = vsel %vm1872, %v1866, %v1873
    %vm1875 = vcmp.eq.s32.totalorder %v1870, 2
    %v1876 = vxor.u32 %v1866, 2147483648
    %v1877 = vsel %vm1875, %v1876, %v1867
    %v1878 = vsel %vm1871, %v1874, %v1877
    %v1879 = vsel %vm1868, nan, %v1878
    %v1880 = vpack.c.bf16 %v527, %v319
    %v1881 = vpack.c.bf16 %v631, %v423
    %v1882 = vpack.c.bf16 %v943, %v735
    %v1883 = vpack.c.bf16 %v1047, %v839
    %v1884 = vpack.c.bf16 %v1359, %v1151
    %v1885 = vpack.c.bf16 %v1463, %v1255
    %v1886 = vpack.c.bf16 %v1775, %v1567
    %v1887 = vpack.c.bf16 %v1879, %v1671
    %v1888 = vld [vmem:[%s2] sm:$0xf]
    %v1889 = vld [vmem:[%s2 + $0x4] sm:$0xf]
    %v1890 = vld [vmem:[%s2 + $0x8] sm:$0xf]
    %v1891 = vld [vmem:[%s2 + $0xc] sm:$0xf]
    %v1892 = vld [vmem:[%s2 + $0x10] sm:$0xf]
    %v1893 = vld [vmem:[%s2 + $0x14] sm:$0xf]
    %v1894 = vld [vmem:[%s2 + $0x18] sm:$0xf]
    %v1895 = vld [vmem:[%s2 + $0x1c] sm:$0xf]
    %v1896 = vld [vmem:[%s2 + $0x20] sm:$0xf]
    %v1897 = vld [vmem:[%s2 + $0x24] sm:$0xf]
    %v1898 = vld [vmem:[%s2 + $0x28] sm:$0xf]
    %v1899 = vld [vmem:[%s2 + $0x2c] sm:$0xf]
    %v1900 = vld [vmem:[%s2 + $0x30] sm:$0xf]
    %v1901 = vld [vmem:[%s2 + $0x34] sm:$0xf]
    %v1902 = vld [vmem:[%s2 + $0x38] sm:$0xf]
    %v1903 = vld [vmem:[%s2 + $0x3c] sm:$0xf]
    %1905 = vset.pattern.permute.xlu0 0
    %1906 = vperm.xlu0 %1905, %v37
    %v1907 = vpop.permute.xlu0 %1906
    %1910 = vset.pattern.permute.xlu0 0
    %1911 = vperm.xlu0 %1910, %v38
    %v1912 = vpop.permute.xlu0 %1911
    %1915 = vset.pattern.permute.xlu0 0
    %1916 = vperm.xlu0 %1915, %v39
    %v1917 = vpop.permute.xlu0 %1916
    %1920 = vset.pattern.permute.xlu0 0
    %1921 = vperm.xlu0 %1920, %v40
    %v1922 = vpop.permute.xlu0 %1921
    %1925 = vset.pattern.permute.xlu0 0
    %1926 = vperm.xlu0 %1925, %v41
    %v1927 = vpop.permute.xlu0 %1926
    %1930 = vset.pattern.permute.xlu0 0
    %1931 = vperm.xlu0 %1930, %v42
    %v1932 = vpop.permute.xlu0 %1931
    %1935 = vset.pattern.permute.xlu0 0
    %1936 = vperm.xlu0 %1935, %v43
    %v1937 = vpop.permute.xlu0 %1936
    %1940 = vset.pattern.permute.xlu0 0
    %1941 = vperm.xlu0 %1940, %v44
    %v1942 = vpop.permute.xlu0 %1941
    %1945 = vset.pattern.permute.xlu0 0
    %1946 = vperm.xlu0 %1945, %v45
    %v1947 = vpop.permute.xlu0 %1946
    %1950 = vset.pattern.permute.xlu0 0
    %1951 = vperm.xlu0 %1950, %v46
    %v1952 = vpop.permute.xlu0 %1951
    %1955 = vset.pattern.permute.xlu0 0
    %1956 = vperm.xlu0 %1955, %v47
    %v1957 = vpop.permute.xlu0 %1956
    %1960 = vset.pattern.permute.xlu0 0
    %1961 = vperm.xlu0 %1960, %v48
    %v1962 = vpop.permute.xlu0 %1961
    %1965 = vset.pattern.permute.xlu0 0
    %1966 = vperm.xlu0 %1965, %v49
    %v1967 = vpop.permute.xlu0 %1966
    %1970 = vset.pattern.permute.xlu0 0
    %1971 = vperm.xlu0 %1970, %v50
    %v1972 = vpop.permute.xlu0 %1971
    %1975 = vset.pattern.permute.xlu0 0
    %1976 = vperm.xlu0 %1975, %v51
    %v1977 = vpop.permute.xlu0 %1976
    %1980 = vset.pattern.permute.xlu0 0
    %1981 = vperm.xlu0 %1980, %v52
    %v1982 = vpop.permute.xlu0 %1981
    %v2000 = vunpack.c.l.b16 %v1888
    %v2001 = vunpack.c.l.b16 %v1889
    %v2002 = vunpack.c.l.b16 %v1890
    %v2003 = vunpack.c.l.b16 %v1891
    %v2004 = vunpack.c.l.b16 %v1892
    %v2005 = vunpack.c.l.b16 %v1893
    %v2006 = vunpack.c.l.b16 %v1894
    %v2007 = vunpack.c.l.b16 %v1895
    %v2008 = vunpack.c.l.b16 %v1896
    %v2009 = vunpack.c.l.b16 %v1897
    %v2010 = vunpack.c.l.b16 %v1898
    %v2011 = vunpack.c.l.b16 %v1899
    %v2012 = vunpack.c.l.b16 %v1900
    %v2013 = vunpack.c.l.b16 %v1901
    %v2014 = vunpack.c.l.b16 %v1902
    %v2015 = vunpack.c.l.b16 %v1903
    %v2016 = vpack.c.b16 %v2001, %v2000
    %v2017 = vpack.c.b16 %v2003, %v2002
    %v2018 = vpack.c.b16 %v2005, %v2004
    %v2019 = vpack.c.b16 %v2007, %v2006
    %v2020 = vpack.c.b16 %v2009, %v2008
    %v2021 = vpack.c.b16 %v2011, %v2010
    %v2022 = vpack.c.b16 %v2013, %v2012
    %v2023 = vpack.c.b16 %v2015, %v2014
    %vm2024 = vcmask 523264
    %v2026 = vsel %vm2024, %v2016, 0
    %v2029 = vsel %vm2024, %v2017, 0
    %v2032 = vsel %vm2024, %v2018, 0
    %v2035 = vsel %vm2024, %v2019, 0
    %v2038 = vsel %vm2024, %v2020, 0
    %v2041 = vsel %vm2024, %v2021, 0
    %v2044 = vsel %vm2024, %v2022, 0
    %v2047 = vsel %vm2024, %v2023, 0
    %2049 = vmatprep.subr.bf16.mxu0 0
    %2050 = vmatpush1.bf16.msra.mxu0 0
    %2051 = vmatprep.subr.bf16.mxu0 0
    %2052 = vmatpush1.bf16.msra.mxu0 0
    %2053 = vmatprep.subr.bf16.mxu0 0
    %2054 = vmatpush1.bf16.msra.mxu0 0
    %2055 = vmatprep.subr.bf16.mxu0 0
    %2056 = vmatpush1.bf16.msra.mxu0 0
    %2057 = vmatprep.subr.bf16.mxu0 %v1887
    %2058 = vmatpush1.bf16.msra.mxu0 %v1886
    %2059 = vmatprep.subr.bf16.mxu0 %v1885
    %2060 = vmatpush1.bf16.msra.mxu0 %v1884
    %2061 = vmatprep.subr.bf16.mxu0 %v1883
    %2062 = vmatpush1.bf16.msra.mxu0 %v1882
    %2063 = vmatprep.subr.bf16.mxu0 %v1881
    %2064 = vmatpush1.bf16.msra.mxu0 %v1880
    %2065 = vmatprep.subr.bf16.mxu0 0
    %2066 = vmatpush2.bf16.msra.mxu0 0
    %2067 = vmatprep.subr.bf16.mxu0 0
    %2068 = vmatpush2.bf16.msra.mxu0 0
    %2069 = vmatprep.subr.bf16.mxu0 0
    %2070 = vmatpush2.bf16.msra.mxu0 0
    %2071 = vmatprep.subr.bf16.mxu0 0
    %2072 = vmatpush2.bf16.msra.mxu0 0
    %2073 = vmatprep.subr.bf16.mxu0 0
    %2074 = vmatpush2.bf16.msra.mxu0 0
    %2075 = vmatprep.subr.bf16.mxu0 0
    %2076 = vmatpush2.bf16.msra.mxu0 0
    %2077 = vmatprep.subr.bf16.mxu0 0
    %2078 = vmatpush2.bf16.msra.mxu0 0
    %2079 = vmatprep.subr.bf16.mxu0 0
    %2080 = vmatpush2.bf16.msra.mxu0 0
    %2081 = vmatprep.mubr.bf16.mxu0 0
    %2082 = vmatmul.mubr.bf16.gmra.mxu0 %v2026
    %v2083 = vpop.f32.mrf.mxu0
    %v2084 = vadd.f32 %v1907, %v2083
    %v2085 = vpop.f32.mrf.mxu0
    %v2086 = vadd.f32 %v1907, %v2085
    %v2087 = vpop.f32.mrf.mxu0
    %v2088 = vadd.f32 %v1912, %v2087
    %v2089 = vpop.f32.mrf.mxu0
    %v2090 = vadd.f32 %v1912, %v2089
    %2091 = vmatprep.mubr.bf16.mxu0 0
    %2092 = vmatmul.mubr.bf16.gmra.mxu0 %v2029
    %v2093 = vpop.f32.mrf.mxu0
    %v2094 = vadd.f32 %v1917, %v2093
    %v2095 = vpop.f32.mrf.mxu0
    %v2096 = vadd.f32 %v1917, %v2095
    %v2097 = vpop.f32.mrf.mxu0
    %v2098 = vadd.f32 %v1922, %v2097
    %v2099 = vpop.f32.mrf.mxu0
    %v2100 = vadd.f32 %v1922, %v2099
    %2101 = vmatprep.mubr.bf16.mxu0 0
    %2102 = vmatmul.mubr.bf16.gmra.mxu0 %v2032
    %v2103 = vpop.f32.mrf.mxu0
    %v2104 = vadd.f32 %v1927, %v2103
    %v2105 = vpop.f32.mrf.mxu0
    %v2106 = vadd.f32 %v1927, %v2105
    %v2107 = vpop.f32.mrf.mxu0
    %v2108 = vadd.f32 %v1932, %v2107
    %v2109 = vpop.f32.mrf.mxu0
    %v2110 = vadd.f32 %v1932, %v2109
    %2111 = vmatprep.mubr.bf16.mxu0 0
    %2112 = vmatmul.mubr.bf16.gmra.mxu0 %v2035
    %v2113 = vpop.f32.mrf.mxu0
    %v2114 = vadd.f32 %v1937, %v2113
    %v2115 = vpop.f32.mrf.mxu0
    %v2116 = vadd.f32 %v1937, %v2115
    %v2117 = vpop.f32.mrf.mxu0
    %v2118 = vadd.f32 %v1942, %v2117
    %v2119 = vpop.f32.mrf.mxu0
    %v2120 = vadd.f32 %v1942, %v2119
    %2121 = vmatprep.mubr.bf16.mxu0 0
    %2122 = vmatmul.mubr.bf16.gmra.mxu0 %v2038
    %v2123 = vpop.f32.mrf.mxu0
    %v2124 = vadd.f32 %v1947, %v2123
    %v2125 = vpop.f32.mrf.mxu0
    %v2126 = vadd.f32 %v1947, %v2125
    %v2127 = vpop.f32.mrf.mxu0
    %v2128 = vadd.f32 %v1952, %v2127
    %v2129 = vpop.f32.mrf.mxu0
    %v2130 = vadd.f32 %v1952, %v2129
    %2131 = vmatprep.mubr.bf16.mxu0 0
    %2132 = vmatmul.mubr.bf16.gmra.mxu0 %v2041
    %v2133 = vpop.f32.mrf.mxu0
    %v2134 = vadd.f32 %v1957, %v2133
    %v2135 = vpop.f32.mrf.mxu0
    %v2136 = vadd.f32 %v1957, %v2135
    %v2137 = vpop.f32.mrf.mxu0
    %v2138 = vadd.f32 %v1962, %v2137
    %v2139 = vpop.f32.mrf.mxu0
    %v2140 = vadd.f32 %v1962, %v2139
    %2141 = vmatprep.mubr.bf16.mxu0 0
    %2142 = vmatmul.mubr.bf16.gmra.mxu0 %v2044
    %v2143 = vpop.f32.mrf.mxu0
    %v2144 = vadd.f32 %v1967, %v2143
    %v2145 = vpop.f32.mrf.mxu0
    %v2146 = vadd.f32 %v1967, %v2145
    %v2147 = vpop.f32.mrf.mxu0
    %v2148 = vadd.f32 %v1972, %v2147
    %v2149 = vpop.f32.mrf.mxu0
    %v2150 = vadd.f32 %v1972, %v2149
    %2151 = vmatprep.mubr.bf16.mxu0 0
    %2152 = vmatmul.mubr.bf16.gmra.mxu0 %v2047
    %v2153 = vpop.f32.mrf.mxu0
    %v2154 = vadd.f32 %v1977, %v2153
    %v2155 = vpop.f32.mrf.mxu0
    %v2156 = vadd.f32 %v1977, %v2155
    %v2157 = vpop.f32.mrf.mxu0
    %v2158 = vadd.f32 %v1982, %v2157
    %v2159 = vpop.f32.mrf.mxu0
    %v2160 = vadd.f32 %v1982, %v2159
    %2161 = vdwg.mxu0
    %v2162 = vmax.f32 %v2084, 0.0
    %v2163 = vmax.f32 %v2086, 0.0
    %v2164 = vmax.f32 %v2088, 0.0
    %v2165 = vmax.f32 %v2090, 0.0
    %v2166 = vmax.f32 %v2094, 0.0
    %v2167 = vmax.f32 %v2096, 0.0
    %v2168 = vmax.f32 %v2098, 0.0
    %v2169 = vmax.f32 %v2100, 0.0
    %v2170 = vmax.f32 %v2104, 0.0
    %v2171 = vmax.f32 %v2106, 0.0
    %v2172 = vmax.f32 %v2108, 0.0
    %v2173 = vmax.f32 %v2110, 0.0
    %v2174 = vmax.f32 %v2114, 0.0
    %v2175 = vmax.f32 %v2116, 0.0
    %v2176 = vmax.f32 %v2118, 0.0
    %v2177 = vmax.f32 %v2120, 0.0
    %v2178 = vmax.f32 %v2124, 0.0
    %v2179 = vmax.f32 %v2126, 0.0
    %v2180 = vmax.f32 %v2128, 0.0
    %v2181 = vmax.f32 %v2130, 0.0
    %v2182 = vmax.f32 %v2134, 0.0
    %v2183 = vmax.f32 %v2136, 0.0
    %v2184 = vmax.f32 %v2138, 0.0
    %v2185 = vmax.f32 %v2140, 0.0
    %v2186 = vmax.f32 %v2144, 0.0
    %v2187 = vmax.f32 %v2146, 0.0
    %v2188 = vmax.f32 %v2148, 0.0
    %v2189 = vmax.f32 %v2150, 0.0
    %v2190 = vmax.f32 %v2154, 0.0
    %v2191 = vmax.f32 %v2156, 0.0
    %v2192 = vmax.f32 %v2158, 0.0
    %v2193 = vmax.f32 %v2160, 0.0
    %v2194 = vld [vmem:[%s4] sm:$0xf]
    %v2195 = vld [vmem:[%s4 + $0x4] sm:$0xf]
    %v2196 = vld [vmem:[%s4 + $0x8] sm:$0xf]
    %v2197 = vld [vmem:[%s4 + $0xc] sm:$0xf]
    %v2198 = vld [vmem:[%s4 + $0x10] sm:$0xf]
    %v2199 = vld [vmem:[%s4 + $0x14] sm:$0xf]
    %v2200 = vld [vmem:[%s4 + $0x18] sm:$0xf]
    %v2201 = vld [vmem:[%s4 + $0x1c] sm:$0xf]
    %v2202 = vld [vmem:[%s4 + $0x20] sm:$0xf]
    %v2203 = vld [vmem:[%s4 + $0x24] sm:$0xf]
    %v2204 = vld [vmem:[%s4 + $0x28] sm:$0xf]
    %v2205 = vld [vmem:[%s4 + $0x2c] sm:$0xf]
    %v2206 = vld [vmem:[%s4 + $0x30] sm:$0xf]
    %v2207 = vld [vmem:[%s4 + $0x34] sm:$0xf]
    %v2208 = vld [vmem:[%s4 + $0x38] sm:$0xf]
    %v2209 = vld [vmem:[%s4 + $0x3c] sm:$0xf]
    %v2210 = vpack.c.bf16 %v2164, %v2162
    %v2211 = vpack.c.bf16 %v2165, %v2163
    %v2212 = vpack.c.bf16 %v2168, %v2166
    %v2213 = vpack.c.bf16 %v2169, %v2167
    %v2214 = vpack.c.bf16 %v2172, %v2170
    %v2215 = vpack.c.bf16 %v2173, %v2171
    %v2216 = vpack.c.bf16 %v2176, %v2174
    %v2217 = vpack.c.bf16 %v2177, %v2175
    %v2218 = vpack.c.bf16 %v2180, %v2178
    %v2219 = vpack.c.bf16 %v2181, %v2179
    %v2220 = vpack.c.bf16 %v2184, %v2182
    %v2221 = vpack.c.bf16 %v2185, %v2183
    %v2222 = vpack.c.bf16 %v2188, %v2186
    %v2223 = vpack.c.bf16 %v2189, %v2187
    %v2224 = vpack.c.bf16 %v2192, %v2190
    %v2225 = vpack.c.bf16 %v2193, %v2191
    %v2226 = vld [vmem:[%s5] sm:$0xff]
    %v2227 = vld [vmem:[%s5 + $0x8] sm:$0xff]
    %v2228 = vld [vmem:[%s5 + $0x10] sm:$0xff]
    %v2229 = vld [vmem:[%s5 + $0x18] sm:$0xff]
    %v2230 = vld [vmem:[%s5 + $0x20] sm:$0xff]
    %v2231 = vld [vmem:[%s5 + $0x28] sm:$0xff]
    %v2232 = vld [vmem:[%s5 + $0x30] sm:$0xff]
    %v2233 = vld [vmem:[%s5 + $0x38] sm:$0xff]
    %v2234 = vld [vmem:[%s5 + $0x40] sm:$0xff]
    %v2235 = vld [vmem:[%s5 + $0x48] sm:$0xff]
    %v2236 = vld [vmem:[%s5 + $0x50] sm:$0xff]
    %v2237 = vld [vmem:[%s5 + $0x58] sm:$0xff]
    %v2238 = vld [vmem:[%s5 + $0x60] sm:$0xff]
    %v2239 = vld [vmem:[%s5 + $0x68] sm:$0xff]
    %v2240 = vld [vmem:[%s5 + $0x70] sm:$0xff]
    %v2241 = vld [vmem:[%s5 + $0x78] sm:$0xff]
    %2243 = vset.pattern.permute.xlu0 0
    %2244 = vperm.xlu0 %2243, %v2226
    %v2245 = vpop.permute.xlu0 %2244
    %2248 = vset.pattern.permute.xlu0 0
    %2249 = vperm.xlu0 %2248, %v2227
    %v2250 = vpop.permute.xlu0 %2249
    %2253 = vset.pattern.permute.xlu0 0
    %2254 = vperm.xlu0 %2253, %v2228
    %v2255 = vpop.permute.xlu0 %2254
    %2258 = vset.pattern.permute.xlu0 0
    %2259 = vperm.xlu0 %2258, %v2229
    %v2260 = vpop.permute.xlu0 %2259
    %2263 = vset.pattern.permute.xlu0 0
    %2264 = vperm.xlu0 %2263, %v2230
    %v2265 = vpop.permute.xlu0 %2264
    %2268 = vset.pattern.permute.xlu0 0
    %2269 = vperm.xlu0 %2268, %v2231
    %v2270 = vpop.permute.xlu0 %2269
    %2273 = vset.pattern.permute.xlu0 0
    %2274 = vperm.xlu0 %2273, %v2232
    %v2275 = vpop.permute.xlu0 %2274
    %2278 = vset.pattern.permute.xlu0 0
    %2279 = vperm.xlu0 %2278, %v2233
    %v2280 = vpop.permute.xlu0 %2279
    %2283 = vset.pattern.permute.xlu0 0
    %2284 = vperm.xlu0 %2283, %v2234
    %v2285 = vpop.permute.xlu0 %2284
    %2288 = vset.pattern.permute.xlu0 0
    %2289 = vperm.xlu0 %2288, %v2235
    %v2290 = vpop.permute.xlu0 %2289
    %2293 = vset.pattern.permute.xlu0 0
    %2294 = vperm.xlu0 %2293, %v2236
    %v2295 = vpop.permute.xlu0 %2294
    %2298 = vset.pattern.permute.xlu0 0
    %2299 = vperm.xlu0 %2298, %v2237
    %v2300 = vpop.permute.xlu0 %2299
    %2303 = vset.pattern.permute.xlu0 0
    %2304 = vperm.xlu0 %2303, %v2238
    %v2305 = vpop.permute.xlu0 %2304
    %2308 = vset.pattern.permute.xlu0 0
    %2309 = vperm.xlu0 %2308, %v2239
    %v2310 = vpop.permute.xlu0 %2309
    %2313 = vset.pattern.permute.xlu0 0
    %2314 = vperm.xlu0 %2313, %v2240
    %v2315 = vpop.permute.xlu0 %2314
    %2318 = vset.pattern.permute.xlu0 0
    %2319 = vperm.xlu0 %2318, %v2241
    %v2320 = vpop.permute.xlu0 %2319
    %v2338 = vunpack.c.l.b16 %v2194
    %v2339 = vunpack.c.l.b16 %v2195
    %v2340 = vunpack.c.l.b16 %v2196
    %v2341 = vunpack.c.l.b16 %v2197
    %v2342 = vunpack.c.l.b16 %v2198
    %v2343 = vunpack.c.l.b16 %v2199
    %v2344 = vunpack.c.l.b16 %v2200
    %v2345 = vunpack.c.l.b16 %v2201
    %v2346 = vunpack.c.l.b16 %v2202
    %v2347 = vunpack.c.l.b16 %v2203
    %v2348 = vunpack.c.l.b16 %v2204
    %v2349 = vunpack.c.l.b16 %v2205
    %v2350 = vunpack.c.l.b16 %v2206
    %v2351 = vunpack.c.l.b16 %v2207
    %v2352 = vunpack.c.l.b16 %v2208
    %v2353 = vunpack.c.l.b16 %v2209
    %v2354 = vpack.c.b16 %v2339, %v2338
    %v2355 = vpack.c.b16 %v2341, %v2340
    %v2356 = vpack.c.b16 %v2343, %v2342
    %v2357 = vpack.c.b16 %v2345, %v2344
    %v2358 = vpack.c.b16 %v2347, %v2346
    %v2359 = vpack.c.b16 %v2349, %v2348
    %v2360 = vpack.c.b16 %v2351, %v2350
    %v2361 = vpack.c.b16 %v2353, %v2352
    %2370 = vmatprep.subr.bf16.mxu0 %v2225
    %2371 = vmatpush1.bf16.msra.mxu0 %v2224
    %2372 = vmatprep.subr.bf16.mxu0 %v2223
    %2373 = vmatpush1.bf16.msra.mxu0 %v2222
    %2374 = vmatprep.subr.bf16.mxu0 %v2221
    %2375 = vmatpush1.bf16.msra.mxu0 %v2220
    %2376 = vmatprep.subr.bf16.mxu0 %v2219
    %2377 = vmatpush1.bf16.msra.mxu0 %v2218
    %2378 = vmatprep.subr.bf16.mxu0 %v2217
    %2379 = vmatpush1.bf16.msra.mxu0 %v2216
    %2380 = vmatprep.subr.bf16.mxu0 %v2215
    %2381 = vmatpush1.bf16.msra.mxu0 %v2214
    %2382 = vmatprep.subr.bf16.mxu0 %v2213
    %2383 = vmatpush1.bf16.msra.mxu0 %v2212
    %2384 = vmatprep.subr.bf16.mxu0 %v2211
    %2385 = vmatpush1.bf16.msra.mxu0 %v2210
    %2386 = vmatprep.subr.bf16.mxu0 0
    %2387 = vmatpush2.bf16.msra.mxu0 0
    %2388 = vmatprep.subr.bf16.mxu0 0
    %2389 = vmatpush2.bf16.msra.mxu0 0
    %2390 = vmatprep.subr.bf16.mxu0 0
    %2391 = vmatpush2.bf16.msra.mxu0 0
    %2392 = vmatprep.subr.bf16.mxu0 0
    %2393 = vmatpush2.bf16.msra.mxu0 0
    %2394 = vmatprep.subr.bf16.mxu0 0
    %2395 = vmatpush2.bf16.msra.mxu0 0
    %2396 = vmatprep.subr.bf16.mxu0 0
    %2397 = vmatpush2.bf16.msra.mxu0 0
    %2398 = vmatprep.subr.bf16.mxu0 0
    %2399 = vmatpush2.bf16.msra.mxu0 0
    %2400 = vmatprep.subr.bf16.mxu0 0
    %2401 = vmatpush2.bf16.msra.mxu0 0
    %2402 = vmatprep.mubr.bf16.mxu0 0
    %2403 = vmatmul.mubr.bf16.gmra.mxu0 %v2354
    %v2404 = vpop.f32.mrf.mxu0
    %v2405 = vadd.f32 %v2245, %v2404
    %v2406 = vpop.f32.mrf.mxu0
    %v2407 = vadd.f32 %v2245, %v2406
    %v2408 = vpop.f32.mrf.mxu0
    %v2409 = vadd.f32 %v2250, %v2408
    %v2410 = vpop.f32.mrf.mxu0
    %v2411 = vadd.f32 %v2250, %v2410
    %2412 = vmatprep.mubr.bf16.mxu0 0
    %2413 = vmatmul.mubr.bf16.gmra.mxu0 %v2355
    %v2414 = vpop.f32.mrf.mxu0
    %v2415 = vadd.f32 %v2255, %v2414
    %v2416 = vpop.f32.mrf.mxu0
    %v2417 = vadd.f32 %v2255, %v2416
    %v2418 = vpop.f32.mrf.mxu0
    %v2419 = vadd.f32 %v2260, %v2418
    %v2420 = vpop.f32.mrf.mxu0
    %v2421 = vadd.f32 %v2260, %v2420
    %2422 = vmatprep.mubr.bf16.mxu0 0
    %2423 = vmatmul.mubr.bf16.gmra.mxu0 %v2356
    %v2424 = vpop.f32.mrf.mxu0
    %v2425 = vadd.f32 %v2265, %v2424
    %v2426 = vpop.f32.mrf.mxu0
    %v2427 = vadd.f32 %v2265, %v2426
    %v2428 = vpop.f32.mrf.mxu0
    %v2429 = vadd.f32 %v2270, %v2428
    %v2430 = vpop.f32.mrf.mxu0
    %v2431 = vadd.f32 %v2270, %v2430
    %2432 = vmatprep.mubr.bf16.mxu0 0
    %2433 = vmatmul.mubr.bf16.gmra.mxu0 %v2357
    %v2434 = vpop.f32.mrf.mxu0
    %v2435 = vadd.f32 %v2275, %v2434
    %v2436 = vpop.f32.mrf.mxu0
    %v2437 = vadd.f32 %v2275, %v2436
    %v2438 = vpop.f32.mrf.mxu0
    %v2439 = vadd.f32 %v2280, %v2438
    %v2440 = vpop.f32.mrf.mxu0
    %v2441 = vadd.f32 %v2280, %v2440
    %2442 = vmatprep.mubr.bf16.mxu0 0
    %2443 = vmatmul.mubr.bf16.gmra.mxu0 %v2358
    %v2444 = vpop.f32.mrf.mxu0
    %v2445 = vadd.f32 %v2285, %v2444
    %v2446 = vpop.f32.mrf.mxu0
    %v2447 = vadd.f32 %v2285, %v2446
    %v2448 = vpop.f32.mrf.mxu0
    %v2449 = vadd.f32 %v2290, %v2448
    %v2450 = vpop.f32.mrf.mxu0
    %v2451 = vadd.f32 %v2290, %v2450
    %2452 = vmatprep.mubr.bf16.mxu0 0
    %2453 = vmatmul.mubr.bf16.gmra.mxu0 %v2359
    %v2454 = vpop.f32.mrf.mxu0
    %v2455 = vadd.f32 %v2295, %v2454
    %v2456 = vpop.f32.mrf.mxu0
    %v2457 = vadd.f32 %v2295, %v2456
    %v2458 = vpop.f32.mrf.mxu0
    %v2459 = vadd.f32 %v2300, %v2458
    %v2460 = vpop.f32.mrf.mxu0
    %v2461 = vadd.f32 %v2300, %v2460
    %2462 = vmatprep.mubr.bf16.mxu0 0
    %2463 = vmatmul.mubr.bf16.gmra.mxu0 %v2360
    %v2464 = vpop.f32.mrf.mxu0
    %v2465 = vadd.f32 %v2305, %v2464
    %v2466 = vpop.f32.mrf.mxu0
    %v2467 = vadd.f32 %v2305, %v2466
    %v2468 = vpop.f32.mrf.mxu0
    %v2469 = vadd.f32 %v2310, %v2468
    %v2470 = vpop.f32.mrf.mxu0
    %v2471 = vadd.f32 %v2310, %v2470
    %2472 = vmatprep.mubr.bf16.mxu0 0
    %2473 = vmatmul.mubr.bf16.gmra.mxu0 %v2361
    %v2474 = vpop.f32.mrf.mxu0
    %v2475 = vadd.f32 %v2315, %v2474
    %v2476 = vpop.f32.mrf.mxu0
    %v2477 = vadd.f32 %v2315, %v2476
    %v2478 = vpop.f32.mrf.mxu0
    %v2479 = vadd.f32 %v2320, %v2478
    %v2480 = vpop.f32.mrf.mxu0
    %v2481 = vadd.f32 %v2320, %v2480
    %2482 = vdwg.mxu0
    %v2483 = vmax.f32 %v2405, 0.0
    %v2484 = vmax.f32 %v2407, 0.0
    %v2485 = vmax.f32 %v2409, 0.0
    %v2486 = vmax.f32 %v2411, 0.0
    %v2487 = vmax.f32 %v2415, 0.0
    %v2488 = vmax.f32 %v2417, 0.0
    %v2489 = vmax.f32 %v2419, 0.0
    %v2490 = vmax.f32 %v2421, 0.0
    %v2491 = vmax.f32 %v2425, 0.0
    %v2492 = vmax.f32 %v2427, 0.0
    %v2493 = vmax.f32 %v2429, 0.0
    %v2494 = vmax.f32 %v2431, 0.0
    %v2495 = vmax.f32 %v2435, 0.0
    %v2496 = vmax.f32 %v2437, 0.0
    %v2497 = vmax.f32 %v2439, 0.0
    %v2498 = vmax.f32 %v2441, 0.0
    %v2499 = vmax.f32 %v2445, 0.0
    %v2500 = vmax.f32 %v2447, 0.0
    %v2501 = vmax.f32 %v2449, 0.0
    %v2502 = vmax.f32 %v2451, 0.0
    %v2503 = vmax.f32 %v2455, 0.0
    %v2504 = vmax.f32 %v2457, 0.0
    %v2505 = vmax.f32 %v2459, 0.0
    %v2506 = vmax.f32 %v2461, 0.0
    %v2507 = vmax.f32 %v2465, 0.0
    %v2508 = vmax.f32 %v2467, 0.0
    %v2509 = vmax.f32 %v2469, 0.0
    %v2510 = vmax.f32 %v2471, 0.0
    %v2511 = vmax.f32 %v2475, 0.0
    %v2512 = vmax.f32 %v2477, 0.0
    %v2513 = vmax.f32 %v2479, 0.0
    %v2514 = vmax.f32 %v2481, 0.0
    %s2515 = scalar_lea.vmem %s4, 64
    %v2516 = vld [vmem:[%s2515] sm:$0xf]
    %v2517 = vld [vmem:[%s2515 + $0x4] sm:$0xf]
    %v2518 = vld [vmem:[%s2515 + $0x8] sm:$0xf]
    %v2519 = vld [vmem:[%s2515 + $0xc] sm:$0xf]
    %v2520 = vld [vmem:[%s2515 + $0x10] sm:$0xf]
    %v2521 = vld [vmem:[%s2515 + $0x14] sm:$0xf]
    %v2522 = vld [vmem:[%s2515 + $0x18] sm:$0xf]
    %v2523 = vld [vmem:[%s2515 + $0x1c] sm:$0xf]
    %v2524 = vld [vmem:[%s2515 + $0x20] sm:$0xf]
    %v2525 = vld [vmem:[%s2515 + $0x24] sm:$0xf]
    %v2526 = vld [vmem:[%s2515 + $0x28] sm:$0xf]
    %v2527 = vld [vmem:[%s2515 + $0x2c] sm:$0xf]
    %v2528 = vld [vmem:[%s2515 + $0x30] sm:$0xf]
    %v2529 = vld [vmem:[%s2515 + $0x34] sm:$0xf]
    %v2530 = vld [vmem:[%s2515 + $0x38] sm:$0xf]
    %v2531 = vld [vmem:[%s2515 + $0x3c] sm:$0xf]
    %v2532 = vpack.c.bf16 %v2485, %v2483
    %v2533 = vpack.c.bf16 %v2486, %v2484
    %v2534 = vpack.c.bf16 %v2489, %v2487
    %v2535 = vpack.c.bf16 %v2490, %v2488
    %v2536 = vpack.c.bf16 %v2493, %v2491
    %v2537 = vpack.c.bf16 %v2494, %v2492
    %v2538 = vpack.c.bf16 %v2497, %v2495
    %v2539 = vpack.c.bf16 %v2498, %v2496
    %v2540 = vpack.c.bf16 %v2501, %v2499
    %v2541 = vpack.c.bf16 %v2502, %v2500
    %v2542 = vpack.c.bf16 %v2505, %v2503
    %v2543 = vpack.c.bf16 %v2506, %v2504
    %v2544 = vpack.c.bf16 %v2509, %v2507
    %v2545 = vpack.c.bf16 %v2510, %v2508
    %v2546 = vpack.c.bf16 %v2513, %v2511
    %v2547 = vpack.c.bf16 %v2514, %v2512
    %s2548 = scalar_lea.vmem %s5, 128
    %v2549 = vld [vmem:[%s2548] sm:$0xff]
    %v2550 = vld [vmem:[%s2548 + $0x8] sm:$0xff]
    %v2551 = vld [vmem:[%s2548 + $0x10] sm:$0xff]
    %v2552 = vld [vmem:[%s2548 + $0x18] sm:$0xff]
    %v2553 = vld [vmem:[%s2548 + $0x20] sm:$0xff]
    %v2554 = vld [vmem:[%s2548 + $0x28] sm:$0xff]
    %v2555 = vld [vmem:[%s2548 + $0x30] sm:$0xff]
    %v2556 = vld [vmem:[%s2548 + $0x38] sm:$0xff]
    %v2557 = vld [vmem:[%s2548 + $0x40] sm:$0xff]
    %v2558 = vld [vmem:[%s2548 + $0x48] sm:$0xff]
    %v2559 = vld [vmem:[%s2548 + $0x50] sm:$0xff]
    %v2560 = vld [vmem:[%s2548 + $0x58] sm:$0xff]
    %v2561 = vld [vmem:[%s2548 + $0x60] sm:$0xff]
    %v2562 = vld [vmem:[%s2548 + $0x68] sm:$0xff]
    %v2563 = vld [vmem:[%s2548 + $0x70] sm:$0xff]
    %v2564 = vld [vmem:[%s2548 + $0x78] sm:$0xff]
    %2566 = vset.pattern.permute.xlu0 0
    %2567 = vperm.xlu0 %2566, %v2549
    %v2568 = vpop.permute.xlu0 %2567
    %2571 = vset.pattern.permute.xlu0 0
    %2572 = vperm.xlu0 %2571, %v2550
    %v2573 = vpop.permute.xlu0 %2572
    %2576 = vset.pattern.permute.xlu0 0
    %2577 = vperm.xlu0 %2576, %v2551
    %v2578 = vpop.permute.xlu0 %2577
    %2581 = vset.pattern.permute.xlu0 0
    %2582 = vperm.xlu0 %2581, %v2552
    %v2583 = vpop.permute.xlu0 %2582
    %2586 = vset.pattern.permute.xlu0 0
    %2587 = vperm.xlu0 %2586, %v2553
    %v2588 = vpop.permute.xlu0 %2587
    %2591 = vset.pattern.permute.xlu0 0
    %2592 = vperm.xlu0 %2591, %v2554
    %v2593 = vpop.permute.xlu0 %2592
    %2596 = vset.pattern.permute.xlu0 0
    %2597 = vperm.xlu0 %2596, %v2555
    %v2598 = vpop.permute.xlu0 %2597
    %2601 = vset.pattern.permute.xlu0 0
    %2602 = vperm.xlu0 %2601, %v2556
    %v2603 = vpop.permute.xlu0 %2602
    %2606 = vset.pattern.permute.xlu0 0
    %2607 = vperm.xlu0 %2606, %v2557
    %v2608 = vpop.permute.xlu0 %2607
    %2611 = vset.pattern.permute.xlu0 0
    %2612 = vperm.xlu0 %2611, %v2558
    %v2613 = vpop.permute.xlu0 %2612
    %2616 = vset.pattern.permute.xlu0 0
    %2617 = vperm.xlu0 %2616, %v2559
    %v2618 = vpop.permute.xlu0 %2617
    %2621 = vset.pattern.permute.xlu0 0
    %2622 = vperm.xlu0 %2621, %v2560
    %v2623 = vpop.permute.xlu0 %2622
    %2626 = vset.pattern.permute.xlu0 0
    %2627 = vperm.xlu0 %2626, %v2561
    %v2628 = vpop.permute.xlu0 %2627
    %2631 = vset.pattern.permute.xlu0 0
    %2632 = vperm.xlu0 %2631, %v2562
    %v2633 = vpop.permute.xlu0 %2632
    %2636 = vset.pattern.permute.xlu0 0
    %2637 = vperm.xlu0 %2636, %v2563
    %v2638 = vpop.permute.xlu0 %2637
    %2641 = vset.pattern.permute.xlu0 0
    %2642 = vperm.xlu0 %2641, %v2564
    %v2643 = vpop.permute.xlu0 %2642
    %v2661 = vunpack.c.l.b16 %v2516
    %v2662 = vunpack.c.l.b16 %v2517
    %v2663 = vunpack.c.l.b16 %v2518
    %v2664 = vunpack.c.l.b16 %v2519
    %v2665 = vunpack.c.l.b16 %v2520
    %v2666 = vunpack.c.l.b16 %v2521
    %v2667 = vunpack.c.l.b16 %v2522
    %v2668 = vunpack.c.l.b16 %v2523
    %v2669 = vunpack.c.l.b16 %v2524
    %v2670 = vunpack.c.l.b16 %v2525
    %v2671 = vunpack.c.l.b16 %v2526
    %v2672 = vunpack.c.l.b16 %v2527
    %v2673 = vunpack.c.l.b16 %v2528
    %v2674 = vunpack.c.l.b16 %v2529
    %v2675 = vunpack.c.l.b16 %v2530
    %v2676 = vunpack.c.l.b16 %v2531
    %v2677 = vpack.c.b16 %v2662, %v2661
    %v2678 = vpack.c.b16 %v2664, %v2663
    %v2679 = vpack.c.b16 %v2666, %v2665
    %v2680 = vpack.c.b16 %v2668, %v2667
    %v2681 = vpack.c.b16 %v2670, %v2669
    %v2682 = vpack.c.b16 %v2672, %v2671
    %v2683 = vpack.c.b16 %v2674, %v2673
    %v2684 = vpack.c.b16 %v2676, %v2675
    %2693 = vmatprep.subr.bf16.mxu0 %v2547
    %2694 = vmatpush1.bf16.msra.mxu0 %v2546
    %2695 = vmatprep.subr.bf16.mxu0 %v2545
    %2696 = vmatpush1.bf16.msra.mxu0 %v2544
    %2697 = vmatprep.subr.bf16.mxu0 %v2543
    %2698 = vmatpush1.bf16.msra.mxu0 %v2542
    %2699 = vmatprep.subr.bf16.mxu0 %v2541
    %2700 = vmatpush1.bf16.msra.mxu0 %v2540
    %2701 = vmatprep.subr.bf16.mxu0 %v2539
    %2702 = vmatpush1.bf16.msra.mxu0 %v2538
    %2703 = vmatprep.subr.bf16.mxu0 %v2537
    %2704 = vmatpush1.bf16.msra.mxu0 %v2536
    %2705 = vmatprep.subr.bf16.mxu0 %v2535
    %2706 = vmatpush1.bf16.msra.mxu0 %v2534
    %2707 = vmatprep.subr.bf16.mxu0 %v2533
    %2708 = vmatpush1.bf16.msra.mxu0 %v2532
    %2709 = vmatprep.subr.bf16.mxu0 0
    %2710 = vmatpush2.bf16.msra.mxu0 0
    %2711 = vmatprep.subr.bf16.mxu0 0
    %2712 = vmatpush2.bf16.msra.mxu0 0
    %2713 = vmatprep.subr.bf16.mxu0 0
    %2714 = vmatpush2.bf16.msra.mxu0 0
    %2715 = vmatprep.subr.bf16.mxu0 0
    %2716 = vmatpush2.bf16.msra.mxu0 0
    %2717 = vmatprep.subr.bf16.mxu0 0
    %2718 = vmatpush2.bf16.msra.mxu0 0
    %2719 = vmatprep.subr.bf16.mxu0 0
    %2720 = vmatpush2.bf16.msra.mxu0 0
    %2721 = vmatprep.subr.bf16.mxu0 0
    %2722 = vmatpush2.bf16.msra.mxu0 0
    %2723 = vmatprep.subr.bf16.mxu0 0
    %2724 = vmatpush2.bf16.msra.mxu0 0
    %2725 = vmatprep.mubr.bf16.mxu0 0
    %2726 = vmatmul.mubr.bf16.gmra.mxu0 %v2677
    %v2727 = vpop.f32.mrf.mxu0
    %v2728 = vadd.f32 %v2568, %v2727
    %v2729 = vpop.f32.mrf.mxu0
    %v2730 = vadd.f32 %v2568, %v2729
    %v2731 = vpop.f32.mrf.mxu0
    %v2732 = vadd.f32 %v2573, %v2731
    %v2733 = vpop.f32.mrf.mxu0
    %v2734 = vadd.f32 %v2573, %v2733
    %2735 = vmatprep.mubr.bf16.mxu0 0
    %2736 = vmatmul.mubr.bf16.gmra.mxu0 %v2678
    %v2737 = vpop.f32.mrf.mxu0
    %v2738 = vadd.f32 %v2578, %v2737
    %v2739 = vpop.f32.mrf.mxu0
    %v2740 = vadd.f32 %v2578, %v2739
    %v2741 = vpop.f32.mrf.mxu0
    %v2742 = vadd.f32 %v2583, %v2741
    %v2743 = vpop.f32.mrf.mxu0
    %v2744 = vadd.f32 %v2583, %v2743
    %2745 = vmatprep.mubr.bf16.mxu0 0
    %2746 = vmatmul.mubr.bf16.gmra.mxu0 %v2679
    %v2747 = vpop.f32.mrf.mxu0
    %v2748 = vadd.f32 %v2588, %v2747
    %v2749 = vpop.f32.mrf.mxu0
    %v2750 = vadd.f32 %v2588, %v2749
    %v2751 = vpop.f32.mrf.mxu0
    %v2752 = vadd.f32 %v2593, %v2751
    %v2753 = vpop.f32.mrf.mxu0
    %v2754 = vadd.f32 %v2593, %v2753
    %2755 = vmatprep.mubr.bf16.mxu0 0
    %2756 = vmatmul.mubr.bf16.gmra.mxu0 %v2680
    %v2757 = vpop.f32.mrf.mxu0
    %v2758 = vadd.f32 %v2598, %v2757
    %v2759 = vpop.f32.mrf.mxu0
    %v2760 = vadd.f32 %v2598, %v2759
    %v2761 = vpop.f32.mrf.mxu0
    %v2762 = vadd.f32 %v2603, %v2761
    %v2763 = vpop.f32.mrf.mxu0
    %v2764 = vadd.f32 %v2603, %v2763
    %2765 = vmatprep.mubr.bf16.mxu0 0
    %2766 = vmatmul.mubr.bf16.gmra.mxu0 %v2681
    %v2767 = vpop.f32.mrf.mxu0
    %v2768 = vadd.f32 %v2608, %v2767
    %v2769 = vpop.f32.mrf.mxu0
    %v2770 = vadd.f32 %v2608, %v2769
    %v2771 = vpop.f32.mrf.mxu0
    %v2772 = vadd.f32 %v2613, %v2771
    %v2773 = vpop.f32.mrf.mxu0
    %v2774 = vadd.f32 %v2613, %v2773
    %2775 = vmatprep.mubr.bf16.mxu0 0
    %2776 = vmatmul.mubr.bf16.gmra.mxu0 %v2682
    %v2777 = vpop.f32.mrf.mxu0
    %v2778 = vadd.f32 %v2618, %v2777
    %v2779 = vpop.f32.mrf.mxu0
    %v2780 = vadd.f32 %v2618, %v2779
    %v2781 = vpop.f32.mrf.mxu0
    %v2782 = vadd.f32 %v2623, %v2781
    %v2783 = vpop.f32.mrf.mxu0
    %v2784 = vadd.f32 %v2623, %v2783
    %2785 = vmatprep.mubr.bf16.mxu0 0
    %2786 = vmatmul.mubr.bf16.gmra.mxu0 %v2683
    %v2787 = vpop.f32.mrf.mxu0
    %v2788 = vadd.f32 %v2628, %v2787
    %v2789 = vpop.f32.mrf.mxu0
    %v2790 = vadd.f32 %v2628, %v2789
    %v2791 = vpop.f32.mrf.mxu0
    %v2792 = vadd.f32 %v2633, %v2791
    %v2793 = vpop.f32.mrf.mxu0
    %v2794 = vadd.f32 %v2633, %v2793
    %2795 = vmatprep.mubr.bf16.mxu0 0
    %2796 = vmatmul.mubr.bf16.gmra.mxu0 %v2684
    %v2797 = vpop.f32.mrf.mxu0
    %v2798 = vadd.f32 %v2638, %v2797
    %v2799 = vpop.f32.mrf.mxu0
    %v2800 = vadd.f32 %v2638, %v2799
    %v2801 = vpop.f32.mrf.mxu0
    %v2802 = vadd.f32 %v2643, %v2801
    %v2803 = vpop.f32.mrf.mxu0
    %v2804 = vadd.f32 %v2643, %v2803
    %2805 = vdwg.mxu0
    %v2806 = vmax.f32 %v2728, 0.0
    %v2807 = vmax.f32 %v2730, 0.0
    %v2808 = vmax.f32 %v2732, 0.0
    %v2809 = vmax.f32 %v2734, 0.0
    %v2810 = vmax.f32 %v2738, 0.0
    %v2811 = vmax.f32 %v2740, 0.0
    %v2812 = vmax.f32 %v2742, 0.0
    %v2813 = vmax.f32 %v2744, 0.0
    %v2814 = vmax.f32 %v2748, 0.0
    %v2815 = vmax.f32 %v2750, 0.0
    %v2816 = vmax.f32 %v2752, 0.0
    %v2817 = vmax.f32 %v2754, 0.0
    %v2818 = vmax.f32 %v2758, 0.0
    %v2819 = vmax.f32 %v2760, 0.0
    %v2820 = vmax.f32 %v2762, 0.0
    %v2821 = vmax.f32 %v2764, 0.0
    %v2822 = vmax.f32 %v2768, 0.0
    %v2823 = vmax.f32 %v2770, 0.0
    %v2824 = vmax.f32 %v2772, 0.0
    %v2825 = vmax.f32 %v2774, 0.0
    %v2826 = vmax.f32 %v2778, 0.0
    %v2827 = vmax.f32 %v2780, 0.0
    %v2828 = vmax.f32 %v2782, 0.0
    %v2829 = vmax.f32 %v2784, 0.0
    %v2830 = vmax.f32 %v2788, 0.0
    %v2831 = vmax.f32 %v2790, 0.0
    %v2832 = vmax.f32 %v2792, 0.0
    %v2833 = vmax.f32 %v2794, 0.0
    %v2834 = vmax.f32 %v2798, 0.0
    %v2835 = vmax.f32 %v2800, 0.0
    %v2836 = vmax.f32 %v2802, 0.0
    %v2837 = vmax.f32 %v2804, 0.0
    %s2838 = scalar_lea.vmem %s4, 128
    %v2839 = vld [vmem:[%s2838] sm:$0xf]
    %v2840 = vld [vmem:[%s2838 + $0x4] sm:$0xf]
    %v2841 = vld [vmem:[%s2838 + $0x8] sm:$0xf]
    %v2842 = vld [vmem:[%s2838 + $0xc] sm:$0xf]
    %v2843 = vld [vmem:[%s2838 + $0x10] sm:$0xf]
    %v2844 = vld [vmem:[%s2838 + $0x14] sm:$0xf]
    %v2845 = vld [vmem:[%s2838 + $0x18] sm:$0xf]
    %v2846 = vld [vmem:[%s2838 + $0x1c] sm:$0xf]
    %v2847 = vld [vmem:[%s2838 + $0x20] sm:$0xf]
    %v2848 = vld [vmem:[%s2838 + $0x24] sm:$0xf]
    %v2849 = vld [vmem:[%s2838 + $0x28] sm:$0xf]
    %v2850 = vld [vmem:[%s2838 + $0x2c] sm:$0xf]
    %v2851 = vld [vmem:[%s2838 + $0x30] sm:$0xf]
    %v2852 = vld [vmem:[%s2838 + $0x34] sm:$0xf]
    %v2853 = vld [vmem:[%s2838 + $0x38] sm:$0xf]
    %v2854 = vld [vmem:[%s2838 + $0x3c] sm:$0xf]
    %v2855 = vpack.c.bf16 %v2808, %v2806
    %v2856 = vpack.c.bf16 %v2809, %v2807
    %v2857 = vpack.c.bf16 %v2812, %v2810
    %v2858 = vpack.c.bf16 %v2813, %v2811
    %v2859 = vpack.c.bf16 %v2816, %v2814
    %v2860 = vpack.c.bf16 %v2817, %v2815
    %v2861 = vpack.c.bf16 %v2820, %v2818
    %v2862 = vpack.c.bf16 %v2821, %v2819
    %v2863 = vpack.c.bf16 %v2824, %v2822
    %v2864 = vpack.c.bf16 %v2825, %v2823
    %v2865 = vpack.c.bf16 %v2828, %v2826
    %v2866 = vpack.c.bf16 %v2829, %v2827
    %v2867 = vpack.c.bf16 %v2832, %v2830
    %v2868 = vpack.c.bf16 %v2833, %v2831
    %v2869 = vpack.c.bf16 %v2836, %v2834
    %v2870 = vpack.c.bf16 %v2837, %v2835
    %s2871 = scalar_lea.vmem %s5, 256
    %v2872 = vld [vmem:[%s2871] sm:$0xff]
    %v2873 = vld [vmem:[%s2871 + $0x8] sm:$0xff]
    %v2874 = vld [vmem:[%s2871 + $0x10] sm:$0xff]
    %v2875 = vld [vmem:[%s2871 + $0x18] sm:$0xff]
    %v2876 = vld [vmem:[%s2871 + $0x20] sm:$0xff]
    %v2877 = vld [vmem:[%s2871 + $0x28] sm:$0xff]
    %v2878 = vld [vmem:[%s2871 + $0x30] sm:$0xff]
    %v2879 = vld [vmem:[%s2871 + $0x38] sm:$0xff]
    %v2880 = vld [vmem:[%s2871 + $0x40] sm:$0xff]
    %v2881 = vld [vmem:[%s2871 + $0x48] sm:$0xff]
    %v2882 = vld [vmem:[%s2871 + $0x50] sm:$0xff]
    %v2883 = vld [vmem:[%s2871 + $0x58] sm:$0xff]
    %v2884 = vld [vmem:[%s2871 + $0x60] sm:$0xff]
    %v2885 = vld [vmem:[%s2871 + $0x68] sm:$0xff]
    %v2886 = vld [vmem:[%s2871 + $0x70] sm:$0xff]
    %v2887 = vld [vmem:[%s2871 + $0x78] sm:$0xff]
    %2889 = vset.pattern.permute.xlu0 0
    %2890 = vperm.xlu0 %2889, %v2872
    %v2891 = vpop.permute.xlu0 %2890
    %2894 = vset.pattern.permute.xlu0 0
    %2895 = vperm.xlu0 %2894, %v2873
    %v2896 = vpop.permute.xlu0 %2895
    %2899 = vset.pattern.permute.xlu0 0
    %2900 = vperm.xlu0 %2899, %v2874
    %v2901 = vpop.permute.xlu0 %2900
    %2904 = vset.pattern.permute.xlu0 0
    %2905 = vperm.xlu0 %2904, %v2875
    %v2906 = vpop.permute.xlu0 %2905
    %2909 = vset.pattern.permute.xlu0 0
    %2910 = vperm.xlu0 %2909, %v2876
    %v2911 = vpop.permute.xlu0 %2910
    %2914 = vset.pattern.permute.xlu0 0
    %2915 = vperm.xlu0 %2914, %v2877
    %v2916 = vpop.permute.xlu0 %2915
    %2919 = vset.pattern.permute.xlu0 0
    %2920 = vperm.xlu0 %2919, %v2878
    %v2921 = vpop.permute.xlu0 %2920
    %2924 = vset.pattern.permute.xlu0 0
    %2925 = vperm.xlu0 %2924, %v2879
    %v2926 = vpop.permute.xlu0 %2925
    %2929 = vset.pattern.permute.xlu0 0
    %2930 = vperm.xlu0 %2929, %v2880
    %v2931 = vpop.permute.xlu0 %2930
    %2934 = vset.pattern.permute.xlu0 0
    %2935 = vperm.xlu0 %2934, %v2881
    %v2936 = vpop.permute.xlu0 %2935
    %2939 = vset.pattern.permute.xlu0 0
    %2940 = vperm.xlu0 %2939, %v2882
    %v2941 = vpop.permute.xlu0 %2940
    %2944 = vset.pattern.permute.xlu0 0
    %2945 = vperm.xlu0 %2944, %v2883
    %v2946 = vpop.permute.xlu0 %2945
    %2949 = vset.pattern.permute.xlu0 0
    %2950 = vperm.xlu0 %2949, %v2884
    %v2951 = vpop.permute.xlu0 %2950
    %2954 = vset.pattern.permute.xlu0 0
    %2955 = vperm.xlu0 %2954, %v2885
    %v2956 = vpop.permute.xlu0 %2955
    %2959 = vset.pattern.permute.xlu0 0
    %2960 = vperm.xlu0 %2959, %v2886
    %v2961 = vpop.permute.xlu0 %2960
    %2964 = vset.pattern.permute.xlu0 0
    %2965 = vperm.xlu0 %2964, %v2887
    %v2966 = vpop.permute.xlu0 %2965
    %v2984 = vunpack.c.l.b16 %v2839
    %v2985 = vunpack.c.l.b16 %v2840
    %v2986 = vunpack.c.l.b16 %v2841
    %v2987 = vunpack.c.l.b16 %v2842
    %v2988 = vunpack.c.l.b16 %v2843
    %v2989 = vunpack.c.l.b16 %v2844
    %v2990 = vunpack.c.l.b16 %v2845
    %v2991 = vunpack.c.l.b16 %v2846
    %v2992 = vunpack.c.l.b16 %v2847
    %v2993 = vunpack.c.l.b16 %v2848
    %v2994 = vunpack.c.l.b16 %v2849
    %v2995 = vunpack.c.l.b16 %v2850
    %v2996 = vunpack.c.l.b16 %v2851
    %v2997 = vunpack.c.l.b16 %v2852
    %v2998 = vunpack.c.l.b16 %v2853
    %v2999 = vunpack.c.l.b16 %v2854
    %v3000 = vpack.c.b16 %v2985, %v2984
    %v3001 = vpack.c.b16 %v2987, %v2986
    %v3002 = vpack.c.b16 %v2989, %v2988
    %v3003 = vpack.c.b16 %v2991, %v2990
    %v3004 = vpack.c.b16 %v2993, %v2992
    %v3005 = vpack.c.b16 %v2995, %v2994
    %v3006 = vpack.c.b16 %v2997, %v2996
    %v3007 = vpack.c.b16 %v2999, %v2998
    %3016 = vmatprep.subr.bf16.mxu0 %v2870
    %3017 = vmatpush1.bf16.msra.mxu0 %v2869
    %3018 = vmatprep.subr.bf16.mxu0 %v2868
    %3019 = vmatpush1.bf16.msra.mxu0 %v2867
    %3020 = vmatprep.subr.bf16.mxu0 %v2866
    %3021 = vmatpush1.bf16.msra.mxu0 %v2865
    %3022 = vmatprep.subr.bf16.mxu0 %v2864
    %3023 = vmatpush1.bf16.msra.mxu0 %v2863
    %3024 = vmatprep.subr.bf16.mxu0 %v2862
    %3025 = vmatpush1.bf16.msra.mxu0 %v2861
    %3026 = vmatprep.subr.bf16.mxu0 %v2860
    %3027 = vmatpush1.bf16.msra.mxu0 %v2859
    %3028 = vmatprep.subr.bf16.mxu0 %v2858
    %3029 = vmatpush1.bf16.msra.mxu0 %v2857
    %3030 = vmatprep.subr.bf16.mxu0 %v2856
    %3031 = vmatpush1.bf16.msra.mxu0 %v2855
    %3032 = vmatprep.subr.bf16.mxu0 0
    %3033 = vmatpush2.bf16.msra.mxu0 0
    %3034 = vmatprep.subr.bf16.mxu0 0
    %3035 = vmatpush2.bf16.msra.mxu0 0
    %3036 = vmatprep.subr.bf16.mxu0 0
    %3037 = vmatpush2.bf16.msra.mxu0 0
    %3038 = vmatprep.subr.bf16.mxu0 0
    %3039 = vmatpush2.bf16.msra.mxu0 0
    %3040 = vmatprep.subr.bf16.mxu0 0
    %3041 = vmatpush2.bf16.msra.mxu0 0
    %3042 = vmatprep.subr.bf16.mxu0 0
    %3043 = vmatpush2.bf16.msra.mxu0 0
    %3044 = vmatprep.subr.bf16.mxu0 0
    %3045 = vmatpush2.bf16.msra.mxu0 0
    %3046 = vmatprep.subr.bf16.mxu0 0
    %3047 = vmatpush2.bf16.msra.mxu0 0
    %3048 = vmatprep.mubr.bf16.mxu0 0
    %3049 = vmatmul.mubr.bf16.gmra.mxu0 %v3000
    %v3050 = vpop.f32.mrf.mxu0
    %v3051 = vadd.f32 %v2891, %v3050
    %v3052 = vpop.f32.mrf.mxu0
    %v3053 = vadd.f32 %v2891, %v3052
    %v3054 = vpop.f32.mrf.mxu0
    %v3055 = vadd.f32 %v2896, %v3054
    %v3056 = vpop.f32.mrf.mxu0
    %v3057 = vadd.f32 %v2896, %v3056
    %3058 = vmatprep.mubr.bf16.mxu0 0
    %3059 = vmatmul.mubr.bf16.gmra.mxu0 %v3001
    %v3060 = vpop.f32.mrf.mxu0
    %v3061 = vadd.f32 %v2901, %v3060
    %v3062 = vpop.f32.mrf.mxu0
    %v3063 = vadd.f32 %v2901, %v3062
    %v3064 = vpop.f32.mrf.mxu0
    %v3065 = vadd.f32 %v2906, %v3064
    %v3066 = vpop.f32.mrf.mxu0
    %v3067 = vadd.f32 %v2906, %v3066
    %3068 = vmatprep.mubr.bf16.mxu0 0
    %3069 = vmatmul.mubr.bf16.gmra.mxu0 %v3002
    %v3070 = vpop.f32.mrf.mxu0
    %v3071 = vadd.f32 %v2911, %v3070
    %v3072 = vpop.f32.mrf.mxu0
    %v3073 = vadd.f32 %v2911, %v3072
    %v3074 = vpop.f32.mrf.mxu0
    %v3075 = vadd.f32 %v2916, %v3074
    %v3076 = vpop.f32.mrf.mxu0
    %v3077 = vadd.f32 %v2916, %v3076
    %3078 = vmatprep.mubr.bf16.mxu0 0
    %3079 = vmatmul.mubr.bf16.gmra.mxu0 %v3003
    %v3080 = vpop.f32.mrf.mxu0
    %v3081 = vadd.f32 %v2921, %v3080
    %v3082 = vpop.f32.mrf.mxu0
    %v3083 = vadd.f32 %v2921, %v3082
    %v3084 = vpop.f32.mrf.mxu0
    %v3085 = vadd.f32 %v2926, %v3084
    %v3086 = vpop.f32.mrf.mxu0
    %v3087 = vadd.f32 %v2926, %v3086
    %3088 = vmatprep.mubr.bf16.mxu0 0
    %3089 = vmatmul.mubr.bf16.gmra.mxu0 %v3004
    %v3090 = vpop.f32.mrf.mxu0
    %v3091 = vadd.f32 %v2931, %v3090
    %v3092 = vpop.f32.mrf.mxu0
    %v3093 = vadd.f32 %v2931, %v3092
    %v3094 = vpop.f32.mrf.mxu0
    %v3095 = vadd.f32 %v2936, %v3094
    %v3096 = vpop.f32.mrf.mxu0
    %v3097 = vadd.f32 %v2936, %v3096
    %3098 = vmatprep.mubr.bf16.mxu0 0
    %3099 = vmatmul.mubr.bf16.gmra.mxu0 %v3005
    %v3100 = vpop.f32.mrf.mxu0
    %v3101 = vadd.f32 %v2941, %v3100
    %v3102 = vpop.f32.mrf.mxu0
    %v3103 = vadd.f32 %v2941, %v3102
    %v3104 = vpop.f32.mrf.mxu0
    %v3105 = vadd.f32 %v2946, %v3104
    %v3106 = vpop.f32.mrf.mxu0
    %v3107 = vadd.f32 %v2946, %v3106
    %3108 = vmatprep.mubr.bf16.mxu0 0
    %3109 = vmatmul.mubr.bf16.gmra.mxu0 %v3006
    %v3110 = vpop.f32.mrf.mxu0
    %v3111 = vadd.f32 %v2951, %v3110
    %v3112 = vpop.f32.mrf.mxu0
    %v3113 = vadd.f32 %v2951, %v3112
    %v3114 = vpop.f32.mrf.mxu0
    %v3115 = vadd.f32 %v2956, %v3114
    %v3116 = vpop.f32.mrf.mxu0
    %v3117 = vadd.f32 %v2956, %v3116
    %3118 = vmatprep.mubr.bf16.mxu0 0
    %3119 = vmatmul.mubr.bf16.gmra.mxu0 %v3007
    %v3120 = vpop.f32.mrf.mxu0
    %v3121 = vadd.f32 %v2961, %v3120
    %v3122 = vpop.f32.mrf.mxu0
    %v3123 = vadd.f32 %v2961, %v3122
    %v3124 = vpop.f32.mrf.mxu0
    %v3125 = vadd.f32 %v2966, %v3124
    %v3126 = vpop.f32.mrf.mxu0
    %v3127 = vadd.f32 %v2966, %v3126
    %3128 = vdwg.mxu0
    %v3129 = vmax.f32 %v3051, 0.0
    %v3130 = vmax.f32 %v3053, 0.0
    %v3131 = vmax.f32 %v3055, 0.0
    %v3132 = vmax.f32 %v3057, 0.0
    %v3133 = vmax.f32 %v3061, 0.0
    %v3134 = vmax.f32 %v3063, 0.0
    %v3135 = vmax.f32 %v3065, 0.0
    %v3136 = vmax.f32 %v3067, 0.0
    %v3137 = vmax.f32 %v3071, 0.0
    %v3138 = vmax.f32 %v3073, 0.0
    %v3139 = vmax.f32 %v3075, 0.0
    %v3140 = vmax.f32 %v3077, 0.0
    %v3141 = vmax.f32 %v3081, 0.0
    %v3142 = vmax.f32 %v3083, 0.0
    %v3143 = vmax.f32 %v3085, 0.0
    %v3144 = vmax.f32 %v3087, 0.0
    %v3145 = vmax.f32 %v3091, 0.0
    %v3146 = vmax.f32 %v3093, 0.0
    %v3147 = vmax.f32 %v3095, 0.0
    %v3148 = vmax.f32 %v3097, 0.0
    %v3149 = vmax.f32 %v3101, 0.0
    %v3150 = vmax.f32 %v3103, 0.0
    %v3151 = vmax.f32 %v3105, 0.0
    %v3152 = vmax.f32 %v3107, 0.0
    %v3153 = vmax.f32 %v3111, 0.0
    %v3154 = vmax.f32 %v3113, 0.0
    %v3155 = vmax.f32 %v3115, 0.0
    %v3156 = vmax.f32 %v3117, 0.0
    %v3157 = vmax.f32 %v3121, 0.0
    %v3158 = vmax.f32 %v3123, 0.0
    %v3159 = vmax.f32 %v3125, 0.0
    %v3160 = vmax.f32 %v3127, 0.0
    %3162 = vset.pattern.permute.xlu0 0
    %3163 = vperm.xlu0 %3162, %v53
    %v3164 = vpop.permute.xlu0 %3163
    %3167 = vset.pattern.permute.xlu0 0
    %3168 = vperm.xlu0 %3167, %v54
    %v3169 = vpop.permute.xlu0 %3168
    %3172 = vset.pattern.permute.xlu0 0
    %3173 = vperm.xlu0 %3172, %v55
    %v3174 = vpop.permute.xlu0 %3173
    %3177 = vset.pattern.permute.xlu0 0
    %3178 = vperm.xlu0 %3177, %v56
    %v3179 = vpop.permute.xlu0 %3178
    %3182 = vset.pattern.permute.xlu0 0
    %3183 = vperm.xlu0 %3182, %v57
    %v3184 = vpop.permute.xlu0 %3183
    %3187 = vset.pattern.permute.xlu0 0
    %3188 = vperm.xlu0 %3187, %v58
    %v3189 = vpop.permute.xlu0 %3188
    %3192 = vset.pattern.permute.xlu0 0
    %3193 = vperm.xlu0 %3192, %v59
    %v3194 = vpop.permute.xlu0 %3193
    %3197 = vset.pattern.permute.xlu0 0
    %3198 = vperm.xlu0 %3197, %v60
    %v3199 = vpop.permute.xlu0 %3198
    %3202 = vset.pattern.permute.xlu0 0
    %3203 = vperm.xlu0 %3202, %v61
    %v3204 = vpop.permute.xlu0 %3203
    %3207 = vset.pattern.permute.xlu0 0
    %3208 = vperm.xlu0 %3207, %v62
    %v3209 = vpop.permute.xlu0 %3208
    %3212 = vset.pattern.permute.xlu0 0
    %3213 = vperm.xlu0 %3212, %v63
    %v3214 = vpop.permute.xlu0 %3213
    %3217 = vset.pattern.permute.xlu0 0
    %3218 = vperm.xlu0 %3217, %v64
    %v3219 = vpop.permute.xlu0 %3218
    %3222 = vset.pattern.permute.xlu0 0
    %3223 = vperm.xlu0 %3222, %v65
    %v3224 = vpop.permute.xlu0 %3223
    %3227 = vset.pattern.permute.xlu0 0
    %3228 = vperm.xlu0 %3227, %v66
    %v3229 = vpop.permute.xlu0 %3228
    %3232 = vset.pattern.permute.xlu0 0
    %3233 = vperm.xlu0 %3232, %v67
    %v3234 = vpop.permute.xlu0 %3233
    %3237 = vset.pattern.permute.xlu0 0
    %3238 = vperm.xlu0 %3237, %v68
    %v3239 = vpop.permute.xlu0 %3238
    %v3241 = vmul.f32 %v3129, %v3164
    %v3242 = vmul.f32 %v3130, %v3164
    %v3243 = vmul.f32 %v3131, %v3169
    %v3244 = vmul.f32 %v3132, %v3169
    %v3245 = vmul.f32 %v3133, %v3174
    %v3246 = vmul.f32 %v3134, %v3174
    %v3247 = vmul.f32 %v3135, %v3179
    %v3248 = vmul.f32 %v3136, %v3179
    %v3249 = vmul.f32 %v3137, %v3184
    %v3250 = vmul.f32 %v3138, %v3184
    %v3251 = vmul.f32 %v3139, %v3189
    %v3252 = vmul.f32 %v3140, %v3189
    %v3253 = vmul.f32 %v3141, %v3194
    %v3254 = vmul.f32 %v3142, %v3194
    %v3255 = vmul.f32 %v3143, %v3199
    %v3256 = vmul.f32 %v3144, %v3199
    %v3257 = vmul.f32 %v3145, %v3204
    %v3258 = vmul.f32 %v3146, %v3204
    %v3259 = vmul.f32 %v3147, %v3209
    %v3260 = vmul.f32 %v3148, %v3209
    %v3261 = vmul.f32 %v3149, %v3214
    %v3262 = vmul.f32 %v3150, %v3214
    %v3263 = vmul.f32 %v3151, %v3219
    %v3264 = vmul.f32 %v3152, %v3219
    %v3265 = vmul.f32 %v3153, %v3224
    %v3266 = vmul.f32 %v3154, %v3224
    %v3267 = vmul.f32 %v3155, %v3229
    %v3268 = vmul.f32 %v3156, %v3229
    %v3269 = vmul.f32 %v3157, %v3234
    %v3270 = vmul.f32 %v3158, %v3234
    %v3271 = vmul.f32 %v3159, %v3239
    %v3272 = vmul.f32 %v3160, %v3239
    %v3273 = vadd.f32 %v3241, %v3243
    %v3274 = vadd.f32 %v3273, %v3245
    %v3275 = vadd.f32 %v3274, %v3247
    %v3276 = vadd.f32 %v3275, %v3249
    %v3277 = vadd.f32 %v3276, %v3251
    %v3278 = vadd.f32 %v3277, %v3253
    %v3279 = vadd.f32 %v3278, %v3255
    %v3280 = vadd.f32 %v3279, %v3257
    %v3281 = vadd.f32 %v3280, %v3259
    %v3282 = vadd.f32 %v3281, %v3261
    %v3283 = vadd.f32 %v3282, %v3263
    %v3284 = vadd.f32 %v3283, %v3265
    %v3285 = vadd.f32 %v3284, %v3267
    %v3286 = vadd.f32 %v3285, %v3269
    %v3287 = vadd.f32 %v3286, %v3271
    %v3288 = vrot.slane %v3287, 4
    %v3289 = vadd.f32 %v3287, %v3288
    %v3290 = vrot.slane %v3289, 2
    %v3291 = vadd.f32 %v3289, %v3290
    %v3292 = vrot.slane %v3291, 1
    %v3293 = vadd.f32 %v3291, %v3292
    %v3294 = vadd.f32 %v3242, %v3244
    %v3295 = vadd.f32 %v3294, %v3246
    %v3296 = vadd.f32 %v3295, %v3248
    %v3297 = vadd.f32 %v3296, %v3250
    %v3298 = vadd.f32 %v3297, %v3252
    %v3299 = vadd.f32 %v3298, %v3254
    %v3300 = vadd.f32 %v3299, %v3256
    %v3301 = vadd.f32 %v3300, %v3258
    %v3302 = vadd.f32 %v3301, %v3260
    %v3303 = vadd.f32 %v3302, %v3262
    %v3304 = vadd.f32 %v3303, %v3264
    %v3305 = vadd.f32 %v3304, %v3266
    %v3306 = vadd.f32 %v3305, %v3268
    %v3307 = vadd.f32 %v3306, %v3270
    %v3308 = vadd.f32 %v3307, %v3272
    %v3309 = vrot.slane %v3308, 4
    %v3310 = vadd.f32 %v3308, %v3309
    %v3311 = vrot.slane %v3310, 2
    %v3312 = vadd.f32 %v3310, %v3311
    %v3313 = vrot.slane %v3312, 1
    %v3314 = vadd.f32 %v3312, %v3313
    %3316 = vset.pattern.permute.xlu0 0
    %3317 = vperm.xlu0 %3316, %v69
    %v3318 = vpop.permute.xlu0 %3317
    %v3320 = vlaneseq
    %v3321 = vshrl.u32 %v3320, 7
    %v3322 = vsub.s32 0, %v3321
    %v3323 = vrot.slane %v3318, %v3322
    %v3324 = vadd.f32 %v3293, %v3323
    %v3325 = vadd.f32 %v3314, %v3323
    %v3328 = vcombine.low %v3324, %v3325
    %v3330 = vunpack.c.l.s4 1966171168
    %v3331 = vunpack.c.0.s8 %v3330
    %v3332 = vlaneseq
    %v3333 = vshrl.u32 %v3332, 7
    %v3334 = vsub.s32 %v3331, %v3333
    %v3335 = vrot.slane %v3328, %v3334
    %v3337 = vunpack.c.l.s4 1966171168
    %v3338 = vunpack.c.0.s8 %v3337
    %v3339 = vlaneseq
    %v3340 = vshrl.u32 %v3339, 7
    %v3341 = vsub.s32 %v3338, %v3340
    %v3342 = vrot.slane %v3335, %v3341
    %v3344 = vlaneseq
    %vm3345 = vcmp.ge.s32.totalorder %v3344, 0
    %vm3346 = vcmp.lt.s32.totalorder %v3344, 256
    %vm3347 = vmand %vm3345, %vm3346
    %3348 = vst.msk [vmem:[#allocation3] sm:$0x3] %vm3347, %v3342
    %v3349 = vld [vmem:[%s0 + $0x4] sm:$0xf]
    %v3351 = vlaneseq
    %v3352 = vshrl.u32 %v3351, 7
    %v3353 = vsub.s32 0, %v3352
    %v3354 = vrot.slane %v3349, %v3353
    %v3355 = vlaneseq
    %v3356 = vshrl.u32 %v3355, 7
    %v3357 = vsub.s32 2, %v3356
    %v3358 = vrot.slane %v3349, %v3357
    %v3361 = vlaneseq
    %v3362 = vshrl.u32 %v3361, 7
    %v3363 = vsub.s32 0, %v3362
    %v3364 = vrot.slane %v3354, %v3363
    %v3365 = vlaneseq
    %v3366 = vshrl.u32 %v3365, 7
    %v3367 = vsub.s32 0, %v3366
    %v3368 = vrot.slane %v3358, %v3367
    %v3369 = vmul.f32 %v74, %v3364
    %v3370 = vmul.f32 %v74, %v3368
    %v3371 = vmul.f32 %v79, %v3364
    %v3372 = vmul.f32 %v79, %v3368
    %v3373 = vmul.f32 %v84, %v3364
    %v3374 = vmul.f32 %v84, %v3368
    %v3375 = vmul.f32 %v89, %v3364
    %v3376 = vmul.f32 %v89, %v3368
    %v3377 = vlaneseq
    %v3378 = vshrl.u32 %v3377, 7
    %v3379 = vsub.s32 1, %v3378
    %v3380 = vrot.slane %v3349, %v3379
    %v3381 = vlaneseq
    %v3382 = vshrl.u32 %v3381, 7
    %v3383 = vsub.s32 3, %v3382
    %v3384 = vrot.slane %v3349, %v3383
    %v3387 = vlaneseq
    %v3388 = vshrl.u32 %v3387, 7
    %v3389 = vsub.s32 1, %v3388
    %v3390 = vrot.slane %v3380, %v3389
    %v3391 = vlaneseq
    %v3392 = vshrl.u32 %v3391, 7
    %v3393 = vsub.s32 1, %v3392
    %v3394 = vrot.slane %v3384, %v3393
    %v3395 = vmul.f32 %v120, %v3390
    %v3396 = vmul.f32 %v120, %v3394
    %v3397 = vmul.f32 %v124, %v3390
    %v3398 = vmul.f32 %v124, %v3394
    %v3399 = vmul.f32 %v128, %v3390
    %v3400 = vmul.f32 %v128, %v3394
    %v3401 = vmul.f32 %v132, %v3390
    %v3402 = vmul.f32 %v132, %v3394
    %v3403 = vadd.f32 %v3369, %v3395
    %v3404 = vadd.f32 %v3370, %v3396
    %v3405 = vadd.f32 %v3371, %v3397
    %v3406 = vadd.f32 %v3372, %v3398
    %v3407 = vadd.f32 %v3373, %v3399
    %v3408 = vadd.f32 %v3374, %v3400
    %v3409 = vadd.f32 %v3375, %v3401
    %v3410 = vadd.f32 %v3376, %v3402
    %v3411 = vmul.f32 %v3403, 0.15915494
    %v3412 = vmul.f32 %v3404, 0.15915494
    %v3413 = vmul.f32 %v3405, 0.15915494
    %v3414 = vmul.f32 %v3406, 0.15915494
    %v3415 = vmul.f32 %v3407, 0.15915494
    %v3416 = vmul.f32 %v3408, 0.15915494
    %v3417 = vmul.f32 %v3409, 0.15915494
    %v3418 = vmul.f32 %v3410, 0.15915494
    %v3419 = vadd.f32 %v3411, 0.5
    %v3420 = vadd.f32 %v3412, 0.5
    %v3421 = vadd.f32 %v3413, 0.5
    %v3422 = vadd.f32 %v3414, 0.5
    %v3423 = vadd.f32 %v3415, 0.5
    %v3424 = vadd.f32 %v3416, 0.5
    %v3425 = vadd.f32 %v3417, 0.5
    %v3426 = vadd.f32 %v3418, 0.5
    %v3427 = vfloor.f32 %v3419
    %v3428 = vfloor.f32 %v3420
    %v3429 = vfloor.f32 %v3421
    %v3430 = vfloor.f32 %v3422
    %v3431 = vfloor.f32 %v3423
    %v3432 = vfloor.f32 %v3424
    %v3433 = vfloor.f32 %v3425
    %v3434 = vfloor.f32 %v3426
    %v3435 = vmul.f32 %v3427, 6.2831855
    %v3436 = vmul.f32 %v3428, 6.2831855
    %v3437 = vmul.f32 %v3429, 6.2831855
    %v3438 = vmul.f32 %v3430, 6.2831855
    %v3439 = vmul.f32 %v3431, 6.2831855
    %v3440 = vmul.f32 %v3432, 6.2831855
    %v3441 = vmul.f32 %v3433, 6.2831855
    %v3442 = vmul.f32 %v3434, 6.2831855
    %v3443 = vsub.f32 %v3403, %v3435
    %v3444 = vsub.f32 %v3404, %v3436
    %v3445 = vsub.f32 %v3405, %v3437
    %v3446 = vsub.f32 %v3406, %v3438
    %v3447 = vsub.f32 %v3407, %v3439
    %v3448 = vsub.f32 %v3408, %v3440
    %v3449 = vsub.f32 %v3409, %v3441
    %v3450 = vsub.f32 %v3410, %v3442
    %v3451 = vadd.f32 %v3443, 1.5707964
    %v3452 = vadd.f32 %v3444, 1.5707964
    %v3453 = vadd.f32 %v3445, 1.5707964
    %v3454 = vadd.f32 %v3446, 1.5707964
    %v3455 = vadd.f32 %v3447, 1.5707964
    %v3456 = vadd.f32 %v3448, 1.5707964
    %v3457 = vadd.f32 %v3449, 1.5707964
    %v3458 = vadd.f32 %v3450, 1.5707964
    %v3459 = vand.u32 2147483647, %v3443
    %vm3460 = vcmp.le.f32.partialorder %v3459, 0.7853982
    %vm3461 = vcmp.lt.s32.totalorder %v3443, 0
    %v3462 = vand.u32 %v3443, 2139095040
    %v3463 = vshrl.u32 %v3462, 23
    %v3464 = vsub.s32 %v3463, 127
    %v3465 = vand.u32 2147483647, %v3443
    %v3466 = vand.u32 %v3465, 8388607
    %v3467 = vor.u32 %v3466, 8388608
    %v3468 = vsub.s32 0, %v3467
    %v3469 = vadd.s32 %v3464, 1
    %vm3470 = vcmp.gt.s32.totalorder %v3469, 0
    %v3471 = vsel %vm3470, %v3469, 0
    %v3472 = vshrl.u32 %v3471, 5
    %v3473 = vand.u32 %v3471, 31
    %v3474 = vsub.s32 32, %v3473
    %v3475 = vshrl.u32 683565275, %v3474
    %v3476 = vshll.u32 683565275, %v3473
    %v3477 = vshrl.u32 2475754826, %v3474
    %v3478 = vor.u32 %v3476, %v3477
    %v3479 = vshll.u32 2475754826, %v3473
    %v3480 = vshrl.u32 2131351028, %v3474
    %v3481 = vor.u32 %v3479, %v3480
    %v3482 = vshll.u32 2131351028, %v3473
    %v3483 = vshrl.u32 2102212464, %v3474
    %v3484 = vor.u32 %v3482, %v3483
    %v3485 = vshll.u32 2102212464, %v3473
    %v3486 = vshrl.u32 920167782, %v3474
    %v3487 = vor.u32 %v3485, %v3486
    %v3488 = vshll.u32 920167782, %v3473
    %v3489 = vshrl.u32 1326507024, %v3474
    %v3490 = vor.u32 %v3488, %v3489
    %vm3491 = vcmp.lt.s32.totalorder %v3472, 1
    %vm3492 = vcmp.lt.s32.totalorder %v3472, 2
    %vm3493 = vcmp.lt.s32.totalorder %v3472, 3
    %vm3494 = vcmp.lt.s32.totalorder %v3472, 4
    %v3495 = vsel %vm3491, %v3475, %v3478
    %v3496 = vsel %vm3494, %v3484, 2102212464
    %v3497 = vsel %vm3493, %v3481, %v3496
    %v3498 = vsel %vm3492, %v3495, %v3497
    %v3499 = vsel %vm3491, %v3478, %v3481
    %v3500 = vsel %vm3494, %v3487, 920167782
    %v3501 = vsel %vm3493, %v3484, %v3500
    %v3502 = vsel %vm3492, %v3499, %v3501
    %v3503 = vsel %vm3491, %v3481, %v3484
    %v3504 = vsel %vm3494, %v3490, 1326507024
    %v3505 = vsel %vm3493, %v3487, %v3504
    %v3506 = vsel %vm3492, %v3503, %v3505
    %v3507 = vshll.u32 %v3467, 8
    %v3508 = vmul.u32.u64.compose %v3507, %v3506
    %v3509 = vextract.low.u32 %v3508
    %v3510 = vextract.high.u32 %v3508
    %v3511 = vmul.u32.u64.compose %v3507, %v3502
    %v3512 = vextract.low.u32 %v3511
    %v3513 = vextract.high.u32 %v3511
    %v3514 = vmul.u32 %v3507, %v3498
    %v3515 = vadd.s32 %v3510, %v3512
    %vm3516 = vc.u32 %v3510, %v3512
    %v3517 = vadd.s32 %v3513, 1
    %v3518 = vsel %vm3516, %v3517, %v3513
    %v3519 = vadd.s32 %v3514, %v3518
    %v3520 = vadd.s32 %v3519, 536870912
    %v3521 = vshrl.u32 %v3520, 30
    %v3522 = vshll.u32 %v3521, 30
    %v3523 = vsub.s32 %v3519, %v3522
    %vm3524 = vcmp.lt.s32.totalorder %v3523, 0
    %v3525 = vsub.s32 0, %v3523
    %v3526 = vsel %vm3524, %v3525, %v3523
    %v3527 = vclz %v3526
    %v3528 = vsub.s32 %v3527, 2
    %vm3529 = vcmp.gt.s32.totalorder 0, %v3528
    %v3530 = vsel %vm3529, 0, %v3528
    %v3531 = vsub.s32 32, %v3530
    %v3532 = vshll.u32 %v3523, %v3530
    %v3533 = vshrl.u32 %v3515, %v3531
    %v3534 = vor.u32 %v3532, %v3533
    %v3535 = vsub.s32 4294967266, %v3530
    %v3536 = vadd.s32 %v3535, 127
    %v3537 = vshll.u32 %v3536, 23
    %v3538 = vor.u32 4788187, %v3537
    %v3539 = vand.u32 2147483647, %v3538
    %v3541 = vcvt.s32.f32 %v3534
    %v3542 = vmul.f32 %v3541, %v3539
    %v3543 = vxor.u32 %v3542, 2147483648
    %v3544 = vsel %vm3461, %v3543, %v3542
    %v3545 = vsub.s32 4, %v3521
    %v3546 = vsel %vm3461, %v3545, %v3521
    %v3547 = vsel %vm3460, %v3443, %v3544
    %v3548 = vsel %vm3460, 0, %v3546
    %v3549 = vcosq.f32.pop %v3547
    %v3550 = vsinq.f32.pop %v3547
    %vm3551 = vweird.f32 %v3443
    %v3552 = vadd.s32 %v3548, 3
    %v3553 = vand.u32 %v3552, 3
    %vm3554 = vcmp.lt.s32.totalorder %v3553, 2
    %vm3555 = vcmp.eq.s32.totalorder %v3553, 0
    %v3556 = vxor.u32 %v3550, 2147483648
    %v3557 = vsel %vm3555, %v3549, %v3556
    %vm3558 = vcmp.eq.s32.totalorder %v3553, 2
    %v3559 = vxor.u32 %v3549, 2147483648
    %v3560 = vsel %vm3558, %v3559, %v3550
    %v3561 = vsel %vm3554, %v3557, %v3560
    %v3562 = vsel %vm3551, nan, %v3561
    %v3563 = vand.u32 2147483647, %v3444
    %vm3564 = vcmp.le.f32.partialorder %v3563, 0.7853982
    %vm3565 = vcmp.lt.s32.totalorder %v3444, 0
    %v3566 = vand.u32 %v3444, 2139095040
    %v3567 = vshrl.u32 %v3566, 23
    %v3568 = vsub.s32 %v3567, 127
    %v3569 = vand.u32 2147483647, %v3444
    %v3570 = vand.u32 %v3569, 8388607
    %v3571 = vor.u32 %v3570, 8388608
    %v3572 = vsub.s32 0, %v3571
    %v3573 = vadd.s32 %v3568, 1
    %vm3574 = vcmp.gt.s32.totalorder %v3573, 0
    %v3575 = vsel %vm3574, %v3573, 0
    %v3576 = vshrl.u32 %v3575, 5
    %v3577 = vand.u32 %v3575, 31
    %v3578 = vsub.s32 32, %v3577
    %v3579 = vshrl.u32 683565275, %v3578
    %v3580 = vshll.u32 683565275, %v3577
    %v3581 = vshrl.u32 2475754826, %v3578
    %v3582 = vor.u32 %v3580, %v3581
    %v3583 = vshll.u32 2475754826, %v3577
    %v3584 = vshrl.u32 2131351028, %v3578
    %v3585 = vor.u32 %v3583, %v3584
    %v3586 = vshll.u32 2131351028, %v3577
    %v3587 = vshrl.u32 2102212464, %v3578
    %v3588 = vor.u32 %v3586, %v3587
    %v3589 = vshll.u32 2102212464, %v3577
    %v3590 = vshrl.u32 920167782, %v3578
    %v3591 = vor.u32 %v3589, %v3590
    %v3592 = vshll.u32 920167782, %v3577
    %v3593 = vshrl.u32 1326507024, %v3578
    %v3594 = vor.u32 %v3592, %v3593
    %vm3595 = vcmp.lt.s32.totalorder %v3576, 1
    %vm3596 = vcmp.lt.s32.totalorder %v3576, 2
    %vm3597 = vcmp.lt.s32.totalorder %v3576, 3
    %vm3598 = vcmp.lt.s32.totalorder %v3576, 4
    %v3599 = vsel %vm3595, %v3579, %v3582
    %v3600 = vsel %vm3598, %v3588, 2102212464
    %v3601 = vsel %vm3597, %v3585, %v3600
    %v3602 = vsel %vm3596, %v3599, %v3601
    %v3603 = vsel %vm3595, %v3582, %v3585
    %v3604 = vsel %vm3598, %v3591, 920167782
    %v3605 = vsel %vm3597, %v3588, %v3604
    %v3606 = vsel %vm3596, %v3603, %v3605
    %v3607 = vsel %vm3595, %v3585, %v3588
    %v3608 = vsel %vm3598, %v3594, 1326507024
    %v3609 = vsel %vm3597, %v3591, %v3608
    %v3610 = vsel %vm3596, %v3607, %v3609
    %v3611 = vshll.u32 %v3571, 8
    %v3612 = vmul.u32.u64.compose %v3611, %v3610
    %v3613 = vextract.low.u32 %v3612
    %v3614 = vextract.high.u32 %v3612
    %v3615 = vmul.u32.u64.compose %v3611, %v3606
    %v3616 = vextract.low.u32 %v3615
    %v3617 = vextract.high.u32 %v3615
    %v3618 = vmul.u32 %v3611, %v3602
    %v3619 = vadd.s32 %v3614, %v3616
    %vm3620 = vc.u32 %v3614, %v3616
    %v3621 = vadd.s32 %v3617, 1
    %v3622 = vsel %vm3620, %v3621, %v3617
    %v3623 = vadd.s32 %v3618, %v3622
    %v3624 = vadd.s32 %v3623, 536870912
    %v3625 = vshrl.u32 %v3624, 30
    %v3626 = vshll.u32 %v3625, 30
    %v3627 = vsub.s32 %v3623, %v3626
    %vm3628 = vcmp.lt.s32.totalorder %v3627, 0
    %v3629 = vsub.s32 0, %v3627
    %v3630 = vsel %vm3628, %v3629, %v3627
    %v3631 = vclz %v3630
    %v3632 = vsub.s32 %v3631, 2
    %vm3633 = vcmp.gt.s32.totalorder 0, %v3632
    %v3634 = vsel %vm3633, 0, %v3632
    %v3635 = vsub.s32 32, %v3634
    %v3636 = vshll.u32 %v3627, %v3634
    %v3637 = vshrl.u32 %v3619, %v3635
    %v3638 = vor.u32 %v3636, %v3637
    %v3639 = vsub.s32 4294967266, %v3634
    %v3640 = vadd.s32 %v3639, 127
    %v3641 = vshll.u32 %v3640, 23
    %v3642 = vor.u32 4788187, %v3641
    %v3643 = vand.u32 2147483647, %v3642
    %v3645 = vcvt.s32.f32 %v3638
    %v3646 = vmul.f32 %v3645, %v3643
    %v3647 = vxor.u32 %v3646, 2147483648
    %v3648 = vsel %vm3565, %v3647, %v3646
    %v3649 = vsub.s32 4, %v3625
    %v3650 = vsel %vm3565, %v3649, %v3625
    %v3651 = vsel %vm3564, %v3444, %v3648
    %v3652 = vsel %vm3564, 0, %v3650
    %v3653 = vcosq.f32.pop %v3651
    %v3654 = vsinq.f32.pop %v3651
    %vm3655 = vweird.f32 %v3444
    %v3656 = vadd.s32 %v3652, 3
    %v3657 = vand.u32 %v3656, 3
    %vm3658 = vcmp.lt.s32.totalorder %v3657, 2
    %vm3659 = vcmp.eq.s32.totalorder %v3657, 0
    %v3660 = vxor.u32 %v3654, 2147483648
    %v3661 = vsel %vm3659, %v3653, %v3660
    %vm3662 = vcmp.eq.s32.totalorder %v3657, 2
    %v3663 = vxor.u32 %v3653, 2147483648
    %v3664 = vsel %vm3662, %v3663, %v3654
    %v3665 = vsel %vm3658, %v3661, %v3664
    %v3666 = vsel %vm3655, nan, %v3665
    %v3667 = vand.u32 2147483647, %v3445
    %vm3668 = vcmp.le.f32.partialorder %v3667, 0.7853982
    %vm3669 = vcmp.lt.s32.totalorder %v3445, 0
    %v3670 = vand.u32 %v3445, 2139095040
    %v3671 = vshrl.u32 %v3670, 23
    %v3672 = vsub.s32 %v3671, 127
    %v3673 = vand.u32 2147483647, %v3445
    %v3674 = vand.u32 %v3673, 8388607
    %v3675 = vor.u32 %v3674, 8388608
    %v3676 = vsub.s32 0, %v3675
    %v3677 = vadd.s32 %v3672, 1
    %vm3678 = vcmp.gt.s32.totalorder %v3677, 0
    %v3679 = vsel %vm3678, %v3677, 0
    %v3680 = vshrl.u32 %v3679, 5
    %v3681 = vand.u32 %v3679, 31
    %v3682 = vsub.s32 32, %v3681
    %v3683 = vshrl.u32 683565275, %v3682
    %v3684 = vshll.u32 683565275, %v3681
    %v3685 = vshrl.u32 2475754826, %v3682
    %v3686 = vor.u32 %v3684, %v3685
    %v3687 = vshll.u32 2475754826, %v3681
    %v3688 = vshrl.u32 2131351028, %v3682
    %v3689 = vor.u32 %v3687, %v3688
    %v3690 = vshll.u32 2131351028, %v3681
    %v3691 = vshrl.u32 2102212464, %v3682
    %v3692 = vor.u32 %v3690, %v3691
    %v3693 = vshll.u32 2102212464, %v3681
    %v3694 = vshrl.u32 920167782, %v3682
    %v3695 = vor.u32 %v3693, %v3694
    %v3696 = vshll.u32 920167782, %v3681
    %v3697 = vshrl.u32 1326507024, %v3682
    %v3698 = vor.u32 %v3696, %v3697
    %vm3699 = vcmp.lt.s32.totalorder %v3680, 1
    %vm3700 = vcmp.lt.s32.totalorder %v3680, 2
    %vm3701 = vcmp.lt.s32.totalorder %v3680, 3
    %vm3702 = vcmp.lt.s32.totalorder %v3680, 4
    %v3703 = vsel %vm3699, %v3683, %v3686
    %v3704 = vsel %vm3702, %v3692, 2102212464
    %v3705 = vsel %vm3701, %v3689, %v3704
    %v3706 = vsel %vm3700, %v3703, %v3705
    %v3707 = vsel %vm3699, %v3686, %v3689
    %v3708 = vsel %vm3702, %v3695, 920167782
    %v3709 = vsel %vm3701, %v3692, %v3708
    %v3710 = vsel %vm3700, %v3707, %v3709
    %v3711 = vsel %vm3699, %v3689, %v3692
    %v3712 = vsel %vm3702, %v3698, 1326507024
    %v3713 = vsel %vm3701, %v3695, %v3712
    %v3714 = vsel %vm3700, %v3711, %v3713
    %v3715 = vshll.u32 %v3675, 8
    %v3716 = vmul.u32.u64.compose %v3715, %v3714
    %v3717 = vextract.low.u32 %v3716
    %v3718 = vextract.high.u32 %v3716
    %v3719 = vmul.u32.u64.compose %v3715, %v3710
    %v3720 = vextract.low.u32 %v3719
    %v3721 = vextract.high.u32 %v3719
    %v3722 = vmul.u32 %v3715, %v3706
    %v3723 = vadd.s32 %v3718, %v3720
    %vm3724 = vc.u32 %v3718, %v3720
    %v3725 = vadd.s32 %v3721, 1
    %v3726 = vsel %vm3724, %v3725, %v3721
    %v3727 = vadd.s32 %v3722, %v3726
    %v3728 = vadd.s32 %v3727, 536870912
    %v3729 = vshrl.u32 %v3728, 30
    %v3730 = vshll.u32 %v3729, 30
    %v3731 = vsub.s32 %v3727, %v3730
    %vm3732 = vcmp.lt.s32.totalorder %v3731, 0
    %v3733 = vsub.s32 0, %v3731
    %v3734 = vsel %vm3732, %v3733, %v3731
    %v3735 = vclz %v3734
    %v3736 = vsub.s32 %v3735, 2
    %vm3737 = vcmp.gt.s32.totalorder 0, %v3736
    %v3738 = vsel %vm3737, 0, %v3736
    %v3739 = vsub.s32 32, %v3738
    %v3740 = vshll.u32 %v3731, %v3738
    %v3741 = vshrl.u32 %v3723, %v3739
    %v3742 = vor.u32 %v3740, %v3741
    %v3743 = vsub.s32 4294967266, %v3738
    %v3744 = vadd.s32 %v3743, 127
    %v3745 = vshll.u32 %v3744, 23
    %v3746 = vor.u32 4788187, %v3745
    %v3747 = vand.u32 2147483647, %v3746
    %v3749 = vcvt.s32.f32 %v3742
    %v3750 = vmul.f32 %v3749, %v3747
    %v3751 = vxor.u32 %v3750, 2147483648
    %v3752 = vsel %vm3669, %v3751, %v3750
    %v3753 = vsub.s32 4, %v3729
    %v3754 = vsel %vm3669, %v3753, %v3729
    %v3755 = vsel %vm3668, %v3445, %v3752
    %v3756 = vsel %vm3668, 0, %v3754
    %v3757 = vcosq.f32.pop %v3755
    %v3758 = vsinq.f32.pop %v3755
    %vm3759 = vweird.f32 %v3445
    %v3760 = vadd.s32 %v3756, 3
    %v3761 = vand.u32 %v3760, 3
    %vm3762 = vcmp.lt.s32.totalorder %v3761, 2
    %vm3763 = vcmp.eq.s32.totalorder %v3761, 0
    %v3764 = vxor.u32 %v3758, 2147483648
    %v3765 = vsel %vm3763, %v3757, %v3764
    %vm3766 = vcmp.eq.s32.totalorder %v3761, 2
    %v3767 = vxor.u32 %v3757, 2147483648
    %v3768 = vsel %vm3766, %v3767, %v3758
    %v3769 = vsel %vm3762, %v3765, %v3768
    %v3770 = vsel %vm3759, nan, %v3769
    %v3771 = vand.u32 2147483647, %v3446
    %vm3772 = vcmp.le.f32.partialorder %v3771, 0.7853982
    %vm3773 = vcmp.lt.s32.totalorder %v3446, 0
    %v3774 = vand.u32 %v3446, 2139095040
    %v3775 = vshrl.u32 %v3774, 23
    %v3776 = vsub.s32 %v3775, 127
    %v3777 = vand.u32 2147483647, %v3446
    %v3778 = vand.u32 %v3777, 8388607
    %v3779 = vor.u32 %v3778, 8388608
    %v3780 = vsub.s32 0, %v3779
    %v3781 = vadd.s32 %v3776, 1
    %vm3782 = vcmp.gt.s32.totalorder %v3781, 0
    %v3783 = vsel %vm3782, %v3781, 0
    %v3784 = vshrl.u32 %v3783, 5
    %v3785 = vand.u32 %v3783, 31
    %v3786 = vsub.s32 32, %v3785
    %v3787 = vshrl.u32 683565275, %v3786
    %v3788 = vshll.u32 683565275, %v3785
    %v3789 = vshrl.u32 2475754826, %v3786
    %v3790 = vor.u32 %v3788, %v3789
    %v3791 = vshll.u32 2475754826, %v3785
    %v3792 = vshrl.u32 2131351028, %v3786
    %v3793 = vor.u32 %v3791, %v3792
    %v3794 = vshll.u32 2131351028, %v3785
    %v3795 = vshrl.u32 2102212464, %v3786
    %v3796 = vor.u32 %v3794, %v3795
    %v3797 = vshll.u32 2102212464, %v3785
    %v3798 = vshrl.u32 920167782, %v3786
    %v3799 = vor.u32 %v3797, %v3798
    %v3800 = vshll.u32 920167782, %v3785
    %v3801 = vshrl.u32 1326507024, %v3786
    %v3802 = vor.u32 %v3800, %v3801
    %vm3803 = vcmp.lt.s32.totalorder %v3784, 1
    %vm3804 = vcmp.lt.s32.totalorder %v3784, 2
    %vm3805 = vcmp.lt.s32.totalorder %v3784, 3
    %vm3806 = vcmp.lt.s32.totalorder %v3784, 4
    %v3807 = vsel %vm3803, %v3787, %v3790
    %v3808 = vsel %vm3806, %v3796, 2102212464
    %v3809 = vsel %vm3805, %v3793, %v3808
    %v3810 = vsel %vm3804, %v3807, %v3809
    %v3811 = vsel %vm3803, %v3790, %v3793
    %v3812 = vsel %vm3806, %v3799, 920167782
    %v3813 = vsel %vm3805, %v3796, %v3812
    %v3814 = vsel %vm3804, %v3811, %v3813
    %v3815 = vsel %vm3803, %v3793, %v3796
    %v3816 = vsel %vm3806, %v3802, 1326507024
    %v3817 = vsel %vm3805, %v3799, %v3816
    %v3818 = vsel %vm3804, %v3815, %v3817
    %v3819 = vshll.u32 %v3779, 8
    %v3820 = vmul.u32.u64.compose %v3819, %v3818
    %v3821 = vextract.low.u32 %v3820
    %v3822 = vextract.high.u32 %v3820
    %v3823 = vmul.u32.u64.compose %v3819, %v3814
    %v3824 = vextract.low.u32 %v3823
    %v3825 = vextract.high.u32 %v3823
    %v3826 = vmul.u32 %v3819, %v3810
    %v3827 = vadd.s32 %v3822, %v3824
    %vm3828 = vc.u32 %v3822, %v3824
    %v3829 = vadd.s32 %v3825, 1
    %v3830 = vsel %vm3828, %v3829, %v3825
    %v3831 = vadd.s32 %v3826, %v3830
    %v3832 = vadd.s32 %v3831, 536870912
    %v3833 = vshrl.u32 %v3832, 30
    %v3834 = vshll.u32 %v3833, 30
    %v3835 = vsub.s32 %v3831, %v3834
    %vm3836 = vcmp.lt.s32.totalorder %v3835, 0
    %v3837 = vsub.s32 0, %v3835
    %v3838 = vsel %vm3836, %v3837, %v3835
    %v3839 = vclz %v3838
    %v3840 = vsub.s32 %v3839, 2
    %vm3841 = vcmp.gt.s32.totalorder 0, %v3840
    %v3842 = vsel %vm3841, 0, %v3840
    %v3843 = vsub.s32 32, %v3842
    %v3844 = vshll.u32 %v3835, %v3842
    %v3845 = vshrl.u32 %v3827, %v3843
    %v3846 = vor.u32 %v3844, %v3845
    %v3847 = vsub.s32 4294967266, %v3842
    %v3848 = vadd.s32 %v3847, 127
    %v3849 = vshll.u32 %v3848, 23
    %v3850 = vor.u32 4788187, %v3849
    %v3851 = vand.u32 2147483647, %v3850
    %v3853 = vcvt.s32.f32 %v3846
    %v3854 = vmul.f32 %v3853, %v3851
    %v3855 = vxor.u32 %v3854, 2147483648
    %v3856 = vsel %vm3773, %v3855, %v3854
    %v3857 = vsub.s32 4, %v3833
    %v3858 = vsel %vm3773, %v3857, %v3833
    %v3859 = vsel %vm3772, %v3446, %v3856
    %v3860 = vsel %vm3772, 0, %v3858
    %v3861 = vcosq.f32.pop %v3859
    %v3862 = vsinq.f32.pop %v3859
    %vm3863 = vweird.f32 %v3446
    %v3864 = vadd.s32 %v3860, 3
    %v3865 = vand.u32 %v3864, 3
    %vm3866 = vcmp.lt.s32.totalorder %v3865, 2
    %vm3867 = vcmp.eq.s32.totalorder %v3865, 0
    %v3868 = vxor.u32 %v3862, 2147483648
    %v3869 = vsel %vm3867, %v3861, %v3868
    %vm3870 = vcmp.eq.s32.totalorder %v3865, 2
    %v3871 = vxor.u32 %v3861, 2147483648
    %v3872 = vsel %vm3870, %v3871, %v3862
    %v3873 = vsel %vm3866, %v3869, %v3872
    %v3874 = vsel %vm3863, nan, %v3873
    %v3875 = vand.u32 2147483647, %v3447
    %vm3876 = vcmp.le.f32.partialorder %v3875, 0.7853982
    %vm3877 = vcmp.lt.s32.totalorder %v3447, 0
    %v3878 = vand.u32 %v3447, 2139095040
    %v3879 = vshrl.u32 %v3878, 23
    %v3880 = vsub.s32 %v3879, 127
    %v3881 = vand.u32 2147483647, %v3447
    %v3882 = vand.u32 %v3881, 8388607
    %v3883 = vor.u32 %v3882, 8388608
    %v3884 = vsub.s32 0, %v3883
    %v3885 = vadd.s32 %v3880, 1
    %vm3886 = vcmp.gt.s32.totalorder %v3885, 0
    %v3887 = vsel %vm3886, %v3885, 0
    %v3888 = vshrl.u32 %v3887, 5
    %v3889 = vand.u32 %v3887, 31
    %v3890 = vsub.s32 32, %v3889
    %v3891 = vshrl.u32 683565275, %v3890
    %v3892 = vshll.u32 683565275, %v3889
    %v3893 = vshrl.u32 2475754826, %v3890
    %v3894 = vor.u32 %v3892, %v3893
    %v3895 = vshll.u32 2475754826, %v3889
    %v3896 = vshrl.u32 2131351028, %v3890
    %v3897 = vor.u32 %v3895, %v3896
    %v3898 = vshll.u32 2131351028, %v3889
    %v3899 = vshrl.u32 2102212464, %v3890
    %v3900 = vor.u32 %v3898, %v3899
    %v3901 = vshll.u32 2102212464, %v3889
    %v3902 = vshrl.u32 920167782, %v3890
    %v3903 = vor.u32 %v3901, %v3902
    %v3904 = vshll.u32 920167782, %v3889
    %v3905 = vshrl.u32 1326507024, %v3890
    %v3906 = vor.u32 %v3904, %v3905
    %vm3907 = vcmp.lt.s32.totalorder %v3888, 1
    %vm3908 = vcmp.lt.s32.totalorder %v3888, 2
    %vm3909 = vcmp.lt.s32.totalorder %v3888, 3
    %vm3910 = vcmp.lt.s32.totalorder %v3888, 4
    %v3911 = vsel %vm3907, %v3891, %v3894
    %v3912 = vsel %vm3910, %v3900, 2102212464
    %v3913 = vsel %vm3909, %v3897, %v3912
    %v3914 = vsel %vm3908, %v3911, %v3913
    %v3915 = vsel %vm3907, %v3894, %v3897
    %v3916 = vsel %vm3910, %v3903, 920167782
    %v3917 = vsel %vm3909, %v3900, %v3916
    %v3918 = vsel %vm3908, %v3915, %v3917
    %v3919 = vsel %vm3907, %v3897, %v3900
    %v3920 = vsel %vm3910, %v3906, 1326507024
    %v3921 = vsel %vm3909, %v3903, %v3920
    %v3922 = vsel %vm3908, %v3919, %v3921
    %v3923 = vshll.u32 %v3883, 8
    %v3924 = vmul.u32.u64.compose %v3923, %v3922
    %v3925 = vextract.low.u32 %v3924
    %v3926 = vextract.high.u32 %v3924
    %v3927 = vmul.u32.u64.compose %v3923, %v3918
    %v3928 = vextract.low.u32 %v3927
    %v3929 = vextract.high.u32 %v3927
    %v3930 = vmul.u32 %v3923, %v3914
    %v3931 = vadd.s32 %v3926, %v3928
    %vm3932 = vc.u32 %v3926, %v3928
    %v3933 = vadd.s32 %v3929, 1
    %v3934 = vsel %vm3932, %v3933, %v3929
    %v3935 = vadd.s32 %v3930, %v3934
    %v3936 = vadd.s32 %v3935, 536870912
    %v3937 = vshrl.u32 %v3936, 30
    %v3938 = vshll.u32 %v3937, 30
    %v3939 = vsub.s32 %v3935, %v3938
    %vm3940 = vcmp.lt.s32.totalorder %v3939, 0
    %v3941 = vsub.s32 0, %v3939
    %v3942 = vsel %vm3940, %v3941, %v3939
    %v3943 = vclz %v3942
    %v3944 = vsub.s32 %v3943, 2
    %vm3945 = vcmp.gt.s32.totalorder 0, %v3944
    %v3946 = vsel %vm3945, 0, %v3944
    %v3947 = vsub.s32 32, %v3946
    %v3948 = vshll.u32 %v3939, %v3946
    %v3949 = vshrl.u32 %v3931, %v3947
    %v3950 = vor.u32 %v3948, %v3949
    %v3951 = vsub.s32 4294967266, %v3946
    %v3952 = vadd.s32 %v3951, 127
    %v3953 = vshll.u32 %v3952, 23
    %v3954 = vor.u32 4788187, %v3953
    %v3955 = vand.u32 2147483647, %v3954
    %v3957 = vcvt.s32.f32 %v3950
    %v3958 = vmul.f32 %v3957, %v3955
    %v3959 = vxor.u32 %v3958, 2147483648
    %v3960 = vsel %vm3877, %v3959, %v3958
    %v3961 = vsub.s32 4, %v3937
    %v3962 = vsel %vm3877, %v3961, %v3937
    %v3963 = vsel %vm3876, %v3447, %v3960
    %v3964 = vsel %vm3876, 0, %v3962
    %v3965 = vcosq.f32.pop %v3963
    %v3966 = vsinq.f32.pop %v3963
    %vm3967 = vweird.f32 %v3447
    %v3968 = vadd.s32 %v3964, 3
    %v3969 = vand.u32 %v3968, 3
    %vm3970 = vcmp.lt.s32.totalorder %v3969, 2
    %vm3971 = vcmp.eq.s32.totalorder %v3969, 0
    %v3972 = vxor.u32 %v3966, 2147483648
    %v3973 = vsel %vm3971, %v3965, %v3972
    %vm3974 = vcmp.eq.s32.totalorder %v3969, 2
    %v3975 = vxor.u32 %v3965, 2147483648
    %v3976 = vsel %vm3974, %v3975, %v3966
    %v3977 = vsel %vm3970, %v3973, %v3976
    %v3978 = vsel %vm3967, nan, %v3977
    %v3979 = vand.u32 2147483647, %v3448
    %vm3980 = vcmp.le.f32.partialorder %v3979, 0.7853982
    %vm3981 = vcmp.lt.s32.totalorder %v3448, 0
    %v3982 = vand.u32 %v3448, 2139095040
    %v3983 = vshrl.u32 %v3982, 23
    %v3984 = vsub.s32 %v3983, 127
    %v3985 = vand.u32 2147483647, %v3448
    %v3986 = vand.u32 %v3985, 8388607
    %v3987 = vor.u32 %v3986, 8388608
    %v3988 = vsub.s32 0, %v3987
    %v3989 = vadd.s32 %v3984, 1
    %vm3990 = vcmp.gt.s32.totalorder %v3989, 0
    %v3991 = vsel %vm3990, %v3989, 0
    %v3992 = vshrl.u32 %v3991, 5
    %v3993 = vand.u32 %v3991, 31
    %v3994 = vsub.s32 32, %v3993
    %v3995 = vshrl.u32 683565275, %v3994
    %v3996 = vshll.u32 683565275, %v3993
    %v3997 = vshrl.u32 2475754826, %v3994
    %v3998 = vor.u32 %v3996, %v3997
    %v3999 = vshll.u32 2475754826, %v3993
    %v4000 = vshrl.u32 2131351028, %v3994
    %v4001 = vor.u32 %v3999, %v4000
    %v4002 = vshll.u32 2131351028, %v3993
    %v4003 = vshrl.u32 2102212464, %v3994
    %v4004 = vor.u32 %v4002, %v4003
    %v4005 = vshll.u32 2102212464, %v3993
    %v4006 = vshrl.u32 920167782, %v3994
    %v4007 = vor.u32 %v4005, %v4006
    %v4008 = vshll.u32 920167782, %v3993
    %v4009 = vshrl.u32 1326507024, %v3994
    %v4010 = vor.u32 %v4008, %v4009
    %vm4011 = vcmp.lt.s32.totalorder %v3992, 1
    %vm4012 = vcmp.lt.s32.totalorder %v3992, 2
    %vm4013 = vcmp.lt.s32.totalorder %v3992, 3
    %vm4014 = vcmp.lt.s32.totalorder %v3992, 4
    %v4015 = vsel %vm4011, %v3995, %v3998
    %v4016 = vsel %vm4014, %v4004, 2102212464
    %v4017 = vsel %vm4013, %v4001, %v4016
    %v4018 = vsel %vm4012, %v4015, %v4017
    %v4019 = vsel %vm4011, %v3998, %v4001
    %v4020 = vsel %vm4014, %v4007, 920167782
    %v4021 = vsel %vm4013, %v4004, %v4020
    %v4022 = vsel %vm4012, %v4019, %v4021
    %v4023 = vsel %vm4011, %v4001, %v4004
    %v4024 = vsel %vm4014, %v4010, 1326507024
    %v4025 = vsel %vm4013, %v4007, %v4024
    %v4026 = vsel %vm4012, %v4023, %v4025
    %v4027 = vshll.u32 %v3987, 8
    %v4028 = vmul.u32.u64.compose %v4027, %v4026
    %v4029 = vextract.low.u32 %v4028
    %v4030 = vextract.high.u32 %v4028
    %v4031 = vmul.u32.u64.compose %v4027, %v4022
    %v4032 = vextract.low.u32 %v4031
    %v4033 = vextract.high.u32 %v4031
    %v4034 = vmul.u32 %v4027, %v4018
    %v4035 = vadd.s32 %v4030, %v4032
    %vm4036 = vc.u32 %v4030, %v4032
    %v4037 = vadd.s32 %v4033, 1
    %v4038 = vsel %vm4036, %v4037, %v4033
    %v4039 = vadd.s32 %v4034, %v4038
    %v4040 = vadd.s32 %v4039, 536870912
    %v4041 = vshrl.u32 %v4040, 30
    %v4042 = vshll.u32 %v4041, 30
    %v4043 = vsub.s32 %v4039, %v4042
    %vm4044 = vcmp.lt.s32.totalorder %v4043, 0
    %v4045 = vsub.s32 0, %v4043
    %v4046 = vsel %vm4044, %v4045, %v4043
    %v4047 = vclz %v4046
    %v4048 = vsub.s32 %v4047, 2
    %vm4049 = vcmp.gt.s32.totalorder 0, %v4048
    %v4050 = vsel %vm4049, 0, %v4048
    %v4051 = vsub.s32 32, %v4050
    %v4052 = vshll.u32 %v4043, %v4050
    %v4053 = vshrl.u32 %v4035, %v4051
    %v4054 = vor.u32 %v4052, %v4053
    %v4055 = vsub.s32 4294967266, %v4050
    %v4056 = vadd.s32 %v4055, 127
    %v4057 = vshll.u32 %v4056, 23
    %v4058 = vor.u32 4788187, %v4057
    %v4059 = vand.u32 2147483647, %v4058
    %v4061 = vcvt.s32.f32 %v4054
    %v4062 = vmul.f32 %v4061, %v4059
    %v4063 = vxor.u32 %v4062, 2147483648
    %v4064 = vsel %vm3981, %v4063, %v4062
    %v4065 = vsub.s32 4, %v4041
    %v4066 = vsel %vm3981, %v4065, %v4041
    %v4067 = vsel %vm3980, %v3448, %v4064
    %v4068 = vsel %vm3980, 0, %v4066
    %v4069 = vcosq.f32.pop %v4067
    %v4070 = vsinq.f32.pop %v4067
    %vm4071 = vweird.f32 %v3448
    %v4072 = vadd.s32 %v4068, 3
    %v4073 = vand.u32 %v4072, 3
    %vm4074 = vcmp.lt.s32.totalorder %v4073, 2
    %vm4075 = vcmp.eq.s32.totalorder %v4073, 0
    %v4076 = vxor.u32 %v4070, 2147483648
    %v4077 = vsel %vm4075, %v4069, %v4076
    %vm4078 = vcmp.eq.s32.totalorder %v4073, 2
    %v4079 = vxor.u32 %v4069, 2147483648
    %v4080 = vsel %vm4078, %v4079, %v4070
    %v4081 = vsel %vm4074, %v4077, %v4080
    %v4082 = vsel %vm4071, nan, %v4081
    %v4083 = vand.u32 2147483647, %v3449
    %vm4084 = vcmp.le.f32.partialorder %v4083, 0.7853982
    %vm4085 = vcmp.lt.s32.totalorder %v3449, 0
    %v4086 = vand.u32 %v3449, 2139095040
    %v4087 = vshrl.u32 %v4086, 23
    %v4088 = vsub.s32 %v4087, 127
    %v4089 = vand.u32 2147483647, %v3449
    %v4090 = vand.u32 %v4089, 8388607
    %v4091 = vor.u32 %v4090, 8388608
    %v4092 = vsub.s32 0, %v4091
    %v4093 = vadd.s32 %v4088, 1
    %vm4094 = vcmp.gt.s32.totalorder %v4093, 0
    %v4095 = vsel %vm4094, %v4093, 0
    %v4096 = vshrl.u32 %v4095, 5
    %v4097 = vand.u32 %v4095, 31
    %v4098 = vsub.s32 32, %v4097
    %v4099 = vshrl.u32 683565275, %v4098
    %v4100 = vshll.u32 683565275, %v4097
    %v4101 = vshrl.u32 2475754826, %v4098
    %v4102 = vor.u32 %v4100, %v4101
    %v4103 = vshll.u32 2475754826, %v4097
    %v4104 = vshrl.u32 2131351028, %v4098
    %v4105 = vor.u32 %v4103, %v4104
    %v4106 = vshll.u32 2131351028, %v4097
    %v4107 = vshrl.u32 2102212464, %v4098
    %v4108 = vor.u32 %v4106, %v4107
    %v4109 = vshll.u32 2102212464, %v4097
    %v4110 = vshrl.u32 920167782, %v4098
    %v4111 = vor.u32 %v4109, %v4110
    %v4112 = vshll.u32 920167782, %v4097
    %v4113 = vshrl.u32 1326507024, %v4098
    %v4114 = vor.u32 %v4112, %v4113
    %vm4115 = vcmp.lt.s32.totalorder %v4096, 1
    %vm4116 = vcmp.lt.s32.totalorder %v4096, 2
    %vm4117 = vcmp.lt.s32.totalorder %v4096, 3
    %vm4118 = vcmp.lt.s32.totalorder %v4096, 4
    %v4119 = vsel %vm4115, %v4099, %v4102
    %v4120 = vsel %vm4118, %v4108, 2102212464
    %v4121 = vsel %vm4117, %v4105, %v4120
    %v4122 = vsel %vm4116, %v4119, %v4121
    %v4123 = vsel %vm4115, %v4102, %v4105
    %v4124 = vsel %vm4118, %v4111, 920167782
    %v4125 = vsel %vm4117, %v4108, %v4124
    %v4126 = vsel %vm4116, %v4123, %v4125
    %v4127 = vsel %vm4115, %v4105, %v4108
    %v4128 = vsel %vm4118, %v4114, 1326507024
    %v4129 = vsel %vm4117, %v4111, %v4128
    %v4130 = vsel %vm4116, %v4127, %v4129
    %v4131 = vshll.u32 %v4091, 8
    %v4132 = vmul.u32.u64.compose %v4131, %v4130
    %v4133 = vextract.low.u32 %v4132
    %v4134 = vextract.high.u32 %v4132
    %v4135 = vmul.u32.u64.compose %v4131, %v4126
    %v4136 = vextract.low.u32 %v4135
    %v4137 = vextract.high.u32 %v4135
    %v4138 = vmul.u32 %v4131, %v4122
    %v4139 = vadd.s32 %v4134, %v4136
    %vm4140 = vc.u32 %v4134, %v4136
    %v4141 = vadd.s32 %v4137, 1
    %v4142 = vsel %vm4140, %v4141, %v4137
    %v4143 = vadd.s32 %v4138, %v4142
    %v4144 = vadd.s32 %v4143, 536870912
    %v4145 = vshrl.u32 %v4144, 30
    %v4146 = vshll.u32 %v4145, 30
    %v4147 = vsub.s32 %v4143, %v4146
    %vm4148 = vcmp.lt.s32.totalorder %v4147, 0
    %v4149 = vsub.s32 0, %v4147
    %v4150 = vsel %vm4148, %v4149, %v4147
    %v4151 = vclz %v4150
    %v4152 = vsub.s32 %v4151, 2
    %vm4153 = vcmp.gt.s32.totalorder 0, %v4152
    %v4154 = vsel %vm4153, 0, %v4152
    %v4155 = vsub.s32 32, %v4154
    %v4156 = vshll.u32 %v4147, %v4154
    %v4157 = vshrl.u32 %v4139, %v4155
    %v4158 = vor.u32 %v4156, %v4157
    %v4159 = vsub.s32 4294967266, %v4154
    %v4160 = vadd.s32 %v4159, 127
    %v4161 = vshll.u32 %v4160, 23
    %v4162 = vor.u32 4788187, %v4161
    %v4163 = vand.u32 2147483647, %v4162
    %v4165 = vcvt.s32.f32 %v4158
    %v4166 = vmul.f32 %v4165, %v4163
    %v4167 = vxor.u32 %v4166, 2147483648
    %v4168 = vsel %vm4085, %v4167, %v4166
    %v4169 = vsub.s32 4, %v4145
    %v4170 = vsel %vm4085, %v4169, %v4145
    %v4171 = vsel %vm4084, %v3449, %v4168
    %v4172 = vsel %vm4084, 0, %v4170
    %v4173 = vcosq.f32.pop %v4171
    %v4174 = vsinq.f32.pop %v4171
    %vm4175 = vweird.f32 %v3449
    %v4176 = vadd.s32 %v4172, 3
    %v4177 = vand.u32 %v4176, 3
    %vm4178 = vcmp.lt.s32.totalorder %v4177, 2
    %vm4179 = vcmp.eq.s32.totalorder %v4177, 0
    %v4180 = vxor.u32 %v4174, 2147483648
    %v4181 = vsel %vm4179, %v4173, %v4180
    %vm4182 = vcmp.eq.s32.totalorder %v4177, 2
    %v4183 = vxor.u32 %v4173, 2147483648
    %v4184 = vsel %vm4182, %v4183, %v4174
    %v4185 = vsel %vm4178, %v4181, %v4184
    %v4186 = vsel %vm4175, nan, %v4185
    %v4187 = vand.u32 2147483647, %v3450
    %vm4188 = vcmp.le.f32.partialorder %v4187, 0.7853982
    %vm4189 = vcmp.lt.s32.totalorder %v3450, 0
    %v4190 = vand.u32 %v3450, 2139095040
    %v4191 = vshrl.u32 %v4190, 23
    %v4192 = vsub.s32 %v4191, 127
    %v4193 = vand.u32 2147483647, %v3450
    %v4194 = vand.u32 %v4193, 8388607
    %v4195 = vor.u32 %v4194, 8388608
    %v4196 = vsub.s32 0, %v4195
    %v4197 = vadd.s32 %v4192, 1
    %vm4198 = vcmp.gt.s32.totalorder %v4197, 0
    %v4199 = vsel %vm4198, %v4197, 0
    %v4200 = vshrl.u32 %v4199, 5
    %v4201 = vand.u32 %v4199, 31
    %v4202 = vsub.s32 32, %v4201
    %v4203 = vshrl.u32 683565275, %v4202
    %v4204 = vshll.u32 683565275, %v4201
    %v4205 = vshrl.u32 2475754826, %v4202
    %v4206 = vor.u32 %v4204, %v4205
    %v4207 = vshll.u32 2475754826, %v4201
    %v4208 = vshrl.u32 2131351028, %v4202
    %v4209 = vor.u32 %v4207, %v4208
    %v4210 = vshll.u32 2131351028, %v4201
    %v4211 = vshrl.u32 2102212464, %v4202
    %v4212 = vor.u32 %v4210, %v4211
    %v4213 = vshll.u32 2102212464, %v4201
    %v4214 = vshrl.u32 920167782, %v4202
    %v4215 = vor.u32 %v4213, %v4214
    %v4216 = vshll.u32 920167782, %v4201
    %v4217 = vshrl.u32 1326507024, %v4202
    %v4218 = vor.u32 %v4216, %v4217
    %vm4219 = vcmp.lt.s32.totalorder %v4200, 1
    %vm4220 = vcmp.lt.s32.totalorder %v4200, 2
    %vm4221 = vcmp.lt.s32.totalorder %v4200, 3
    %vm4222 = vcmp.lt.s32.totalorder %v4200, 4
    %v4223 = vsel %vm4219, %v4203, %v4206
    %v4224 = vsel %vm4222, %v4212, 2102212464
    %v4225 = vsel %vm4221, %v4209, %v4224
    %v4226 = vsel %vm4220, %v4223, %v4225
    %v4227 = vsel %vm4219, %v4206, %v4209
    %v4228 = vsel %vm4222, %v4215, 920167782
    %v4229 = vsel %vm4221, %v4212, %v4228
    %v4230 = vsel %vm4220, %v4227, %v4229
    %v4231 = vsel %vm4219, %v4209, %v4212
    %v4232 = vsel %vm4222, %v4218, 1326507024
    %v4233 = vsel %vm4221, %v4215, %v4232
    %v4234 = vsel %vm4220, %v4231, %v4233
    %v4235 = vshll.u32 %v4195, 8
    %v4236 = vmul.u32.u64.compose %v4235, %v4234
    %v4237 = vextract.low.u32 %v4236
    %v4238 = vextract.high.u32 %v4236
    %v4239 = vmul.u32.u64.compose %v4235, %v4230
    %v4240 = vextract.low.u32 %v4239
    %v4241 = vextract.high.u32 %v4239
    %v4242 = vmul.u32 %v4235, %v4226
    %v4243 = vadd.s32 %v4238, %v4240
    %vm4244 = vc.u32 %v4238, %v4240
    %v4245 = vadd.s32 %v4241, 1
    %v4246 = vsel %vm4244, %v4245, %v4241
    %v4247 = vadd.s32 %v4242, %v4246
    %v4248 = vadd.s32 %v4247, 536870912
    %v4249 = vshrl.u32 %v4248, 30
    %v4250 = vshll.u32 %v4249, 30
    %v4251 = vsub.s32 %v4247, %v4250
    %vm4252 = vcmp.lt.s32.totalorder %v4251, 0
    %v4253 = vsub.s32 0, %v4251
    %v4254 = vsel %vm4252, %v4253, %v4251
    %v4255 = vclz %v4254
    %v4256 = vsub.s32 %v4255, 2
    %vm4257 = vcmp.gt.s32.totalorder 0, %v4256
    %v4258 = vsel %vm4257, 0, %v4256
    %v4259 = vsub.s32 32, %v4258
    %v4260 = vshll.u32 %v4251, %v4258
    %v4261 = vshrl.u32 %v4243, %v4259
    %v4262 = vor.u32 %v4260, %v4261
    %v4263 = vsub.s32 4294967266, %v4258
    %v4264 = vadd.s32 %v4263, 127
    %v4265 = vshll.u32 %v4264, 23
    %v4266 = vor.u32 4788187, %v4265
    %v4267 = vand.u32 2147483647, %v4266
    %v4269 = vcvt.s32.f32 %v4262
    %v4270 = vmul.f32 %v4269, %v4267
    %v4271 = vxor.u32 %v4270, 2147483648
    %v4272 = vsel %vm4189, %v4271, %v4270
    %v4273 = vsub.s32 4, %v4249
    %v4274 = vsel %vm4189, %v4273, %v4249
    %v4275 = vsel %vm4188, %v3450, %v4272
    %v4276 = vsel %vm4188, 0, %v4274
    %v4277 = vcosq.f32.pop %v4275
    %v4278 = vsinq.f32.pop %v4275
    %vm4279 = vweird.f32 %v3450
    %v4280 = vadd.s32 %v4276, 3
    %v4281 = vand.u32 %v4280, 3
    %vm4282 = vcmp.lt.s32.totalorder %v4281, 2
    %vm4283 = vcmp.eq.s32.totalorder %v4281, 0
    %v4284 = vxor.u32 %v4278, 2147483648
    %v4285 = vsel %vm4283, %v4277, %v4284
    %vm4286 = vcmp.eq.s32.totalorder %v4281, 2
    %v4287 = vxor.u32 %v4277, 2147483648
    %v4288 = vsel %vm4286, %v4287, %v4278
    %v4289 = vsel %vm4282, %v4285, %v4288
    %v4290 = vsel %vm4279, nan, %v4289
    %v4291 = vand.u32 2147483647, %v3451
    %vm4292 = vcmp.le.f32.partialorder %v4291, 0.7853982
    %vm4293 = vcmp.lt.s32.totalorder %v3451, 0
    %v4294 = vand.u32 %v3451, 2139095040
    %v4295 = vshrl.u32 %v4294, 23
    %v4296 = vsub.s32 %v4295, 127
    %v4297 = vand.u32 2147483647, %v3451
    %v4298 = vand.u32 %v4297, 8388607
    %v4299 = vor.u32 %v4298, 8388608
    %v4300 = vsub.s32 0, %v4299
    %v4301 = vadd.s32 %v4296, 1
    %vm4302 = vcmp.gt.s32.totalorder %v4301, 0
    %v4303 = vsel %vm4302, %v4301, 0
    %v4304 = vshrl.u32 %v4303, 5
    %v4305 = vand.u32 %v4303, 31
    %v4306 = vsub.s32 32, %v4305
    %v4307 = vshrl.u32 683565275, %v4306
    %v4308 = vshll.u32 683565275, %v4305
    %v4309 = vshrl.u32 2475754826, %v4306
    %v4310 = vor.u32 %v4308, %v4309
    %v4311 = vshll.u32 2475754826, %v4305
    %v4312 = vshrl.u32 2131351028, %v4306
    %v4313 = vor.u32 %v4311, %v4312
    %v4314 = vshll.u32 2131351028, %v4305
    %v4315 = vshrl.u32 2102212464, %v4306
    %v4316 = vor.u32 %v4314, %v4315
    %v4317 = vshll.u32 2102212464, %v4305
    %v4318 = vshrl.u32 920167782, %v4306
    %v4319 = vor.u32 %v4317, %v4318
    %v4320 = vshll.u32 920167782, %v4305
    %v4321 = vshrl.u32 1326507024, %v4306
    %v4322 = vor.u32 %v4320, %v4321
    %vm4323 = vcmp.lt.s32.totalorder %v4304, 1
    %vm4324 = vcmp.lt.s32.totalorder %v4304, 2
    %vm4325 = vcmp.lt.s32.totalorder %v4304, 3
    %vm4326 = vcmp.lt.s32.totalorder %v4304, 4
    %v4327 = vsel %vm4323, %v4307, %v4310
    %v4328 = vsel %vm4326, %v4316, 2102212464
    %v4329 = vsel %vm4325, %v4313, %v4328
    %v4330 = vsel %vm4324, %v4327, %v4329
    %v4331 = vsel %vm4323, %v4310, %v4313
    %v4332 = vsel %vm4326, %v4319, 920167782
    %v4333 = vsel %vm4325, %v4316, %v4332
    %v4334 = vsel %vm4324, %v4331, %v4333
    %v4335 = vsel %vm4323, %v4313, %v4316
    %v4336 = vsel %vm4326, %v4322, 1326507024
    %v4337 = vsel %vm4325, %v4319, %v4336
    %v4338 = vsel %vm4324, %v4335, %v4337
    %v4339 = vshll.u32 %v4299, 8
    %v4340 = vmul.u32.u64.compose %v4339, %v4338
    %v4341 = vextract.low.u32 %v4340
    %v4342 = vextract.high.u32 %v4340
    %v4343 = vmul.u32.u64.compose %v4339, %v4334
    %v4344 = vextract.low.u32 %v4343
    %v4345 = vextract.high.u32 %v4343
    %v4346 = vmul.u32 %v4339, %v4330
    %v4347 = vadd.s32 %v4342, %v4344
    %vm4348 = vc.u32 %v4342, %v4344
    %v4349 = vadd.s32 %v4345, 1
    %v4350 = vsel %vm4348, %v4349, %v4345
    %v4351 = vadd.s32 %v4346, %v4350
    %v4352 = vadd.s32 %v4351, 536870912
    %v4353 = vshrl.u32 %v4352, 30
    %v4354 = vshll.u32 %v4353, 30
    %v4355 = vsub.s32 %v4351, %v4354
    %vm4356 = vcmp.lt.s32.totalorder %v4355, 0
    %v4357 = vsub.s32 0, %v4355
    %v4358 = vsel %vm4356, %v4357, %v4355
    %v4359 = vclz %v4358
    %v4360 = vsub.s32 %v4359, 2
    %vm4361 = vcmp.gt.s32.totalorder 0, %v4360
    %v4362 = vsel %vm4361, 0, %v4360
    %v4363 = vsub.s32 32, %v4362
    %v4364 = vshll.u32 %v4355, %v4362
    %v4365 = vshrl.u32 %v4347, %v4363
    %v4366 = vor.u32 %v4364, %v4365
    %v4367 = vsub.s32 4294967266, %v4362
    %v4368 = vadd.s32 %v4367, 127
    %v4369 = vshll.u32 %v4368, 23
    %v4370 = vor.u32 4788187, %v4369
    %v4371 = vand.u32 2147483647, %v4370
    %v4373 = vcvt.s32.f32 %v4366
    %v4374 = vmul.f32 %v4373, %v4371
    %v4375 = vxor.u32 %v4374, 2147483648
    %v4376 = vsel %vm4293, %v4375, %v4374
    %v4377 = vsub.s32 4, %v4353
    %v4378 = vsel %vm4293, %v4377, %v4353
    %v4379 = vsel %vm4292, %v3451, %v4376
    %v4380 = vsel %vm4292, 0, %v4378
    %v4381 = vcosq.f32.pop %v4379
    %v4382 = vsinq.f32.pop %v4379
    %vm4383 = vweird.f32 %v3451
    %v4384 = vadd.s32 %v4380, 3
    %v4385 = vand.u32 %v4384, 3
    %vm4386 = vcmp.lt.s32.totalorder %v4385, 2
    %vm4387 = vcmp.eq.s32.totalorder %v4385, 0
    %v4388 = vxor.u32 %v4382, 2147483648
    %v4389 = vsel %vm4387, %v4381, %v4388
    %vm4390 = vcmp.eq.s32.totalorder %v4385, 2
    %v4391 = vxor.u32 %v4381, 2147483648
    %v4392 = vsel %vm4390, %v4391, %v4382
    %v4393 = vsel %vm4386, %v4389, %v4392
    %v4394 = vsel %vm4383, nan, %v4393
    %v4395 = vand.u32 2147483647, %v3452
    %vm4396 = vcmp.le.f32.partialorder %v4395, 0.7853982
    %vm4397 = vcmp.lt.s32.totalorder %v3452, 0
    %v4398 = vand.u32 %v3452, 2139095040
    %v4399 = vshrl.u32 %v4398, 23
    %v4400 = vsub.s32 %v4399, 127
    %v4401 = vand.u32 2147483647, %v3452
    %v4402 = vand.u32 %v4401, 8388607
    %v4403 = vor.u32 %v4402, 8388608
    %v4404 = vsub.s32 0, %v4403
    %v4405 = vadd.s32 %v4400, 1
    %vm4406 = vcmp.gt.s32.totalorder %v4405, 0
    %v4407 = vsel %vm4406, %v4405, 0
    %v4408 = vshrl.u32 %v4407, 5
    %v4409 = vand.u32 %v4407, 31
    %v4410 = vsub.s32 32, %v4409
    %v4411 = vshrl.u32 683565275, %v4410
    %v4412 = vshll.u32 683565275, %v4409
    %v4413 = vshrl.u32 2475754826, %v4410
    %v4414 = vor.u32 %v4412, %v4413
    %v4415 = vshll.u32 2475754826, %v4409
    %v4416 = vshrl.u32 2131351028, %v4410
    %v4417 = vor.u32 %v4415, %v4416
    %v4418 = vshll.u32 2131351028, %v4409
    %v4419 = vshrl.u32 2102212464, %v4410
    %v4420 = vor.u32 %v4418, %v4419
    %v4421 = vshll.u32 2102212464, %v4409
    %v4422 = vshrl.u32 920167782, %v4410
    %v4423 = vor.u32 %v4421, %v4422
    %v4424 = vshll.u32 920167782, %v4409
    %v4425 = vshrl.u32 1326507024, %v4410
    %v4426 = vor.u32 %v4424, %v4425
    %vm4427 = vcmp.lt.s32.totalorder %v4408, 1
    %vm4428 = vcmp.lt.s32.totalorder %v4408, 2
    %vm4429 = vcmp.lt.s32.totalorder %v4408, 3
    %vm4430 = vcmp.lt.s32.totalorder %v4408, 4
    %v4431 = vsel %vm4427, %v4411, %v4414
    %v4432 = vsel %vm4430, %v4420, 2102212464
    %v4433 = vsel %vm4429, %v4417, %v4432
    %v4434 = vsel %vm4428, %v4431, %v4433
    %v4435 = vsel %vm4427, %v4414, %v4417
    %v4436 = vsel %vm4430, %v4423, 920167782
    %v4437 = vsel %vm4429, %v4420, %v4436
    %v4438 = vsel %vm4428, %v4435, %v4437
    %v4439 = vsel %vm4427, %v4417, %v4420
    %v4440 = vsel %vm4430, %v4426, 1326507024
    %v4441 = vsel %vm4429, %v4423, %v4440
    %v4442 = vsel %vm4428, %v4439, %v4441
    %v4443 = vshll.u32 %v4403, 8
    %v4444 = vmul.u32.u64.compose %v4443, %v4442
    %v4445 = vextract.low.u32 %v4444
    %v4446 = vextract.high.u32 %v4444
    %v4447 = vmul.u32.u64.compose %v4443, %v4438
    %v4448 = vextract.low.u32 %v4447
    %v4449 = vextract.high.u32 %v4447
    %v4450 = vmul.u32 %v4443, %v4434
    %v4451 = vadd.s32 %v4446, %v4448
    %vm4452 = vc.u32 %v4446, %v4448
    %v4453 = vadd.s32 %v4449, 1
    %v4454 = vsel %vm4452, %v4453, %v4449
    %v4455 = vadd.s32 %v4450, %v4454
    %v4456 = vadd.s32 %v4455, 536870912
    %v4457 = vshrl.u32 %v4456, 30
    %v4458 = vshll.u32 %v4457, 30
    %v4459 = vsub.s32 %v4455, %v4458
    %vm4460 = vcmp.lt.s32.totalorder %v4459, 0
    %v4461 = vsub.s32 0, %v4459
    %v4462 = vsel %vm4460, %v4461, %v4459
    %v4463 = vclz %v4462
    %v4464 = vsub.s32 %v4463, 2
    %vm4465 = vcmp.gt.s32.totalorder 0, %v4464
    %v4466 = vsel %vm4465, 0, %v4464
    %v4467 = vsub.s32 32, %v4466
    %v4468 = vshll.u32 %v4459, %v4466
    %v4469 = vshrl.u32 %v4451, %v4467
    %v4470 = vor.u32 %v4468, %v4469
    %v4471 = vsub.s32 4294967266, %v4466
    %v4472 = vadd.s32 %v4471, 127
    %v4473 = vshll.u32 %v4472, 23
    %v4474 = vor.u32 4788187, %v4473
    %v4475 = vand.u32 2147483647, %v4474
    %v4477 = vcvt.s32.f32 %v4470
    %v4478 = vmul.f32 %v4477, %v4475
    %v4479 = vxor.u32 %v4478, 2147483648
    %v4480 = vsel %vm4397, %v4479, %v4478
    %v4481 = vsub.s32 4, %v4457
    %v4482 = vsel %vm4397, %v4481, %v4457
    %v4483 = vsel %vm4396, %v3452, %v4480
    %v4484 = vsel %vm4396, 0, %v4482
    %v4485 = vcosq.f32.pop %v4483
    %v4486 = vsinq.f32.pop %v4483
    %vm4487 = vweird.f32 %v3452
    %v4488 = vadd.s32 %v4484, 3
    %v4489 = vand.u32 %v4488, 3
    %vm4490 = vcmp.lt.s32.totalorder %v4489, 2
    %vm4491 = vcmp.eq.s32.totalorder %v4489, 0
    %v4492 = vxor.u32 %v4486, 2147483648
    %v4493 = vsel %vm4491, %v4485, %v4492
    %vm4494 = vcmp.eq.s32.totalorder %v4489, 2
    %v4495 = vxor.u32 %v4485, 2147483648
    %v4496 = vsel %vm4494, %v4495, %v4486
    %v4497 = vsel %vm4490, %v4493, %v4496
    %v4498 = vsel %vm4487, nan, %v4497
    %v4499 = vand.u32 2147483647, %v3453
    %vm4500 = vcmp.le.f32.partialorder %v4499, 0.7853982
    %vm4501 = vcmp.lt.s32.totalorder %v3453, 0
    %v4502 = vand.u32 %v3453, 2139095040
    %v4503 = vshrl.u32 %v4502, 23
    %v4504 = vsub.s32 %v4503, 127
    %v4505 = vand.u32 2147483647, %v3453
    %v4506 = vand.u32 %v4505, 8388607
    %v4507 = vor.u32 %v4506, 8388608
    %v4508 = vsub.s32 0, %v4507
    %v4509 = vadd.s32 %v4504, 1
    %vm4510 = vcmp.gt.s32.totalorder %v4509, 0
    %v4511 = vsel %vm4510, %v4509, 0
    %v4512 = vshrl.u32 %v4511, 5
    %v4513 = vand.u32 %v4511, 31
    %v4514 = vsub.s32 32, %v4513
    %v4515 = vshrl.u32 683565275, %v4514
    %v4516 = vshll.u32 683565275, %v4513
    %v4517 = vshrl.u32 2475754826, %v4514
    %v4518 = vor.u32 %v4516, %v4517
    %v4519 = vshll.u32 2475754826, %v4513
    %v4520 = vshrl.u32 2131351028, %v4514
    %v4521 = vor.u32 %v4519, %v4520
    %v4522 = vshll.u32 2131351028, %v4513
    %v4523 = vshrl.u32 2102212464, %v4514
    %v4524 = vor.u32 %v4522, %v4523
    %v4525 = vshll.u32 2102212464, %v4513
    %v4526 = vshrl.u32 920167782, %v4514
    %v4527 = vor.u32 %v4525, %v4526
    %v4528 = vshll.u32 920167782, %v4513
    %v4529 = vshrl.u32 1326507024, %v4514
    %v4530 = vor.u32 %v4528, %v4529
    %vm4531 = vcmp.lt.s32.totalorder %v4512, 1
    %vm4532 = vcmp.lt.s32.totalorder %v4512, 2
    %vm4533 = vcmp.lt.s32.totalorder %v4512, 3
    %vm4534 = vcmp.lt.s32.totalorder %v4512, 4
    %v4535 = vsel %vm4531, %v4515, %v4518
    %v4536 = vsel %vm4534, %v4524, 2102212464
    %v4537 = vsel %vm4533, %v4521, %v4536
    %v4538 = vsel %vm4532, %v4535, %v4537
    %v4539 = vsel %vm4531, %v4518, %v4521
    %v4540 = vsel %vm4534, %v4527, 920167782
    %v4541 = vsel %vm4533, %v4524, %v4540
    %v4542 = vsel %vm4532, %v4539, %v4541
    %v4543 = vsel %vm4531, %v4521, %v4524
    %v4544 = vsel %vm4534, %v4530, 1326507024
    %v4545 = vsel %vm4533, %v4527, %v4544
    %v4546 = vsel %vm4532, %v4543, %v4545
    %v4547 = vshll.u32 %v4507, 8
    %v4548 = vmul.u32.u64.compose %v4547, %v4546
    %v4549 = vextract.low.u32 %v4548
    %v4550 = vextract.high.u32 %v4548
    %v4551 = vmul.u32.u64.compose %v4547, %v4542
    %v4552 = vextract.low.u32 %v4551
    %v4553 = vextract.high.u32 %v4551
    %v4554 = vmul.u32 %v4547, %v4538
    %v4555 = vadd.s32 %v4550, %v4552
    %vm4556 = vc.u32 %v4550, %v4552
    %v4557 = vadd.s32 %v4553, 1
    %v4558 = vsel %vm4556, %v4557, %v4553
    %v4559 = vadd.s32 %v4554, %v4558
    %v4560 = vadd.s32 %v4559, 536870912
    %v4561 = vshrl.u32 %v4560, 30
    %v4562 = vshll.u32 %v4561, 30
    %v4563 = vsub.s32 %v4559, %v4562
    %vm4564 = vcmp.lt.s32.totalorder %v4563, 0
    %v4565 = vsub.s32 0, %v4563
    %v4566 = vsel %vm4564, %v4565, %v4563
    %v4567 = vclz %v4566
    %v4568 = vsub.s32 %v4567, 2
    %vm4569 = vcmp.gt.s32.totalorder 0, %v4568
    %v4570 = vsel %vm4569, 0, %v4568
    %v4571 = vsub.s32 32, %v4570
    %v4572 = vshll.u32 %v4563, %v4570
    %v4573 = vshrl.u32 %v4555, %v4571
    %v4574 = vor.u32 %v4572, %v4573
    %v4575 = vsub.s32 4294967266, %v4570
    %v4576 = vadd.s32 %v4575, 127
    %v4577 = vshll.u32 %v4576, 23
    %v4578 = vor.u32 4788187, %v4577
    %v4579 = vand.u32 2147483647, %v4578
    %v4581 = vcvt.s32.f32 %v4574
    %v4582 = vmul.f32 %v4581, %v4579
    %v4583 = vxor.u32 %v4582, 2147483648
    %v4584 = vsel %vm4501, %v4583, %v4582
    %v4585 = vsub.s32 4, %v4561
    %v4586 = vsel %vm4501, %v4585, %v4561
    %v4587 = vsel %vm4500, %v3453, %v4584
    %v4588 = vsel %vm4500, 0, %v4586
    %v4589 = vcosq.f32.pop %v4587
    %v4590 = vsinq.f32.pop %v4587
    %vm4591 = vweird.f32 %v3453
    %v4592 = vadd.s32 %v4588, 3
    %v4593 = vand.u32 %v4592, 3
    %vm4594 = vcmp.lt.s32.totalorder %v4593, 2
    %vm4595 = vcmp.eq.s32.totalorder %v4593, 0
    %v4596 = vxor.u32 %v4590, 2147483648
    %v4597 = vsel %vm4595, %v4589, %v4596
    %vm4598 = vcmp.eq.s32.totalorder %v4593, 2
    %v4599 = vxor.u32 %v4589, 2147483648
    %v4600 = vsel %vm4598, %v4599, %v4590
    %v4601 = vsel %vm4594, %v4597, %v4600
    %v4602 = vsel %vm4591, nan, %v4601
    %v4603 = vand.u32 2147483647, %v3454
    %vm4604 = vcmp.le.f32.partialorder %v4603, 0.7853982
    %vm4605 = vcmp.lt.s32.totalorder %v3454, 0
    %v4606 = vand.u32 %v3454, 2139095040
    %v4607 = vshrl.u32 %v4606, 23
    %v4608 = vsub.s32 %v4607, 127
    %v4609 = vand.u32 2147483647, %v3454
    %v4610 = vand.u32 %v4609, 8388607
    %v4611 = vor.u32 %v4610, 8388608
    %v4612 = vsub.s32 0, %v4611
    %v4613 = vadd.s32 %v4608, 1
    %vm4614 = vcmp.gt.s32.totalorder %v4613, 0
    %v4615 = vsel %vm4614, %v4613, 0
    %v4616 = vshrl.u32 %v4615, 5
    %v4617 = vand.u32 %v4615, 31
    %v4618 = vsub.s32 32, %v4617
    %v4619 = vshrl.u32 683565275, %v4618
    %v4620 = vshll.u32 683565275, %v4617
    %v4621 = vshrl.u32 2475754826, %v4618
    %v4622 = vor.u32 %v4620, %v4621
    %v4623 = vshll.u32 2475754826, %v4617
    %v4624 = vshrl.u32 2131351028, %v4618
    %v4625 = vor.u32 %v4623, %v4624
    %v4626 = vshll.u32 2131351028, %v4617
    %v4627 = vshrl.u32 2102212464, %v4618
    %v4628 = vor.u32 %v4626, %v4627
    %v4629 = vshll.u32 2102212464, %v4617
    %v4630 = vshrl.u32 920167782, %v4618
    %v4631 = vor.u32 %v4629, %v4630
    %v4632 = vshll.u32 920167782, %v4617
    %v4633 = vshrl.u32 1326507024, %v4618
    %v4634 = vor.u32 %v4632, %v4633
    %vm4635 = vcmp.lt.s32.totalorder %v4616, 1
    %vm4636 = vcmp.lt.s32.totalorder %v4616, 2
    %vm4637 = vcmp.lt.s32.totalorder %v4616, 3
    %vm4638 = vcmp.lt.s32.totalorder %v4616, 4
    %v4639 = vsel %vm4635, %v4619, %v4622
    %v4640 = vsel %vm4638, %v4628, 2102212464
    %v4641 = vsel %vm4637, %v4625, %v4640
    %v4642 = vsel %vm4636, %v4639, %v4641
    %v4643 = vsel %vm4635, %v4622, %v4625
    %v4644 = vsel %vm4638, %v4631, 920167782
    %v4645 = vsel %vm4637, %v4628, %v4644
    %v4646 = vsel %vm4636, %v4643, %v4645
    %v4647 = vsel %vm4635, %v4625, %v4628
    %v4648 = vsel %vm4638, %v4634, 1326507024
    %v4649 = vsel %vm4637, %v4631, %v4648
    %v4650 = vsel %vm4636, %v4647, %v4649
    %v4651 = vshll.u32 %v4611, 8
    %v4652 = vmul.u32.u64.compose %v4651, %v4650
    %v4653 = vextract.low.u32 %v4652
    %v4654 = vextract.high.u32 %v4652
    %v4655 = vmul.u32.u64.compose %v4651, %v4646
    %v4656 = vextract.low.u32 %v4655
    %v4657 = vextract.high.u32 %v4655
    %v4658 = vmul.u32 %v4651, %v4642
    %v4659 = vadd.s32 %v4654, %v4656
    %vm4660 = vc.u32 %v4654, %v4656
    %v4661 = vadd.s32 %v4657, 1
    %v4662 = vsel %vm4660, %v4661, %v4657
    %v4663 = vadd.s32 %v4658, %v4662
    %v4664 = vadd.s32 %v4663, 536870912
    %v4665 = vshrl.u32 %v4664, 30
    %v4666 = vshll.u32 %v4665, 30
    %v4667 = vsub.s32 %v4663, %v4666
    %vm4668 = vcmp.lt.s32.totalorder %v4667, 0
    %v4669 = vsub.s32 0, %v4667
    %v4670 = vsel %vm4668, %v4669, %v4667
    %v4671 = vclz %v4670
    %v4672 = vsub.s32 %v4671, 2
    %vm4673 = vcmp.gt.s32.totalorder 0, %v4672
    %v4674 = vsel %vm4673, 0, %v4672
    %v4675 = vsub.s32 32, %v4674
    %v4676 = vshll.u32 %v4667, %v4674
    %v4677 = vshrl.u32 %v4659, %v4675
    %v4678 = vor.u32 %v4676, %v4677
    %v4679 = vsub.s32 4294967266, %v4674
    %v4680 = vadd.s32 %v4679, 127
    %v4681 = vshll.u32 %v4680, 23
    %v4682 = vor.u32 4788187, %v4681
    %v4683 = vand.u32 2147483647, %v4682
    %v4685 = vcvt.s32.f32 %v4678
    %v4686 = vmul.f32 %v4685, %v4683
    %v4687 = vxor.u32 %v4686, 2147483648
    %v4688 = vsel %vm4605, %v4687, %v4686
    %v4689 = vsub.s32 4, %v4665
    %v4690 = vsel %vm4605, %v4689, %v4665
    %v4691 = vsel %vm4604, %v3454, %v4688
    %v4692 = vsel %vm4604, 0, %v4690
    %v4693 = vcosq.f32.pop %v4691
    %v4694 = vsinq.f32.pop %v4691
    %vm4695 = vweird.f32 %v3454
    %v4696 = vadd.s32 %v4692, 3
    %v4697 = vand.u32 %v4696, 3
    %vm4698 = vcmp.lt.s32.totalorder %v4697, 2
    %vm4699 = vcmp.eq.s32.totalorder %v4697, 0
    %v4700 = vxor.u32 %v4694, 2147483648
    %v4701 = vsel %vm4699, %v4693, %v4700
    %vm4702 = vcmp.eq.s32.totalorder %v4697, 2
    %v4703 = vxor.u32 %v4693, 2147483648
    %v4704 = vsel %vm4702, %v4703, %v4694
    %v4705 = vsel %vm4698, %v4701, %v4704
    %v4706 = vsel %vm4695, nan, %v4705
    %v4707 = vand.u32 2147483647, %v3455
    %vm4708 = vcmp.le.f32.partialorder %v4707, 0.7853982
    %vm4709 = vcmp.lt.s32.totalorder %v3455, 0
    %v4710 = vand.u32 %v3455, 2139095040
    %v4711 = vshrl.u32 %v4710, 23
    %v4712 = vsub.s32 %v4711, 127
    %v4713 = vand.u32 2147483647, %v3455
    %v4714 = vand.u32 %v4713, 8388607
    %v4715 = vor.u32 %v4714, 8388608
    %v4716 = vsub.s32 0, %v4715
    %v4717 = vadd.s32 %v4712, 1
    %vm4718 = vcmp.gt.s32.totalorder %v4717, 0
    %v4719 = vsel %vm4718, %v4717, 0
    %v4720 = vshrl.u32 %v4719, 5
    %v4721 = vand.u32 %v4719, 31
    %v4722 = vsub.s32 32, %v4721
    %v4723 = vshrl.u32 683565275, %v4722
    %v4724 = vshll.u32 683565275, %v4721
    %v4725 = vshrl.u32 2475754826, %v4722
    %v4726 = vor.u32 %v4724, %v4725
    %v4727 = vshll.u32 2475754826, %v4721
    %v4728 = vshrl.u32 2131351028, %v4722
    %v4729 = vor.u32 %v4727, %v4728
    %v4730 = vshll.u32 2131351028, %v4721
    %v4731 = vshrl.u32 2102212464, %v4722
    %v4732 = vor.u32 %v4730, %v4731
    %v4733 = vshll.u32 2102212464, %v4721
    %v4734 = vshrl.u32 920167782, %v4722
    %v4735 = vor.u32 %v4733, %v4734
    %v4736 = vshll.u32 920167782, %v4721
    %v4737 = vshrl.u32 1326507024, %v4722
    %v4738 = vor.u32 %v4736, %v4737
    %vm4739 = vcmp.lt.s32.totalorder %v4720, 1
    %vm4740 = vcmp.lt.s32.totalorder %v4720, 2
    %vm4741 = vcmp.lt.s32.totalorder %v4720, 3
    %vm4742 = vcmp.lt.s32.totalorder %v4720, 4
    %v4743 = vsel %vm4739, %v4723, %v4726
    %v4744 = vsel %vm4742, %v4732, 2102212464
    %v4745 = vsel %vm4741, %v4729, %v4744
    %v4746 = vsel %vm4740, %v4743, %v4745
    %v4747 = vsel %vm4739, %v4726, %v4729
    %v4748 = vsel %vm4742, %v4735, 920167782
    %v4749 = vsel %vm4741, %v4732, %v4748
    %v4750 = vsel %vm4740, %v4747, %v4749
    %v4751 = vsel %vm4739, %v4729, %v4732
    %v4752 = vsel %vm4742, %v4738, 1326507024
    %v4753 = vsel %vm4741, %v4735, %v4752
    %v4754 = vsel %vm4740, %v4751, %v4753
    %v4755 = vshll.u32 %v4715, 8
    %v4756 = vmul.u32.u64.compose %v4755, %v4754
    %v4757 = vextract.low.u32 %v4756
    %v4758 = vextract.high.u32 %v4756
    %v4759 = vmul.u32.u64.compose %v4755, %v4750
    %v4760 = vextract.low.u32 %v4759
    %v4761 = vextract.high.u32 %v4759
    %v4762 = vmul.u32 %v4755, %v4746
    %v4763 = vadd.s32 %v4758, %v4760
    %vm4764 = vc.u32 %v4758, %v4760
    %v4765 = vadd.s32 %v4761, 1
    %v4766 = vsel %vm4764, %v4765, %v4761
    %v4767 = vadd.s32 %v4762, %v4766
    %v4768 = vadd.s32 %v4767, 536870912
    %v4769 = vshrl.u32 %v4768, 30
    %v4770 = vshll.u32 %v4769, 30
    %v4771 = vsub.s32 %v4767, %v4770
    %vm4772 = vcmp.lt.s32.totalorder %v4771, 0
    %v4773 = vsub.s32 0, %v4771
    %v4774 = vsel %vm4772, %v4773, %v4771
    %v4775 = vclz %v4774
    %v4776 = vsub.s32 %v4775, 2
    %vm4777 = vcmp.gt.s32.totalorder 0, %v4776
    %v4778 = vsel %vm4777, 0, %v4776
    %v4779 = vsub.s32 32, %v4778
    %v4780 = vshll.u32 %v4771, %v4778
    %v4781 = vshrl.u32 %v4763, %v4779
    %v4782 = vor.u32 %v4780, %v4781
    %v4783 = vsub.s32 4294967266, %v4778
    %v4784 = vadd.s32 %v4783, 127
    %v4785 = vshll.u32 %v4784, 23
    %v4786 = vor.u32 4788187, %v4785
    %v4787 = vand.u32 2147483647, %v4786
    %v4789 = vcvt.s32.f32 %v4782
    %v4790 = vmul.f32 %v4789, %v4787
    %v4791 = vxor.u32 %v4790, 2147483648
    %v4792 = vsel %vm4709, %v4791, %v4790
    %v4793 = vsub.s32 4, %v4769
    %v4794 = vsel %vm4709, %v4793, %v4769
    %v4795 = vsel %vm4708, %v3455, %v4792
    %v4796 = vsel %vm4708, 0, %v4794
    %v4797 = vcosq.f32.pop %v4795
    %v4798 = vsinq.f32.pop %v4795
    %vm4799 = vweird.f32 %v3455
    %v4800 = vadd.s32 %v4796, 3
    %v4801 = vand.u32 %v4800, 3
    %vm4802 = vcmp.lt.s32.totalorder %v4801, 2
    %vm4803 = vcmp.eq.s32.totalorder %v4801, 0
    %v4804 = vxor.u32 %v4798, 2147483648
    %v4805 = vsel %vm4803, %v4797, %v4804
    %vm4806 = vcmp.eq.s32.totalorder %v4801, 2
    %v4807 = vxor.u32 %v4797, 2147483648
    %v4808 = vsel %vm4806, %v4807, %v4798
    %v4809 = vsel %vm4802, %v4805, %v4808
    %v4810 = vsel %vm4799, nan, %v4809
    %v4811 = vand.u32 2147483647, %v3456
    %vm4812 = vcmp.le.f32.partialorder %v4811, 0.7853982
    %vm4813 = vcmp.lt.s32.totalorder %v3456, 0
    %v4814 = vand.u32 %v3456, 2139095040
    %v4815 = vshrl.u32 %v4814, 23
    %v4816 = vsub.s32 %v4815, 127
    %v4817 = vand.u32 2147483647, %v3456
    %v4818 = vand.u32 %v4817, 8388607
    %v4819 = vor.u32 %v4818, 8388608
    %v4820 = vsub.s32 0, %v4819
    %v4821 = vadd.s32 %v4816, 1
    %vm4822 = vcmp.gt.s32.totalorder %v4821, 0
    %v4823 = vsel %vm4822, %v4821, 0
    %v4824 = vshrl.u32 %v4823, 5
    %v4825 = vand.u32 %v4823, 31
    %v4826 = vsub.s32 32, %v4825
    %v4827 = vshrl.u32 683565275, %v4826
    %v4828 = vshll.u32 683565275, %v4825
    %v4829 = vshrl.u32 2475754826, %v4826
    %v4830 = vor.u32 %v4828, %v4829
    %v4831 = vshll.u32 2475754826, %v4825
    %v4832 = vshrl.u32 2131351028, %v4826
    %v4833 = vor.u32 %v4831, %v4832
    %v4834 = vshll.u32 2131351028, %v4825
    %v4835 = vshrl.u32 2102212464, %v4826
    %v4836 = vor.u32 %v4834, %v4835
    %v4837 = vshll.u32 2102212464, %v4825
    %v4838 = vshrl.u32 920167782, %v4826
    %v4839 = vor.u32 %v4837, %v4838
    %v4840 = vshll.u32 920167782, %v4825
    %v4841 = vshrl.u32 1326507024, %v4826
    %v4842 = vor.u32 %v4840, %v4841
    %vm4843 = vcmp.lt.s32.totalorder %v4824, 1
    %vm4844 = vcmp.lt.s32.totalorder %v4824, 2
    %vm4845 = vcmp.lt.s32.totalorder %v4824, 3
    %vm4846 = vcmp.lt.s32.totalorder %v4824, 4
    %v4847 = vsel %vm4843, %v4827, %v4830
    %v4848 = vsel %vm4846, %v4836, 2102212464
    %v4849 = vsel %vm4845, %v4833, %v4848
    %v4850 = vsel %vm4844, %v4847, %v4849
    %v4851 = vsel %vm4843, %v4830, %v4833
    %v4852 = vsel %vm4846, %v4839, 920167782
    %v4853 = vsel %vm4845, %v4836, %v4852
    %v4854 = vsel %vm4844, %v4851, %v4853
    %v4855 = vsel %vm4843, %v4833, %v4836
    %v4856 = vsel %vm4846, %v4842, 1326507024
    %v4857 = vsel %vm4845, %v4839, %v4856
    %v4858 = vsel %vm4844, %v4855, %v4857
    %v4859 = vshll.u32 %v4819, 8
    %v4860 = vmul.u32.u64.compose %v4859, %v4858
    %v4861 = vextract.low.u32 %v4860
    %v4862 = vextract.high.u32 %v4860
    %v4863 = vmul.u32.u64.compose %v4859, %v4854
    %v4864 = vextract.low.u32 %v4863
    %v4865 = vextract.high.u32 %v4863
    %v4866 = vmul.u32 %v4859, %v4850
    %v4867 = vadd.s32 %v4862, %v4864
    %vm4868 = vc.u32 %v4862, %v4864
    %v4869 = vadd.s32 %v4865, 1
    %v4870 = vsel %vm4868, %v4869, %v4865
    %v4871 = vadd.s32 %v4866, %v4870
    %v4872 = vadd.s32 %v4871, 536870912
    %v4873 = vshrl.u32 %v4872, 30
    %v4874 = vshll.u32 %v4873, 30
    %v4875 = vsub.s32 %v4871, %v4874
    %vm4876 = vcmp.lt.s32.totalorder %v4875, 0
    %v4877 = vsub.s32 0, %v4875
    %v4878 = vsel %vm4876, %v4877, %v4875
    %v4879 = vclz %v4878
    %v4880 = vsub.s32 %v4879, 2
    %vm4881 = vcmp.gt.s32.totalorder 0, %v4880
    %v4882 = vsel %vm4881, 0, %v4880
    %v4883 = vsub.s32 32, %v4882
    %v4884 = vshll.u32 %v4875, %v4882
    %v4885 = vshrl.u32 %v4867, %v4883
    %v4886 = vor.u32 %v4884, %v4885
    %v4887 = vsub.s32 4294967266, %v4882
    %v4888 = vadd.s32 %v4887, 127
    %v4889 = vshll.u32 %v4888, 23
    %v4890 = vor.u32 4788187, %v4889
    %v4891 = vand.u32 2147483647, %v4890
    %v4893 = vcvt.s32.f32 %v4886
    %v4894 = vmul.f32 %v4893, %v4891
    %v4895 = vxor.u32 %v4894, 2147483648
    %v4896 = vsel %vm4813, %v4895, %v4894
    %v4897 = vsub.s32 4, %v4873
    %v4898 = vsel %vm4813, %v4897, %v4873
    %v4899 = vsel %vm4812, %v3456, %v4896
    %v4900 = vsel %vm4812, 0, %v4898
    %v4901 = vcosq.f32.pop %v4899
    %v4902 = vsinq.f32.pop %v4899
    %vm4903 = vweird.f32 %v3456
    %v4904 = vadd.s32 %v4900, 3
    %v4905 = vand.u32 %v4904, 3
    %vm4906 = vcmp.lt.s32.totalorder %v4905, 2
    %vm4907 = vcmp.eq.s32.totalorder %v4905, 0
    %v4908 = vxor.u32 %v4902, 2147483648
    %v4909 = vsel %vm4907, %v4901, %v4908
    %vm4910 = vcmp.eq.s32.totalorder %v4905, 2
    %v4911 = vxor.u32 %v4901, 2147483648
    %v4912 = vsel %vm4910, %v4911, %v4902
    %v4913 = vsel %vm4906, %v4909, %v4912
    %v4914 = vsel %vm4903, nan, %v4913
    %v4915 = vand.u32 2147483647, %v3457
    %vm4916 = vcmp.le.f32.partialorder %v4915, 0.7853982
    %vm4917 = vcmp.lt.s32.totalorder %v3457, 0
    %v4918 = vand.u32 %v3457, 2139095040
    %v4919 = vshrl.u32 %v4918, 23
    %v4920 = vsub.s32 %v4919, 127
    %v4921 = vand.u32 2147483647, %v3457
    %v4922 = vand.u32 %v4921, 8388607
    %v4923 = vor.u32 %v4922, 8388608
    %v4924 = vsub.s32 0, %v4923
    %v4925 = vadd.s32 %v4920, 1
    %vm4926 = vcmp.gt.s32.totalorder %v4925, 0
    %v4927 = vsel %vm4926, %v4925, 0
    %v4928 = vshrl.u32 %v4927, 5
    %v4929 = vand.u32 %v4927, 31
    %v4930 = vsub.s32 32, %v4929
    %v4931 = vshrl.u32 683565275, %v4930
    %v4932 = vshll.u32 683565275, %v4929
    %v4933 = vshrl.u32 2475754826, %v4930
    %v4934 = vor.u32 %v4932, %v4933
    %v4935 = vshll.u32 2475754826, %v4929
    %v4936 = vshrl.u32 2131351028, %v4930
    %v4937 = vor.u32 %v4935, %v4936
    %v4938 = vshll.u32 2131351028, %v4929
    %v4939 = vshrl.u32 2102212464, %v4930
    %v4940 = vor.u32 %v4938, %v4939
    %v4941 = vshll.u32 2102212464, %v4929
    %v4942 = vshrl.u32 920167782, %v4930
    %v4943 = vor.u32 %v4941, %v4942
    %v4944 = vshll.u32 920167782, %v4929
    %v4945 = vshrl.u32 1326507024, %v4930
    %v4946 = vor.u32 %v4944, %v4945
    %vm4947 = vcmp.lt.s32.totalorder %v4928, 1
    %vm4948 = vcmp.lt.s32.totalorder %v4928, 2
    %vm4949 = vcmp.lt.s32.totalorder %v4928, 3
    %vm4950 = vcmp.lt.s32.totalorder %v4928, 4
    %v4951 = vsel %vm4947, %v4931, %v4934
    %v4952 = vsel %vm4950, %v4940, 2102212464
    %v4953 = vsel %vm4949, %v4937, %v4952
    %v4954 = vsel %vm4948, %v4951, %v4953
    %v4955 = vsel %vm4947, %v4934, %v4937
    %v4956 = vsel %vm4950, %v4943, 920167782
    %v4957 = vsel %vm4949, %v4940, %v4956
    %v4958 = vsel %vm4948, %v4955, %v4957
    %v4959 = vsel %vm4947, %v4937, %v4940
    %v4960 = vsel %vm4950, %v4946, 1326507024
    %v4961 = vsel %vm4949, %v4943, %v4960
    %v4962 = vsel %vm4948, %v4959, %v4961
    %v4963 = vshll.u32 %v4923, 8
    %v4964 = vmul.u32.u64.compose %v4963, %v4962
    %v4965 = vextract.low.u32 %v4964
    %v4966 = vextract.high.u32 %v4964
    %v4967 = vmul.u32.u64.compose %v4963, %v4958
    %v4968 = vextract.low.u32 %v4967
    %v4969 = vextract.high.u32 %v4967
    %v4970 = vmul.u32 %v4963, %v4954
    %v4971 = vadd.s32 %v4966, %v4968
    %vm4972 = vc.u32 %v4966, %v4968
    %v4973 = vadd.s32 %v4969, 1
    %v4974 = vsel %vm4972, %v4973, %v4969
    %v4975 = vadd.s32 %v4970, %v4974
    %v4976 = vadd.s32 %v4975, 536870912
    %v4977 = vshrl.u32 %v4976, 30
    %v4978 = vshll.u32 %v4977, 30
    %v4979 = vsub.s32 %v4975, %v4978
    %vm4980 = vcmp.lt.s32.totalorder %v4979, 0
    %v4981 = vsub.s32 0, %v4979
    %v4982 = vsel %vm4980, %v4981, %v4979
    %v4983 = vclz %v4982
    %v4984 = vsub.s32 %v4983, 2
    %vm4985 = vcmp.gt.s32.totalorder 0, %v4984
    %v4986 = vsel %vm4985, 0, %v4984
    %v4987 = vsub.s32 32, %v4986
    %v4988 = vshll.u32 %v4979, %v4986
    %v4989 = vshrl.u32 %v4971, %v4987
    %v4990 = vor.u32 %v4988, %v4989
    %v4991 = vsub.s32 4294967266, %v4986
    %v4992 = vadd.s32 %v4991, 127
    %v4993 = vshll.u32 %v4992, 23
    %v4994 = vor.u32 4788187, %v4993
    %v4995 = vand.u32 2147483647, %v4994
    %v4997 = vcvt.s32.f32 %v4990
    %v4998 = vmul.f32 %v4997, %v4995
    %v4999 = vxor.u32 %v4998, 2147483648
    %v5000 = vsel %vm4917, %v4999, %v4998
    %v5001 = vsub.s32 4, %v4977
    %v5002 = vsel %vm4917, %v5001, %v4977
    %v5003 = vsel %vm4916, %v3457, %v5000
    %v5004 = vsel %vm4916, 0, %v5002
    %v5005 = vcosq.f32.pop %v5003
    %v5006 = vsinq.f32.pop %v5003
    %vm5007 = vweird.f32 %v3457
    %v5008 = vadd.s32 %v5004, 3
    %v5009 = vand.u32 %v5008, 3
    %vm5010 = vcmp.lt.s32.totalorder %v5009, 2
    %vm5011 = vcmp.eq.s32.totalorder %v5009, 0
    %v5012 = vxor.u32 %v5006, 2147483648
    %v5013 = vsel %vm5011, %v5005, %v5012
    %vm5014 = vcmp.eq.s32.totalorder %v5009, 2
    %v5015 = vxor.u32 %v5005, 2147483648
    %v5016 = vsel %vm5014, %v5015, %v5006
    %v5017 = vsel %vm5010, %v5013, %v5016
    %v5018 = vsel %vm5007, nan, %v5017
    %v5019 = vand.u32 2147483647, %v3458
    %vm5020 = vcmp.le.f32.partialorder %v5019, 0.7853982
    %vm5021 = vcmp.lt.s32.totalorder %v3458, 0
    %v5022 = vand.u32 %v3458, 2139095040
    %v5023 = vshrl.u32 %v5022, 23
    %v5024 = vsub.s32 %v5023, 127
    %v5025 = vand.u32 2147483647, %v3458
    %v5026 = vand.u32 %v5025, 8388607
    %v5027 = vor.u32 %v5026, 8388608
    %v5028 = vsub.s32 0, %v5027
    %v5029 = vadd.s32 %v5024, 1
    %vm5030 = vcmp.gt.s32.totalorder %v5029, 0
    %v5031 = vsel %vm5030, %v5029, 0
    %v5032 = vshrl.u32 %v5031, 5
    %v5033 = vand.u32 %v5031, 31
    %v5034 = vsub.s32 32, %v5033
    %v5035 = vshrl.u32 683565275, %v5034
    %v5036 = vshll.u32 683565275, %v5033
    %v5037 = vshrl.u32 2475754826, %v5034
    %v5038 = vor.u32 %v5036, %v5037
    %v5039 = vshll.u32 2475754826, %v5033
    %v5040 = vshrl.u32 2131351028, %v5034
    %v5041 = vor.u32 %v5039, %v5040
    %v5042 = vshll.u32 2131351028, %v5033
    %v5043 = vshrl.u32 2102212464, %v5034
    %v5044 = vor.u32 %v5042, %v5043
    %v5045 = vshll.u32 2102212464, %v5033
    %v5046 = vshrl.u32 920167782, %v5034
    %v5047 = vor.u32 %v5045, %v5046
    %v5048 = vshll.u32 920167782, %v5033
    %v5049 = vshrl.u32 1326507024, %v5034
    %v5050 = vor.u32 %v5048, %v5049
    %vm5051 = vcmp.lt.s32.totalorder %v5032, 1
    %vm5052 = vcmp.lt.s32.totalorder %v5032, 2
    %vm5053 = vcmp.lt.s32.totalorder %v5032, 3
    %vm5054 = vcmp.lt.s32.totalorder %v5032, 4
    %v5055 = vsel %vm5051, %v5035, %v5038
    %v5056 = vsel %vm5054, %v5044, 2102212464
    %v5057 = vsel %vm5053, %v5041, %v5056
    %v5058 = vsel %vm5052, %v5055, %v5057
    %v5059 = vsel %vm5051, %v5038, %v5041
    %v5060 = vsel %vm5054, %v5047, 920167782
    %v5061 = vsel %vm5053, %v5044, %v5060
    %v5062 = vsel %vm5052, %v5059, %v5061
    %v5063 = vsel %vm5051, %v5041, %v5044
    %v5064 = vsel %vm5054, %v5050, 1326507024
    %v5065 = vsel %vm5053, %v5047, %v5064
    %v5066 = vsel %vm5052, %v5063, %v5065
    %v5067 = vshll.u32 %v5027, 8
    %v5068 = vmul.u32.u64.compose %v5067, %v5066
    %v5069 = vextract.low.u32 %v5068
    %v5070 = vextract.high.u32 %v5068
    %v5071 = vmul.u32.u64.compose %v5067, %v5062
    %v5072 = vextract.low.u32 %v5071
    %v5073 = vextract.high.u32 %v5071
    %v5074 = vmul.u32 %v5067, %v5058
    %v5075 = vadd.s32 %v5070, %v5072
    %vm5076 = vc.u32 %v5070, %v5072
    %v5077 = vadd.s32 %v5073, 1
    %v5078 = vsel %vm5076, %v5077, %v5073
    %v5079 = vadd.s32 %v5074, %v5078
    %v5080 = vadd.s32 %v5079, 536870912
    %v5081 = vshrl.u32 %v5080, 30
    %v5082 = vshll.u32 %v5081, 30
    %v5083 = vsub.s32 %v5079, %v5082
    %vm5084 = vcmp.lt.s32.totalorder %v5083, 0
    %v5085 = vsub.s32 0, %v5083
    %v5086 = vsel %vm5084, %v5085, %v5083
    %v5087 = vclz %v5086
    %v5088 = vsub.s32 %v5087, 2
    %vm5089 = vcmp.gt.s32.totalorder 0, %v5088
    %v5090 = vsel %vm5089, 0, %v5088
    %v5091 = vsub.s32 32, %v5090
    %v5092 = vshll.u32 %v5083, %v5090
    %v5093 = vshrl.u32 %v5075, %v5091
    %v5094 = vor.u32 %v5092, %v5093
    %v5095 = vsub.s32 4294967266, %v5090
    %v5096 = vadd.s32 %v5095, 127
    %v5097 = vshll.u32 %v5096, 23
    %v5098 = vor.u32 4788187, %v5097
    %v5099 = vand.u32 2147483647, %v5098
    %v5101 = vcvt.s32.f32 %v5094
    %v5102 = vmul.f32 %v5101, %v5099
    %v5103 = vxor.u32 %v5102, 2147483648
    %v5104 = vsel %vm5021, %v5103, %v5102
    %v5105 = vsub.s32 4, %v5081
    %v5106 = vsel %vm5021, %v5105, %v5081
    %v5107 = vsel %vm5020, %v3458, %v5104
    %v5108 = vsel %vm5020, 0, %v5106
    %v5109 = vcosq.f32.pop %v5107
    %v5110 = vsinq.f32.pop %v5107
    %vm5111 = vweird.f32 %v3458
    %v5112 = vadd.s32 %v5108, 3
    %v5113 = vand.u32 %v5112, 3
    %vm5114 = vcmp.lt.s32.totalorder %v5113, 2
    %vm5115 = vcmp.eq.s32.totalorder %v5113, 0
    %v5116 = vxor.u32 %v5110, 2147483648
    %v5117 = vsel %vm5115, %v5109, %v5116
    %vm5118 = vcmp.eq.s32.totalorder %v5113, 2
    %v5119 = vxor.u32 %v5109, 2147483648
    %v5120 = vsel %vm5118, %v5119, %v5110
    %v5121 = vsel %vm5114, %v5117, %v5120
    %v5122 = vsel %vm5111, nan, %v5121
    %v5123 = vpack.c.bf16 %v3770, %v3562
    %v5124 = vpack.c.bf16 %v3874, %v3666
    %v5125 = vpack.c.bf16 %v4186, %v3978
    %v5126 = vpack.c.bf16 %v4290, %v4082
    %v5127 = vpack.c.bf16 %v4602, %v4394
    %v5128 = vpack.c.bf16 %v4706, %v4498
    %v5129 = vpack.c.bf16 %v5018, %v4810
    %v5130 = vpack.c.bf16 %v5122, %v4914
    %v5131 = vld [vmem:[%s2] sm:$0xf]
    %v5132 = vld [vmem:[%s2 + $0x4] sm:$0xf]
    %v5133 = vld [vmem:[%s2 + $0x8] sm:$0xf]
    %v5134 = vld [vmem:[%s2 + $0xc] sm:$0xf]
    %v5135 = vld [vmem:[%s2 + $0x10] sm:$0xf]
    %v5136 = vld [vmem:[%s2 + $0x14] sm:$0xf]
    %v5137 = vld [vmem:[%s2 + $0x18] sm:$0xf]
    %v5138 = vld [vmem:[%s2 + $0x1c] sm:$0xf]
    %v5139 = vld [vmem:[%s2 + $0x20] sm:$0xf]
    %v5140 = vld [vmem:[%s2 + $0x24] sm:$0xf]
    %v5141 = vld [vmem:[%s2 + $0x28] sm:$0xf]
    %v5142 = vld [vmem:[%s2 + $0x2c] sm:$0xf]
    %v5143 = vld [vmem:[%s2 + $0x30] sm:$0xf]
    %v5144 = vld [vmem:[%s2 + $0x34] sm:$0xf]
    %v5145 = vld [vmem:[%s2 + $0x38] sm:$0xf]
    %v5146 = vld [vmem:[%s2 + $0x3c] sm:$0xf]
    %v5163 = vunpack.c.l.b16 %v5131
    %v5164 = vunpack.c.l.b16 %v5132
    %v5165 = vunpack.c.l.b16 %v5133
    %v5166 = vunpack.c.l.b16 %v5134
    %v5167 = vunpack.c.l.b16 %v5135
    %v5168 = vunpack.c.l.b16 %v5136
    %v5169 = vunpack.c.l.b16 %v5137
    %v5170 = vunpack.c.l.b16 %v5138
    %v5171 = vunpack.c.l.b16 %v5139
    %v5172 = vunpack.c.l.b16 %v5140
    %v5173 = vunpack.c.l.b16 %v5141
    %v5174 = vunpack.c.l.b16 %v5142
    %v5175 = vunpack.c.l.b16 %v5143
    %v5176 = vunpack.c.l.b16 %v5144
    %v5177 = vunpack.c.l.b16 %v5145
    %v5178 = vunpack.c.l.b16 %v5146
    %v5179 = vpack.c.b16 %v5164, %v5163
    %v5180 = vpack.c.b16 %v5166, %v5165
    %v5181 = vpack.c.b16 %v5168, %v5167
    %v5182 = vpack.c.b16 %v5170, %v5169
    %v5183 = vpack.c.b16 %v5172, %v5171
    %v5184 = vpack.c.b16 %v5174, %v5173
    %v5185 = vpack.c.b16 %v5176, %v5175
    %v5186 = vpack.c.b16 %v5178, %v5177
    %v5188 = vsel %vm2024, %v5179, 0
    %v5191 = vsel %vm2024, %v5180, 0
    %v5194 = vsel %vm2024, %v5181, 0
    %v5197 = vsel %vm2024, %v5182, 0
    %v5200 = vsel %vm2024, %v5183, 0
    %v5203 = vsel %vm2024, %v5184, 0
    %v5206 = vsel %vm2024, %v5185, 0
    %v5209 = vsel %vm2024, %v5186, 0
    %5211 = vmatprep.subr.bf16.mxu0 0
    %5212 = vmatpush1.bf16.msra.mxu0 0
    %5213 = vmatprep.subr.bf16.mxu0 0
    %5214 = vmatpush1.bf16.msra.mxu0 0
    %5215 = vmatprep.subr.bf16.mxu0 0
    %5216 = vmatpush1.bf16.msra.mxu0 0
    %5217 = vmatprep.subr.bf16.mxu0 0
    %5218 = vmatpush1.bf16.msra.mxu0 0
    %5219 = vmatprep.subr.bf16.mxu0 %v5130
    %5220 = vmatpush1.bf16.msra.mxu0 %v5129
    %5221 = vmatprep.subr.bf16.mxu0 %v5128
    %5222 = vmatpush1.bf16.msra.mxu0 %v5127
    %5223 = vmatprep.subr.bf16.mxu0 %v5126
    %5224 = vmatpush1.bf16.msra.mxu0 %v5125
    %5225 = vmatprep.subr.bf16.mxu0 %v5124
    %5226 = vmatpush1.bf16.msra.mxu0 %v5123
    %5227 = vmatprep.subr.bf16.mxu0 0
    %5228 = vmatpush2.bf16.msra.mxu0 0
    %5229 = vmatprep.subr.bf16.mxu0 0
    %5230 = vmatpush2.bf16.msra.mxu0 0
    %5231 = vmatprep.subr.bf16.mxu0 0
    %5232 = vmatpush2.bf16.msra.mxu0 0
    %5233 = vmatprep.subr.bf16.mxu0 0
    %5234 = vmatpush2.bf16.msra.mxu0 0
    %5235 = vmatprep.subr.bf16.mxu0 0
    %5236 = vmatpush2.bf16.msra.mxu0 0
    %5237 = vmatprep.subr.bf16.mxu0 0
    %5238 = vmatpush2.bf16.msra.mxu0 0
    %5239 = vmatprep.subr.bf16.mxu0 0
    %5240 = vmatpush2.bf16.msra.mxu0 0
    %5241 = vmatprep.subr.bf16.mxu0 0
    %5242 = vmatpush2.bf16.msra.mxu0 0
    %5243 = vmatprep.mubr.bf16.mxu0 0
    %5244 = vmatmul.mubr.bf16.gmra.mxu0 %v5188
    %v5245 = vpop.f32.mrf.mxu0
    %v5246 = vadd.f32 %v1907, %v5245
    %v5247 = vpop.f32.mrf.mxu0
    %v5248 = vadd.f32 %v1907, %v5247
    %v5249 = vpop.f32.mrf.mxu0
    %v5250 = vadd.f32 %v1912, %v5249
    %v5251 = vpop.f32.mrf.mxu0
    %v5252 = vadd.f32 %v1912, %v5251
    %5253 = vmatprep.mubr.bf16.mxu0 0
    %5254 = vmatmul.mubr.bf16.gmra.mxu0 %v5191
    %v5255 = vpop.f32.mrf.mxu0
    %v5256 = vadd.f32 %v1917, %v5255
    %v5257 = vpop.f32.mrf.mxu0
    %v5258 = vadd.f32 %v1917, %v5257
    %v5259 = vpop.f32.mrf.mxu0
    %v5260 = vadd.f32 %v1922, %v5259
    %v5261 = vpop.f32.mrf.mxu0
    %v5262 = vadd.f32 %v1922, %v5261
    %5263 = vmatprep.mubr.bf16.mxu0 0
    %5264 = vmatmul.mubr.bf16.gmra.mxu0 %v5194
    %v5265 = vpop.f32.mrf.mxu0
    %v5266 = vadd.f32 %v1927, %v5265
    %v5267 = vpop.f32.mrf.mxu0
    %v5268 = vadd.f32 %v1927, %v5267
    %v5269 = vpop.f32.mrf.mxu0
    %v5270 = vadd.f32 %v1932, %v5269
    %v5271 = vpop.f32.mrf.mxu0
    %v5272 = vadd.f32 %v1932, %v5271
    %5273 = vmatprep.mubr.bf16.mxu0 0
    %5274 = vmatmul.mubr.bf16.gmra.mxu0 %v5197
    %v5275 = vpop.f32.mrf.mxu0
    %v5276 = vadd.f32 %v1937, %v5275
    %v5277 = vpop.f32.mrf.mxu0
    %v5278 = vadd.f32 %v1937, %v5277
    %v5279 = vpop.f32.mrf.mxu0
    %v5280 = vadd.f32 %v1942, %v5279
    %v5281 = vpop.f32.mrf.mxu0
    %v5282 = vadd.f32 %v1942, %v5281
    %5283 = vmatprep.mubr.bf16.mxu0 0
    %5284 = vmatmul.mubr.bf16.gmra.mxu0 %v5200
    %v5285 = vpop.f32.mrf.mxu0
    %v5286 = vadd.f32 %v1947, %v5285
    %v5287 = vpop.f32.mrf.mxu0
    %v5288 = vadd.f32 %v1947, %v5287
    %v5289 = vpop.f32.mrf.mxu0
    %v5290 = vadd.f32 %v1952, %v5289
    %v5291 = vpop.f32.mrf.mxu0
    %v5292 = vadd.f32 %v1952, %v5291
    %5293 = vmatprep.mubr.bf16.mxu0 0
    %5294 = vmatmul.mubr.bf16.gmra.mxu0 %v5203
    %v5295 = vpop.f32.mrf.mxu0
    %v5296 = vadd.f32 %v1957, %v5295
    %v5297 = vpop.f32.mrf.mxu0
    %v5298 = vadd.f32 %v1957, %v5297
    %v5299 = vpop.f32.mrf.mxu0
    %v5300 = vadd.f32 %v1962, %v5299
    %v5301 = vpop.f32.mrf.mxu0
    %v5302 = vadd.f32 %v1962, %v5301
    %5303 = vmatprep.mubr.bf16.mxu0 0
    %5304 = vmatmul.mubr.bf16.gmra.mxu0 %v5206
    %v5305 = vpop.f32.mrf.mxu0
    %v5306 = vadd.f32 %v1967, %v5305
    %v5307 = vpop.f32.mrf.mxu0
    %v5308 = vadd.f32 %v1967, %v5307
    %v5309 = vpop.f32.mrf.mxu0
    %v5310 = vadd.f32 %v1972, %v5309
    %v5311 = vpop.f32.mrf.mxu0
    %v5312 = vadd.f32 %v1972, %v5311
    %5313 = vmatprep.mubr.bf16.mxu0 0
    %5314 = vmatmul.mubr.bf16.gmra.mxu0 %v5209
    %v5315 = vpop.f32.mrf.mxu0
    %v5316 = vadd.f32 %v1977, %v5315
    %v5317 = vpop.f32.mrf.mxu0
    %v5318 = vadd.f32 %v1977, %v5317
    %v5319 = vpop.f32.mrf.mxu0
    %v5320 = vadd.f32 %v1982, %v5319
    %v5321 = vpop.f32.mrf.mxu0
    %v5322 = vadd.f32 %v1982, %v5321
    %5323 = vdwg.mxu0
    %v5324 = vmax.f32 %v5246, 0.0
    %v5325 = vmax.f32 %v5248, 0.0
    %v5326 = vmax.f32 %v5250, 0.0
    %v5327 = vmax.f32 %v5252, 0.0
    %v5328 = vmax.f32 %v5256, 0.0
    %v5329 = vmax.f32 %v5258, 0.0
    %v5330 = vmax.f32 %v5260, 0.0
    %v5331 = vmax.f32 %v5262, 0.0
    %v5332 = vmax.f32 %v5266, 0.0
    %v5333 = vmax.f32 %v5268, 0.0
    %v5334 = vmax.f32 %v5270, 0.0
    %v5335 = vmax.f32 %v5272, 0.0
    %v5336 = vmax.f32 %v5276, 0.0
    %v5337 = vmax.f32 %v5278, 0.0
    %v5338 = vmax.f32 %v5280, 0.0
    %v5339 = vmax.f32 %v5282, 0.0
    %v5340 = vmax.f32 %v5286, 0.0
    %v5341 = vmax.f32 %v5288, 0.0
    %v5342 = vmax.f32 %v5290, 0.0
    %v5343 = vmax.f32 %v5292, 0.0
    %v5344 = vmax.f32 %v5296, 0.0
    %v5345 = vmax.f32 %v5298, 0.0
    %v5346 = vmax.f32 %v5300, 0.0
    %v5347 = vmax.f32 %v5302, 0.0
    %v5348 = vmax.f32 %v5306, 0.0
    %v5349 = vmax.f32 %v5308, 0.0
    %v5350 = vmax.f32 %v5310, 0.0
    %v5351 = vmax.f32 %v5312, 0.0
    %v5352 = vmax.f32 %v5316, 0.0
    %v5353 = vmax.f32 %v5318, 0.0
    %v5354 = vmax.f32 %v5320, 0.0
    %v5355 = vmax.f32 %v5322, 0.0
    %v5356 = vld [vmem:[%s4] sm:$0xf]
    %v5357 = vld [vmem:[%s4 + $0x4] sm:$0xf]
    %v5358 = vld [vmem:[%s4 + $0x8] sm:$0xf]
    %v5359 = vld [vmem:[%s4 + $0xc] sm:$0xf]
    %v5360 = vld [vmem:[%s4 + $0x10] sm:$0xf]
    %v5361 = vld [vmem:[%s4 + $0x14] sm:$0xf]
    %v5362 = vld [vmem:[%s4 + $0x18] sm:$0xf]
    %v5363 = vld [vmem:[%s4 + $0x1c] sm:$0xf]
    %v5364 = vld [vmem:[%s4 + $0x20] sm:$0xf]
    %v5365 = vld [vmem:[%s4 + $0x24] sm:$0xf]
    %v5366 = vld [vmem:[%s4 + $0x28] sm:$0xf]
    %v5367 = vld [vmem:[%s4 + $0x2c] sm:$0xf]
    %v5368 = vld [vmem:[%s4 + $0x30] sm:$0xf]
    %v5369 = vld [vmem:[%s4 + $0x34] sm:$0xf]
    %v5370 = vld [vmem:[%s4 + $0x38] sm:$0xf]
    %v5371 = vld [vmem:[%s4 + $0x3c] sm:$0xf]
    %v5372 = vpack.c.bf16 %v5326, %v5324
    %v5373 = vpack.c.bf16 %v5327, %v5325
    %v5374 = vpack.c.bf16 %v5330, %v5328
    %v5375 = vpack.c.bf16 %v5331, %v5329
    %v5376 = vpack.c.bf16 %v5334, %v5332
    %v5377 = vpack.c.bf16 %v5335, %v5333
    %v5378 = vpack.c.bf16 %v5338, %v5336
    %v5379 = vpack.c.bf16 %v5339, %v5337
    %v5380 = vpack.c.bf16 %v5342, %v5340
    %v5381 = vpack.c.bf16 %v5343, %v5341
    %v5382 = vpack.c.bf16 %v5346, %v5344
    %v5383 = vpack.c.bf16 %v5347, %v5345
    %v5384 = vpack.c.bf16 %v5350, %v5348
    %v5385 = vpack.c.bf16 %v5351, %v5349
    %v5386 = vpack.c.bf16 %v5354, %v5352
    %v5387 = vpack.c.bf16 %v5355, %v5353
    %v5388 = vld [vmem:[%s5] sm:$0xff]
    %v5389 = vld [vmem:[%s5 + $0x8] sm:$0xff]
    %v5390 = vld [vmem:[%s5 + $0x10] sm:$0xff]
    %v5391 = vld [vmem:[%s5 + $0x18] sm:$0xff]
    %v5392 = vld [vmem:[%s5 + $0x20] sm:$0xff]
    %v5393 = vld [vmem:[%s5 + $0x28] sm:$0xff]
    %v5394 = vld [vmem:[%s5 + $0x30] sm:$0xff]
    %v5395 = vld [vmem:[%s5 + $0x38] sm:$0xff]
    %v5396 = vld [vmem:[%s5 + $0x40] sm:$0xff]
    %v5397 = vld [vmem:[%s5 + $0x48] sm:$0xff]
    %v5398 = vld [vmem:[%s5 + $0x50] sm:$0xff]
    %v5399 = vld [vmem:[%s5 + $0x58] sm:$0xff]
    %v5400 = vld [vmem:[%s5 + $0x60] sm:$0xff]
    %v5401 = vld [vmem:[%s5 + $0x68] sm:$0xff]
    %v5402 = vld [vmem:[%s5 + $0x70] sm:$0xff]
    %v5403 = vld [vmem:[%s5 + $0x78] sm:$0xff]
    %5405 = vset.pattern.permute.xlu0 0
    %5406 = vperm.xlu0 %5405, %v5388
    %v5407 = vpop.permute.xlu0 %5406
    %5410 = vset.pattern.permute.xlu0 0
    %5411 = vperm.xlu0 %5410, %v5389
    %v5412 = vpop.permute.xlu0 %5411
    %5415 = vset.pattern.permute.xlu0 0
    %5416 = vperm.xlu0 %5415, %v5390
    %v5417 = vpop.permute.xlu0 %5416
    %5420 = vset.pattern.permute.xlu0 0
    %5421 = vperm.xlu0 %5420, %v5391
    %v5422 = vpop.permute.xlu0 %5421
    %5425 = vset.pattern.permute.xlu0 0
    %5426 = vperm.xlu0 %5425, %v5392
    %v5427 = vpop.permute.xlu0 %5426
    %5430 = vset.pattern.permute.xlu0 0
    %5431 = vperm.xlu0 %5430, %v5393
    %v5432 = vpop.permute.xlu0 %5431
    %5435 = vset.pattern.permute.xlu0 0
    %5436 = vperm.xlu0 %5435, %v5394
    %v5437 = vpop.permute.xlu0 %5436
    %5440 = vset.pattern.permute.xlu0 0
    %5441 = vperm.xlu0 %5440, %v5395
    %v5442 = vpop.permute.xlu0 %5441
    %5445 = vset.pattern.permute.xlu0 0
    %5446 = vperm.xlu0 %5445, %v5396
    %v5447 = vpop.permute.xlu0 %5446
    %5450 = vset.pattern.permute.xlu0 0
    %5451 = vperm.xlu0 %5450, %v5397
    %v5452 = vpop.permute.xlu0 %5451
    %5455 = vset.pattern.permute.xlu0 0
    %5456 = vperm.xlu0 %5455, %v5398
    %v5457 = vpop.permute.xlu0 %5456
    %5460 = vset.pattern.permute.xlu0 0
    %5461 = vperm.xlu0 %5460, %v5399
    %v5462 = vpop.permute.xlu0 %5461
    %5465 = vset.pattern.permute.xlu0 0
    %5466 = vperm.xlu0 %5465, %v5400
    %v5467 = vpop.permute.xlu0 %5466
    %5470 = vset.pattern.permute.xlu0 0
    %5471 = vperm.xlu0 %5470, %v5401
    %v5472 = vpop.permute.xlu0 %5471
    %5475 = vset.pattern.permute.xlu0 0
    %5476 = vperm.xlu0 %5475, %v5402
    %v5477 = vpop.permute.xlu0 %5476
    %5480 = vset.pattern.permute.xlu0 0
    %5481 = vperm.xlu0 %5480, %v5403
    %v5482 = vpop.permute.xlu0 %5481
    %v5500 = vunpack.c.l.b16 %v5356
    %v5501 = vunpack.c.l.b16 %v5357
    %v5502 = vunpack.c.l.b16 %v5358
    %v5503 = vunpack.c.l.b16 %v5359
    %v5504 = vunpack.c.l.b16 %v5360
    %v5505 = vunpack.c.l.b16 %v5361
    %v5506 = vunpack.c.l.b16 %v5362
    %v5507 = vunpack.c.l.b16 %v5363
    %v5508 = vunpack.c.l.b16 %v5364
    %v5509 = vunpack.c.l.b16 %v5365
    %v5510 = vunpack.c.l.b16 %v5366
    %v5511 = vunpack.c.l.b16 %v5367
    %v5512 = vunpack.c.l.b16 %v5368
    %v5513 = vunpack.c.l.b16 %v5369
    %v5514 = vunpack.c.l.b16 %v5370
    %v5515 = vunpack.c.l.b16 %v5371
    %v5516 = vpack.c.b16 %v5501, %v5500
    %v5517 = vpack.c.b16 %v5503, %v5502
    %v5518 = vpack.c.b16 %v5505, %v5504
    %v5519 = vpack.c.b16 %v5507, %v5506
    %v5520 = vpack.c.b16 %v5509, %v5508
    %v5521 = vpack.c.b16 %v5511, %v5510
    %v5522 = vpack.c.b16 %v5513, %v5512
    %v5523 = vpack.c.b16 %v5515, %v5514
    %5532 = vmatprep.subr.bf16.mxu0 %v5387
    %5533 = vmatpush1.bf16.msra.mxu0 %v5386
    %5534 = vmatprep.subr.bf16.mxu0 %v5385
    %5535 = vmatpush1.bf16.msra.mxu0 %v5384
    %5536 = vmatprep.subr.bf16.mxu0 %v5383
    %5537 = vmatpush1.bf16.msra.mxu0 %v5382
    %5538 = vmatprep.subr.bf16.mxu0 %v5381
    %5539 = vmatpush1.bf16.msra.mxu0 %v5380
    %5540 = vmatprep.subr.bf16.mxu0 %v5379
    %5541 = vmatpush1.bf16.msra.mxu0 %v5378
    %5542 = vmatprep.subr.bf16.mxu0 %v5377
    %5543 = vmatpush1.bf16.msra.mxu0 %v5376
    %5544 = vmatprep.subr.bf16.mxu0 %v5375
    %5545 = vmatpush1.bf16.msra.mxu0 %v5374
    %5546 = vmatprep.subr.bf16.mxu0 %v5373
    %5547 = vmatpush1.bf16.msra.mxu0 %v5372
    %5548 = vmatprep.subr.bf16.mxu0 0
    %5549 = vmatpush2.bf16.msra.mxu0 0
    %5550 = vmatprep.subr.bf16.mxu0 0
    %5551 = vmatpush2.bf16.msra.mxu0 0
    %5552 = vmatprep.subr.bf16.mxu0 0
    %5553 = vmatpush2.bf16.msra.mxu0 0
    %5554 = vmatprep.subr.bf16.mxu0 0
    %5555 = vmatpush2.bf16.msra.mxu0 0
    %5556 = vmatprep.subr.bf16.mxu0 0
    %5557 = vmatpush2.bf16.msra.mxu0 0
    %5558 = vmatprep.subr.bf16.mxu0 0
    %5559 = vmatpush2.bf16.msra.mxu0 0
    %5560 = vmatprep.subr.bf16.mxu0 0
    %5561 = vmatpush2.bf16.msra.mxu0 0
    %5562 = vmatprep.subr.bf16.mxu0 0
    %5563 = vmatpush2.bf16.msra.mxu0 0
    %5564 = vmatprep.mubr.bf16.mxu0 0
    %5565 = vmatmul.mubr.bf16.gmra.mxu0 %v5516
    %v5566 = vpop.f32.mrf.mxu0
    %v5567 = vadd.f32 %v5407, %v5566
    %v5568 = vpop.f32.mrf.mxu0
    %v5569 = vadd.f32 %v5407, %v5568
    %v5570 = vpop.f32.mrf.mxu0
    %v5571 = vadd.f32 %v5412, %v5570
    %v5572 = vpop.f32.mrf.mxu0
    %v5573 = vadd.f32 %v5412, %v5572
    %5574 = vmatprep.mubr.bf16.mxu0 0
    %5575 = vmatmul.mubr.bf16.gmra.mxu0 %v5517
    %v5576 = vpop.f32.mrf.mxu0
    %v5577 = vadd.f32 %v5417, %v5576
    %v5578 = vpop.f32.mrf.mxu0
    %v5579 = vadd.f32 %v5417, %v5578
    %v5580 = vpop.f32.mrf.mxu0
    %v5581 = vadd.f32 %v5422, %v5580
    %v5582 = vpop.f32.mrf.mxu0
    %v5583 = vadd.f32 %v5422, %v5582
    %5584 = vmatprep.mubr.bf16.mxu0 0
    %5585 = vmatmul.mubr.bf16.gmra.mxu0 %v5518
    %v5586 = vpop.f32.mrf.mxu0
    %v5587 = vadd.f32 %v5427, %v5586
    %v5588 = vpop.f32.mrf.mxu0
    %v5589 = vadd.f32 %v5427, %v5588
    %v5590 = vpop.f32.mrf.mxu0
    %v5591 = vadd.f32 %v5432, %v5590
    %v5592 = vpop.f32.mrf.mxu0
    %v5593 = vadd.f32 %v5432, %v5592
    %5594 = vmatprep.mubr.bf16.mxu0 0
    %5595 = vmatmul.mubr.bf16.gmra.mxu0 %v5519
    %v5596 = vpop.f32.mrf.mxu0
    %v5597 = vadd.f32 %v5437, %v5596
    %v5598 = vpop.f32.mrf.mxu0
    %v5599 = vadd.f32 %v5437, %v5598
    %v5600 = vpop.f32.mrf.mxu0
    %v5601 = vadd.f32 %v5442, %v5600
    %v5602 = vpop.f32.mrf.mxu0
    %v5603 = vadd.f32 %v5442, %v5602
    %5604 = vmatprep.mubr.bf16.mxu0 0
    %5605 = vmatmul.mubr.bf16.gmra.mxu0 %v5520
    %v5606 = vpop.f32.mrf.mxu0
    %v5607 = vadd.f32 %v5447, %v5606
    %v5608 = vpop.f32.mrf.mxu0
    %v5609 = vadd.f32 %v5447, %v5608
    %v5610 = vpop.f32.mrf.mxu0
    %v5611 = vadd.f32 %v5452, %v5610
    %v5612 = vpop.f32.mrf.mxu0
    %v5613 = vadd.f32 %v5452, %v5612
    %5614 = vmatprep.mubr.bf16.mxu0 0
    %5615 = vmatmul.mubr.bf16.gmra.mxu0 %v5521
    %v5616 = vpop.f32.mrf.mxu0
    %v5617 = vadd.f32 %v5457, %v5616
    %v5618 = vpop.f32.mrf.mxu0
    %v5619 = vadd.f32 %v5457, %v5618
    %v5620 = vpop.f32.mrf.mxu0
    %v5621 = vadd.f32 %v5462, %v5620
    %v5622 = vpop.f32.mrf.mxu0
    %v5623 = vadd.f32 %v5462, %v5622
    %5624 = vmatprep.mubr.bf16.mxu0 0
    %5625 = vmatmul.mubr.bf16.gmra.mxu0 %v5522
    %v5626 = vpop.f32.mrf.mxu0
    %v5627 = vadd.f32 %v5467, %v5626
    %v5628 = vpop.f32.mrf.mxu0
    %v5629 = vadd.f32 %v5467, %v5628
    %v5630 = vpop.f32.mrf.mxu0
    %v5631 = vadd.f32 %v5472, %v5630
    %v5632 = vpop.f32.mrf.mxu0
    %v5633 = vadd.f32 %v5472, %v5632
    %5634 = vmatprep.mubr.bf16.mxu0 0
    %5635 = vmatmul.mubr.bf16.gmra.mxu0 %v5523
    %v5636 = vpop.f32.mrf.mxu0
    %v5637 = vadd.f32 %v5477, %v5636
    %v5638 = vpop.f32.mrf.mxu0
    %v5639 = vadd.f32 %v5477, %v5638
    %v5640 = vpop.f32.mrf.mxu0
    %v5641 = vadd.f32 %v5482, %v5640
    %v5642 = vpop.f32.mrf.mxu0
    %v5643 = vadd.f32 %v5482, %v5642
    %5644 = vdwg.mxu0
    %v5645 = vmax.f32 %v5567, 0.0
    %v5646 = vmax.f32 %v5569, 0.0
    %v5647 = vmax.f32 %v5571, 0.0
    %v5648 = vmax.f32 %v5573, 0.0
    %v5649 = vmax.f32 %v5577, 0.0
    %v5650 = vmax.f32 %v5579, 0.0
    %v5651 = vmax.f32 %v5581, 0.0
    %v5652 = vmax.f32 %v5583, 0.0
    %v5653 = vmax.f32 %v5587, 0.0
    %v5654 = vmax.f32 %v5589, 0.0
    %v5655 = vmax.f32 %v5591, 0.0
    %v5656 = vmax.f32 %v5593, 0.0
    %v5657 = vmax.f32 %v5597, 0.0
    %v5658 = vmax.f32 %v5599, 0.0
    %v5659 = vmax.f32 %v5601, 0.0
    %v5660 = vmax.f32 %v5603, 0.0
    %v5661 = vmax.f32 %v5607, 0.0
    %v5662 = vmax.f32 %v5609, 0.0
    %v5663 = vmax.f32 %v5611, 0.0
    %v5664 = vmax.f32 %v5613, 0.0
    %v5665 = vmax.f32 %v5617, 0.0
    %v5666 = vmax.f32 %v5619, 0.0
    %v5667 = vmax.f32 %v5621, 0.0
    %v5668 = vmax.f32 %v5623, 0.0
    %v5669 = vmax.f32 %v5627, 0.0
    %v5670 = vmax.f32 %v5629, 0.0
    %v5671 = vmax.f32 %v5631, 0.0
    %v5672 = vmax.f32 %v5633, 0.0
    %v5673 = vmax.f32 %v5637, 0.0
    %v5674 = vmax.f32 %v5639, 0.0
    %v5675 = vmax.f32 %v5641, 0.0
    %v5676 = vmax.f32 %v5643, 0.0
    %v5677 = vld [vmem:[%s2515] sm:$0xf]
    %v5678 = vld [vmem:[%s2515 + $0x4] sm:$0xf]
    %v5679 = vld [vmem:[%s2515 + $0x8] sm:$0xf]
    %v5680 = vld [vmem:[%s2515 + $0xc] sm:$0xf]
    %v5681 = vld [vmem:[%s2515 + $0x10] sm:$0xf]
    %v5682 = vld [vmem:[%s2515 + $0x14] sm:$0xf]
    %v5683 = vld [vmem:[%s2515 + $0x18] sm:$0xf]
    %v5684 = vld [vmem:[%s2515 + $0x1c] sm:$0xf]
    %v5685 = vld [vmem:[%s2515 + $0x20] sm:$0xf]
    %v5686 = vld [vmem:[%s2515 + $0x24] sm:$0xf]
    %v5687 = vld [vmem:[%s2515 + $0x28] sm:$0xf]
    %v5688 = vld [vmem:[%s2515 + $0x2c] sm:$0xf]
    %v5689 = vld [vmem:[%s2515 + $0x30] sm:$0xf]
    %v5690 = vld [vmem:[%s2515 + $0x34] sm:$0xf]
    %v5691 = vld [vmem:[%s2515 + $0x38] sm:$0xf]
    %v5692 = vld [vmem:[%s2515 + $0x3c] sm:$0xf]
    %v5693 = vpack.c.bf16 %v5647, %v5645
    %v5694 = vpack.c.bf16 %v5648, %v5646
    %v5695 = vpack.c.bf16 %v5651, %v5649
    %v5696 = vpack.c.bf16 %v5652, %v5650
    %v5697 = vpack.c.bf16 %v5655, %v5653
    %v5698 = vpack.c.bf16 %v5656, %v5654
    %v5699 = vpack.c.bf16 %v5659, %v5657
    %v5700 = vpack.c.bf16 %v5660, %v5658
    %v5701 = vpack.c.bf16 %v5663, %v5661
    %v5702 = vpack.c.bf16 %v5664, %v5662
    %v5703 = vpack.c.bf16 %v5667, %v5665
    %v5704 = vpack.c.bf16 %v5668, %v5666
    %v5705 = vpack.c.bf16 %v5671, %v5669
    %v5706 = vpack.c.bf16 %v5672, %v5670
    %v5707 = vpack.c.bf16 %v5675, %v5673
    %v5708 = vpack.c.bf16 %v5676, %v5674
    %v5709 = vld [vmem:[%s2548] sm:$0xff]
    %v5710 = vld [vmem:[%s2548 + $0x8] sm:$0xff]
    %v5711 = vld [vmem:[%s2548 + $0x10] sm:$0xff]
    %v5712 = vld [vmem:[%s2548 + $0x18] sm:$0xff]
    %v5713 = vld [vmem:[%s2548 + $0x20] sm:$0xff]
    %v5714 = vld [vmem:[%s2548 + $0x28] sm:$0xff]
    %v5715 = vld [vmem:[%s2548 + $0x30] sm:$0xff]
    %v5716 = vld [vmem:[%s2548 + $0x38] sm:$0xff]
    %v5717 = vld [vmem:[%s2548 + $0x40] sm:$0xff]
    %v5718 = vld [vmem:[%s2548 + $0x48] sm:$0xff]
    %v5719 = vld [vmem:[%s2548 + $0x50] sm:$0xff]
    %v5720 = vld [vmem:[%s2548 + $0x58] sm:$0xff]
    %v5721 = vld [vmem:[%s2548 + $0x60] sm:$0xff]
    %v5722 = vld [vmem:[%s2548 + $0x68] sm:$0xff]
    %v5723 = vld [vmem:[%s2548 + $0x70] sm:$0xff]
    %v5724 = vld [vmem:[%s2548 + $0x78] sm:$0xff]
    %5726 = vset.pattern.permute.xlu0 0
    %5727 = vperm.xlu0 %5726, %v5709
    %v5728 = vpop.permute.xlu0 %5727
    %5731 = vset.pattern.permute.xlu0 0
    %5732 = vperm.xlu0 %5731, %v5710
    %v5733 = vpop.permute.xlu0 %5732
    %5736 = vset.pattern.permute.xlu0 0
    %5737 = vperm.xlu0 %5736, %v5711
    %v5738 = vpop.permute.xlu0 %5737
    %5741 = vset.pattern.permute.xlu0 0
    %5742 = vperm.xlu0 %5741, %v5712
    %v5743 = vpop.permute.xlu0 %5742
    %5746 = vset.pattern.permute.xlu0 0
    %5747 = vperm.xlu0 %5746, %v5713
    %v5748 = vpop.permute.xlu0 %5747
    %5751 = vset.pattern.permute.xlu0 0
    %5752 = vperm.xlu0 %5751, %v5714
    %v5753 = vpop.permute.xlu0 %5752
    %5756 = vset.pattern.permute.xlu0 0
    %5757 = vperm.xlu0 %5756, %v5715
    %v5758 = vpop.permute.xlu0 %5757
    %5761 = vset.pattern.permute.xlu0 0
    %5762 = vperm.xlu0 %5761, %v5716
    %v5763 = vpop.permute.xlu0 %5762
    %5766 = vset.pattern.permute.xlu0 0
    %5767 = vperm.xlu0 %5766, %v5717
    %v5768 = vpop.permute.xlu0 %5767
    %5771 = vset.pattern.permute.xlu0 0
    %5772 = vperm.xlu0 %5771, %v5718
    %v5773 = vpop.permute.xlu0 %5772
    %5776 = vset.pattern.permute.xlu0 0
    %5777 = vperm.xlu0 %5776, %v5719
    %v5778 = vpop.permute.xlu0 %5777
    %5781 = vset.pattern.permute.xlu0 0
    %5782 = vperm.xlu0 %5781, %v5720
    %v5783 = vpop.permute.xlu0 %5782
    %5786 = vset.pattern.permute.xlu0 0
    %5787 = vperm.xlu0 %5786, %v5721
    %v5788 = vpop.permute.xlu0 %5787
    %5791 = vset.pattern.permute.xlu0 0
    %5792 = vperm.xlu0 %5791, %v5722
    %v5793 = vpop.permute.xlu0 %5792
    %5796 = vset.pattern.permute.xlu0 0
    %5797 = vperm.xlu0 %5796, %v5723
    %v5798 = vpop.permute.xlu0 %5797
    %5801 = vset.pattern.permute.xlu0 0
    %5802 = vperm.xlu0 %5801, %v5724
    %v5803 = vpop.permute.xlu0 %5802
    %v5821 = vunpack.c.l.b16 %v5677
    %v5822 = vunpack.c.l.b16 %v5678
    %v5823 = vunpack.c.l.b16 %v5679
    %v5824 = vunpack.c.l.b16 %v5680
    %v5825 = vunpack.c.l.b16 %v5681
    %v5826 = vunpack.c.l.b16 %v5682
    %v5827 = vunpack.c.l.b16 %v5683
    %v5828 = vunpack.c.l.b16 %v5684
    %v5829 = vunpack.c.l.b16 %v5685
    %v5830 = vunpack.c.l.b16 %v5686
    %v5831 = vunpack.c.l.b16 %v5687
    %v5832 = vunpack.c.l.b16 %v5688
    %v5833 = vunpack.c.l.b16 %v5689
    %v5834 = vunpack.c.l.b16 %v5690
    %v5835 = vunpack.c.l.b16 %v5691
    %v5836 = vunpack.c.l.b16 %v5692
    %v5837 = vpack.c.b16 %v5822, %v5821
    %v5838 = vpack.c.b16 %v5824, %v5823
    %v5839 = vpack.c.b16 %v5826, %v5825
    %v5840 = vpack.c.b16 %v5828, %v5827
    %v5841 = vpack.c.b16 %v5830, %v5829
    %v5842 = vpack.c.b16 %v5832, %v5831
    %v5843 = vpack.c.b16 %v5834, %v5833
    %v5844 = vpack.c.b16 %v5836, %v5835
    %5853 = vmatprep.subr.bf16.mxu0 %v5708
    %5854 = vmatpush1.bf16.msra.mxu0 %v5707
    %5855 = vmatprep.subr.bf16.mxu0 %v5706
    %5856 = vmatpush1.bf16.msra.mxu0 %v5705
    %5857 = vmatprep.subr.bf16.mxu0 %v5704
    %5858 = vmatpush1.bf16.msra.mxu0 %v5703
    %5859 = vmatprep.subr.bf16.mxu0 %v5702
    %5860 = vmatpush1.bf16.msra.mxu0 %v5701
    %5861 = vmatprep.subr.bf16.mxu0 %v5700
    %5862 = vmatpush1.bf16.msra.mxu0 %v5699
    %5863 = vmatprep.subr.bf16.mxu0 %v5698
    %5864 = vmatpush1.bf16.msra.mxu0 %v5697
    %5865 = vmatprep.subr.bf16.mxu0 %v5696
    %5866 = vmatpush1.bf16.msra.mxu0 %v5695
    %5867 = vmatprep.subr.bf16.mxu0 %v5694
    %5868 = vmatpush1.bf16.msra.mxu0 %v5693
    %5869 = vmatprep.subr.bf16.mxu0 0
    %5870 = vmatpush2.bf16.msra.mxu0 0
    %5871 = vmatprep.subr.bf16.mxu0 0
    %5872 = vmatpush2.bf16.msra.mxu0 0
    %5873 = vmatprep.subr.bf16.mxu0 0
    %5874 = vmatpush2.bf16.msra.mxu0 0
    %5875 = vmatprep.subr.bf16.mxu0 0
    %5876 = vmatpush2.bf16.msra.mxu0 0
    %5877 = vmatprep.subr.bf16.mxu0 0
    %5878 = vmatpush2.bf16.msra.mxu0 0
    %5879 = vmatprep.subr.bf16.mxu0 0
    %5880 = vmatpush2.bf16.msra.mxu0 0
    %5881 = vmatprep.subr.bf16.mxu0 0
    %5882 = vmatpush2.bf16.msra.mxu0 0
    %5883 = vmatprep.subr.bf16.mxu0 0
    %5884 = vmatpush2.bf16.msra.mxu0 0
    %5885 = vmatprep.mubr.bf16.mxu0 0
    %5886 = vmatmul.mubr.bf16.gmra.mxu0 %v5837
    %v5887 = vpop.f32.mrf.mxu0
    %v5888 = vadd.f32 %v5728, %v5887
    %v5889 = vpop.f32.mrf.mxu0
    %v5890 = vadd.f32 %v5728, %v5889
    %v5891 = vpop.f32.mrf.mxu0
    %v5892 = vadd.f32 %v5733, %v5891
    %v5893 = vpop.f32.mrf.mxu0
    %v5894 = vadd.f32 %v5733, %v5893
    %5895 = vmatprep.mubr.bf16.mxu0 0
    %5896 = vmatmul.mubr.bf16.gmra.mxu0 %v5838
    %v5897 = vpop.f32.mrf.mxu0
    %v5898 = vadd.f32 %v5738, %v5897
    %v5899 = vpop.f32.mrf.mxu0
    %v5900 = vadd.f32 %v5738, %v5899
    %v5901 = vpop.f32.mrf.mxu0
    %v5902 = vadd.f32 %v5743, %v5901
    %v5903 = vpop.f32.mrf.mxu0
    %v5904 = vadd.f32 %v5743, %v5903
    %5905 = vmatprep.mubr.bf16.mxu0 0
    %5906 = vmatmul.mubr.bf16.gmra.mxu0 %v5839
    %v5907 = vpop.f32.mrf.mxu0
    %v5908 = vadd.f32 %v5748, %v5907
    %v5909 = vpop.f32.mrf.mxu0
    %v5910 = vadd.f32 %v5748, %v5909
    %v5911 = vpop.f32.mrf.mxu0
    %v5912 = vadd.f32 %v5753, %v5911
    %v5913 = vpop.f32.mrf.mxu0
    %v5914 = vadd.f32 %v5753, %v5913
    %5915 = vmatprep.mubr.bf16.mxu0 0
    %5916 = vmatmul.mubr.bf16.gmra.mxu0 %v5840
    %v5917 = vpop.f32.mrf.mxu0
    %v5918 = vadd.f32 %v5758, %v5917
    %v5919 = vpop.f32.mrf.mxu0
    %v5920 = vadd.f32 %v5758, %v5919
    %v5921 = vpop.f32.mrf.mxu0
    %v5922 = vadd.f32 %v5763, %v5921
    %v5923 = vpop.f32.mrf.mxu0
    %v5924 = vadd.f32 %v5763, %v5923
    %5925 = vmatprep.mubr.bf16.mxu0 0
    %5926 = vmatmul.mubr.bf16.gmra.mxu0 %v5841
    %v5927 = vpop.f32.mrf.mxu0
    %v5928 = vadd.f32 %v5768, %v5927
    %v5929 = vpop.f32.mrf.mxu0
    %v5930 = vadd.f32 %v5768, %v5929
    %v5931 = vpop.f32.mrf.mxu0
    %v5932 = vadd.f32 %v5773, %v5931
    %v5933 = vpop.f32.mrf.mxu0
    %v5934 = vadd.f32 %v5773, %v5933
    %5935 = vmatprep.mubr.bf16.mxu0 0
    %5936 = vmatmul.mubr.bf16.gmra.mxu0 %v5842
    %v5937 = vpop.f32.mrf.mxu0
    %v5938 = vadd.f32 %v5778, %v5937
    %v5939 = vpop.f32.mrf.mxu0
    %v5940 = vadd.f32 %v5778, %v5939
    %v5941 = vpop.f32.mrf.mxu0
    %v5942 = vadd.f32 %v5783, %v5941
    %v5943 = vpop.f32.mrf.mxu0
    %v5944 = vadd.f32 %v5783, %v5943
    %5945 = vmatprep.mubr.bf16.mxu0 0
    %5946 = vmatmul.mubr.bf16.gmra.mxu0 %v5843
    %v5947 = vpop.f32.mrf.mxu0
    %v5948 = vadd.f32 %v5788, %v5947
    %v5949 = vpop.f32.mrf.mxu0
    %v5950 = vadd.f32 %v5788, %v5949
    %v5951 = vpop.f32.mrf.mxu0
    %v5952 = vadd.f32 %v5793, %v5951
    %v5953 = vpop.f32.mrf.mxu0
    %v5954 = vadd.f32 %v5793, %v5953
    %5955 = vmatprep.mubr.bf16.mxu0 0
    %5956 = vmatmul.mubr.bf16.gmra.mxu0 %v5844
    %v5957 = vpop.f32.mrf.mxu0
    %v5958 = vadd.f32 %v5798, %v5957
    %v5959 = vpop.f32.mrf.mxu0
    %v5960 = vadd.f32 %v5798, %v5959
    %v5961 = vpop.f32.mrf.mxu0
    %v5962 = vadd.f32 %v5803, %v5961
    %v5963 = vpop.f32.mrf.mxu0
    %v5964 = vadd.f32 %v5803, %v5963
    %5965 = vdwg.mxu0
    %v5966 = vmax.f32 %v5888, 0.0
    %v5967 = vmax.f32 %v5890, 0.0
    %v5968 = vmax.f32 %v5892, 0.0
    %v5969 = vmax.f32 %v5894, 0.0
    %v5970 = vmax.f32 %v5898, 0.0
    %v5971 = vmax.f32 %v5900, 0.0
    %v5972 = vmax.f32 %v5902, 0.0
    %v5973 = vmax.f32 %v5904, 0.0
    %v5974 = vmax.f32 %v5908, 0.0
    %v5975 = vmax.f32 %v5910, 0.0
    %v5976 = vmax.f32 %v5912, 0.0
    %v5977 = vmax.f32 %v5914, 0.0
    %v5978 = vmax.f32 %v5918, 0.0
    %v5979 = vmax.f32 %v5920, 0.0
    %v5980 = vmax.f32 %v5922, 0.0
    %v5981 = vmax.f32 %v5924, 0.0
    %v5982 = vmax.f32 %v5928, 0.0
    %v5983 = vmax.f32 %v5930, 0.0
    %v5984 = vmax.f32 %v5932, 0.0
    %v5985 = vmax.f32 %v5934, 0.0
    %v5986 = vmax.f32 %v5938, 0.0
    %v5987 = vmax.f32 %v5940, 0.0
    %v5988 = vmax.f32 %v5942, 0.0
    %v5989 = vmax.f32 %v5944, 0.0
    %v5990 = vmax.f32 %v5948, 0.0
    %v5991 = vmax.f32 %v5950, 0.0
    %v5992 = vmax.f32 %v5952, 0.0
    %v5993 = vmax.f32 %v5954, 0.0
    %v5994 = vmax.f32 %v5958, 0.0
    %v5995 = vmax.f32 %v5960, 0.0
    %v5996 = vmax.f32 %v5962, 0.0
    %v5997 = vmax.f32 %v5964, 0.0
    %v5998 = vld [vmem:[%s2838] sm:$0xf]
    %v5999 = vld [vmem:[%s2838 + $0x4] sm:$0xf]
    %v6000 = vld [vmem:[%s2838 + $0x8] sm:$0xf]
    %v6001 = vld [vmem:[%s2838 + $0xc] sm:$0xf]
    %v6002 = vld [vmem:[%s2838 + $0x10] sm:$0xf]
    %v6003 = vld [vmem:[%s2838 + $0x14] sm:$0xf]
    %v6004 = vld [vmem:[%s2838 + $0x18] sm:$0xf]
    %v6005 = vld [vmem:[%s2838 + $0x1c] sm:$0xf]
    %v6006 = vld [vmem:[%s2838 + $0x20] sm:$0xf]
    %v6007 = vld [vmem:[%s2838 + $0x24] sm:$0xf]
    %v6008 = vld [vmem:[%s2838 + $0x28] sm:$0xf]
    %v6009 = vld [vmem:[%s2838 + $0x2c] sm:$0xf]
    %v6010 = vld [vmem:[%s2838 + $0x30] sm:$0xf]
    %v6011 = vld [vmem:[%s2838 + $0x34] sm:$0xf]
    %v6012 = vld [vmem:[%s2838 + $0x38] sm:$0xf]
    %v6013 = vld [vmem:[%s2838 + $0x3c] sm:$0xf]
    %v6014 = vpack.c.bf16 %v5968, %v5966
    %v6015 = vpack.c.bf16 %v5969, %v5967
    %v6016 = vpack.c.bf16 %v5972, %v5970
    %v6017 = vpack.c.bf16 %v5973, %v5971
    %v6018 = vpack.c.bf16 %v5976, %v5974
    %v6019 = vpack.c.bf16 %v5977, %v5975
    %v6020 = vpack.c.bf16 %v5980, %v5978
    %v6021 = vpack.c.bf16 %v5981, %v5979
    %v6022 = vpack.c.bf16 %v5984, %v5982
    %v6023 = vpack.c.bf16 %v5985, %v5983
    %v6024 = vpack.c.bf16 %v5988, %v5986
    %v6025 = vpack.c.bf16 %v5989, %v5987
    %v6026 = vpack.c.bf16 %v5992, %v5990
    %v6027 = vpack.c.bf16 %v5993, %v5991
    %v6028 = vpack.c.bf16 %v5996, %v5994
    %v6029 = vpack.c.bf16 %v5997, %v5995
    %v6030 = vld [vmem:[%s2871] sm:$0xff]
    %v6031 = vld [vmem:[%s2871 + $0x8] sm:$0xff]
    %v6032 = vld [vmem:[%s2871 + $0x10] sm:$0xff]
    %v6033 = vld [vmem:[%s2871 + $0x18] sm:$0xff]
    %v6034 = vld [vmem:[%s2871 + $0x20] sm:$0xff]
    %v6035 = vld [vmem:[%s2871 + $0x28] sm:$0xff]
    %v6036 = vld [vmem:[%s2871 + $0x30] sm:$0xff]
    %v6037 = vld [vmem:[%s2871 + $0x38] sm:$0xff]
    %v6038 = vld [vmem:[%s2871 + $0x40] sm:$0xff]
    %v6039 = vld [vmem:[%s2871 + $0x48] sm:$0xff]
    %v6040 = vld [vmem:[%s2871 + $0x50] sm:$0xff]
    %v6041 = vld [vmem:[%s2871 + $0x58] sm:$0xff]
    %v6042 = vld [vmem:[%s2871 + $0x60] sm:$0xff]
    %v6043 = vld [vmem:[%s2871 + $0x68] sm:$0xff]
    %v6044 = vld [vmem:[%s2871 + $0x70] sm:$0xff]
    %v6045 = vld [vmem:[%s2871 + $0x78] sm:$0xff]
    %6047 = vset.pattern.permute.xlu0 0
    %6048 = vperm.xlu0 %6047, %v6030
    %v6049 = vpop.permute.xlu0 %6048
    %6052 = vset.pattern.permute.xlu0 0
    %6053 = vperm.xlu0 %6052, %v6031
    %v6054 = vpop.permute.xlu0 %6053
    %6057 = vset.pattern.permute.xlu0 0
    %6058 = vperm.xlu0 %6057, %v6032
    %v6059 = vpop.permute.xlu0 %6058
    %6062 = vset.pattern.permute.xlu0 0
    %6063 = vperm.xlu0 %6062, %v6033
    %v6064 = vpop.permute.xlu0 %6063
    %6067 = vset.pattern.permute.xlu0 0
    %6068 = vperm.xlu0 %6067, %v6034
    %v6069 = vpop.permute.xlu0 %6068
    %6072 = vset.pattern.permute.xlu0 0
    %6073 = vperm.xlu0 %6072, %v6035
    %v6074 = vpop.permute.xlu0 %6073
    %6077 = vset.pattern.permute.xlu0 0
    %6078 = vperm.xlu0 %6077, %v6036
    %v6079 = vpop.permute.xlu0 %6078
    %6082 = vset.pattern.permute.xlu0 0
    %6083 = vperm.xlu0 %6082, %v6037
    %v6084 = vpop.permute.xlu0 %6083
    %6087 = vset.pattern.permute.xlu0 0
    %6088 = vperm.xlu0 %6087, %v6038
    %v6089 = vpop.permute.xlu0 %6088
    %6092 = vset.pattern.permute.xlu0 0
    %6093 = vperm.xlu0 %6092, %v6039
    %v6094 = vpop.permute.xlu0 %6093
    %6097 = vset.pattern.permute.xlu0 0
    %6098 = vperm.xlu0 %6097, %v6040
    %v6099 = vpop.permute.xlu0 %6098
    %6102 = vset.pattern.permute.xlu0 0
    %6103 = vperm.xlu0 %6102, %v6041
    %v6104 = vpop.permute.xlu0 %6103
    %6107 = vset.pattern.permute.xlu0 0
    %6108 = vperm.xlu0 %6107, %v6042
    %v6109 = vpop.permute.xlu0 %6108
    %6112 = vset.pattern.permute.xlu0 0
    %6113 = vperm.xlu0 %6112, %v6043
    %v6114 = vpop.permute.xlu0 %6113
    %6117 = vset.pattern.permute.xlu0 0
    %6118 = vperm.xlu0 %6117, %v6044
    %v6119 = vpop.permute.xlu0 %6118
    %6122 = vset.pattern.permute.xlu0 0
    %6123 = vperm.xlu0 %6122, %v6045
    %v6124 = vpop.permute.xlu0 %6123
    %v6142 = vunpack.c.l.b16 %v5998
    %v6143 = vunpack.c.l.b16 %v5999
    %v6144 = vunpack.c.l.b16 %v6000
    %v6145 = vunpack.c.l.b16 %v6001
    %v6146 = vunpack.c.l.b16 %v6002
    %v6147 = vunpack.c.l.b16 %v6003
    %v6148 = vunpack.c.l.b16 %v6004
    %v6149 = vunpack.c.l.b16 %v6005
    %v6150 = vunpack.c.l.b16 %v6006
    %v6151 = vunpack.c.l.b16 %v6007
    %v6152 = vunpack.c.l.b16 %v6008
    %v6153 = vunpack.c.l.b16 %v6009
    %v6154 = vunpack.c.l.b16 %v6010
    %v6155 = vunpack.c.l.b16 %v6011
    %v6156 = vunpack.c.l.b16 %v6012
    %v6157 = vunpack.c.l.b16 %v6013
    %v6158 = vpack.c.b16 %v6143, %v6142
    %v6159 = vpack.c.b16 %v6145, %v6144
    %v6160 = vpack.c.b16 %v6147, %v6146
    %v6161 = vpack.c.b16 %v6149, %v6148
    %v6162 = vpack.c.b16 %v6151, %v6150
    %v6163 = vpack.c.b16 %v6153, %v6152
    %v6164 = vpack.c.b16 %v6155, %v6154
    %v6165 = vpack.c.b16 %v6157, %v6156
    %6174 = vmatprep.subr.bf16.mxu0 %v6029
    %6175 = vmatpush1.bf16.msra.mxu0 %v6028
    %6176 = vmatprep.subr.bf16.mxu0 %v6027
    %6177 = vmatpush1.bf16.msra.mxu0 %v6026
    %6178 = vmatprep.subr.bf16.mxu0 %v6025
    %6179 = vmatpush1.bf16.msra.mxu0 %v6024
    %6180 = vmatprep.subr.bf16.mxu0 %v6023
    %6181 = vmatpush1.bf16.msra.mxu0 %v6022
    %6182 = vmatprep.subr.bf16.mxu0 %v6021
    %6183 = vmatpush1.bf16.msra.mxu0 %v6020
    %6184 = vmatprep.subr.bf16.mxu0 %v6019
    %6185 = vmatpush1.bf16.msra.mxu0 %v6018
    %6186 = vmatprep.subr.bf16.mxu0 %v6017
    %6187 = vmatpush1.bf16.msra.mxu0 %v6016
    %6188 = vmatprep.subr.bf16.mxu0 %v6015
    %6189 = vmatpush1.bf16.msra.mxu0 %v6014
    %6190 = vmatprep.subr.bf16.mxu0 0
    %6191 = vmatpush2.bf16.msra.mxu0 0
    %6192 = vmatprep.subr.bf16.mxu0 0
    %6193 = vmatpush2.bf16.msra.mxu0 0
    %6194 = vmatprep.subr.bf16.mxu0 0
    %6195 = vmatpush2.bf16.msra.mxu0 0
    %6196 = vmatprep.subr.bf16.mxu0 0
    %6197 = vmatpush2.bf16.msra.mxu0 0
    %6198 = vmatprep.subr.bf16.mxu0 0
    %6199 = vmatpush2.bf16.msra.mxu0 0
    %6200 = vmatprep.subr.bf16.mxu0 0
    %6201 = vmatpush2.bf16.msra.mxu0 0
    %6202 = vmatprep.subr.bf16.mxu0 0
    %6203 = vmatpush2.bf16.msra.mxu0 0
    %6204 = vmatprep.subr.bf16.mxu0 0
    %6205 = vmatpush2.bf16.msra.mxu0 0
    %6206 = vmatprep.mubr.bf16.mxu0 0
    %6207 = vmatmul.mubr.bf16.gmra.mxu0 %v6158
    %v6208 = vpop.f32.mrf.mxu0
    %v6209 = vadd.f32 %v6049, %v6208
    %v6210 = vpop.f32.mrf.mxu0
    %v6211 = vadd.f32 %v6049, %v6210
    %v6212 = vpop.f32.mrf.mxu0
    %v6213 = vadd.f32 %v6054, %v6212
    %v6214 = vpop.f32.mrf.mxu0
    %v6215 = vadd.f32 %v6054, %v6214
    %6216 = vmatprep.mubr.bf16.mxu0 0
    %6217 = vmatmul.mubr.bf16.gmra.mxu0 %v6159
    %v6218 = vpop.f32.mrf.mxu0
    %v6219 = vadd.f32 %v6059, %v6218
    %v6220 = vpop.f32.mrf.mxu0
    %v6221 = vadd.f32 %v6059, %v6220
    %v6222 = vpop.f32.mrf.mxu0
    %v6223 = vadd.f32 %v6064, %v6222
    %v6224 = vpop.f32.mrf.mxu0
    %v6225 = vadd.f32 %v6064, %v6224
    %6226 = vmatprep.mubr.bf16.mxu0 0
    %6227 = vmatmul.mubr.bf16.gmra.mxu0 %v6160
    %v6228 = vpop.f32.mrf.mxu0
    %v6229 = vadd.f32 %v6069, %v6228
    %v6230 = vpop.f32.mrf.mxu0
    %v6231 = vadd.f32 %v6069, %v6230
    %v6232 = vpop.f32.mrf.mxu0
    %v6233 = vadd.f32 %v6074, %v6232
    %v6234 = vpop.f32.mrf.mxu0
    %v6235 = vadd.f32 %v6074, %v6234
    %6236 = vmatprep.mubr.bf16.mxu0 0
    %6237 = vmatmul.mubr.bf16.gmra.mxu0 %v6161
    %v6238 = vpop.f32.mrf.mxu0
    %v6239 = vadd.f32 %v6079, %v6238
    %v6240 = vpop.f32.mrf.mxu0
    %v6241 = vadd.f32 %v6079, %v6240
    %v6242 = vpop.f32.mrf.mxu0
    %v6243 = vadd.f32 %v6084, %v6242
    %v6244 = vpop.f32.mrf.mxu0
    %v6245 = vadd.f32 %v6084, %v6244
    %6246 = vmatprep.mubr.bf16.mxu0 0
    %6247 = vmatmul.mubr.bf16.gmra.mxu0 %v6162
    %v6248 = vpop.f32.mrf.mxu0
    %v6249 = vadd.f32 %v6089, %v6248
    %v6250 = vpop.f32.mrf.mxu0
    %v6251 = vadd.f32 %v6089, %v6250
    %v6252 = vpop.f32.mrf.mxu0
    %v6253 = vadd.f32 %v6094, %v6252
    %v6254 = vpop.f32.mrf.mxu0
    %v6255 = vadd.f32 %v6094, %v6254
    %6256 = vmatprep.mubr.bf16.mxu0 0
    %6257 = vmatmul.mubr.bf16.gmra.mxu0 %v6163
    %v6258 = vpop.f32.mrf.mxu0
    %v6259 = vadd.f32 %v6099, %v6258
    %v6260 = vpop.f32.mrf.mxu0
    %v6261 = vadd.f32 %v6099, %v6260
    %v6262 = vpop.f32.mrf.mxu0
    %v6263 = vadd.f32 %v6104, %v6262
    %v6264 = vpop.f32.mrf.mxu0
    %v6265 = vadd.f32 %v6104, %v6264
    %6266 = vmatprep.mubr.bf16.mxu0 0
    %6267 = vmatmul.mubr.bf16.gmra.mxu0 %v6164
    %v6268 = vpop.f32.mrf.mxu0
    %v6269 = vadd.f32 %v6109, %v6268
    %v6270 = vpop.f32.mrf.mxu0
    %v6271 = vadd.f32 %v6109, %v6270
    %v6272 = vpop.f32.mrf.mxu0
    %v6273 = vadd.f32 %v6114, %v6272
    %v6274 = vpop.f32.mrf.mxu0
    %v6275 = vadd.f32 %v6114, %v6274
    %6276 = vmatprep.mubr.bf16.mxu0 0
    %6277 = vmatmul.mubr.bf16.gmra.mxu0 %v6165
    %v6278 = vpop.f32.mrf.mxu0
    %v6279 = vadd.f32 %v6119, %v6278
    %v6280 = vpop.f32.mrf.mxu0
    %v6281 = vadd.f32 %v6119, %v6280
    %v6282 = vpop.f32.mrf.mxu0
    %v6283 = vadd.f32 %v6124, %v6282
    %v6284 = vpop.f32.mrf.mxu0
    %v6285 = vadd.f32 %v6124, %v6284
    %6286 = vdwg.mxu0
    %v6287 = vmax.f32 %v6209, 0.0
    %v6288 = vmax.f32 %v6211, 0.0
    %v6289 = vmax.f32 %v6213, 0.0
    %v6290 = vmax.f32 %v6215, 0.0
    %v6291 = vmax.f32 %v6219, 0.0
    %v6292 = vmax.f32 %v6221, 0.0
    %v6293 = vmax.f32 %v6223, 0.0
    %v6294 = vmax.f32 %v6225, 0.0
    %v6295 = vmax.f32 %v6229, 0.0
    %v6296 = vmax.f32 %v6231, 0.0
    %v6297 = vmax.f32 %v6233, 0.0
    %v6298 = vmax.f32 %v6235, 0.0
    %v6299 = vmax.f32 %v6239, 0.0
    %v6300 = vmax.f32 %v6241, 0.0
    %v6301 = vmax.f32 %v6243, 0.0
    %v6302 = vmax.f32 %v6245, 0.0
    %v6303 = vmax.f32 %v6249, 0.0
    %v6304 = vmax.f32 %v6251, 0.0
    %v6305 = vmax.f32 %v6253, 0.0
    %v6306 = vmax.f32 %v6255, 0.0
    %v6307 = vmax.f32 %v6259, 0.0
    %v6308 = vmax.f32 %v6261, 0.0
    %v6309 = vmax.f32 %v6263, 0.0
    %v6310 = vmax.f32 %v6265, 0.0
    %v6311 = vmax.f32 %v6269, 0.0
    %v6312 = vmax.f32 %v6271, 0.0
    %v6313 = vmax.f32 %v6273, 0.0
    %v6314 = vmax.f32 %v6275, 0.0
    %v6315 = vmax.f32 %v6279, 0.0
    %v6316 = vmax.f32 %v6281, 0.0
    %v6317 = vmax.f32 %v6283, 0.0
    %v6318 = vmax.f32 %v6285, 0.0
    %v6319 = vmul.f32 %v6287, %v3164
    %v6320 = vmul.f32 %v6288, %v3164
    %v6321 = vmul.f32 %v6289, %v3169
    %v6322 = vmul.f32 %v6290, %v3169
    %v6323 = vmul.f32 %v6291, %v3174
    %v6324 = vmul.f32 %v6292, %v3174
    %v6325 = vmul.f32 %v6293, %v3179
    %v6326 = vmul.f32 %v6294, %v3179
    %v6327 = vmul.f32 %v6295, %v3184
    %v6328 = vmul.f32 %v6296, %v3184
    %v6329 = vmul.f32 %v6297, %v3189
    %v6330 = vmul.f32 %v6298, %v3189
    %v6331 = vmul.f32 %v6299, %v3194
    %v6332 = vmul.f32 %v6300, %v3194
    %v6333 = vmul.f32 %v6301, %v3199
    %v6334 = vmul.f32 %v6302, %v3199
    %v6335 = vmul.f32 %v6303, %v3204
    %v6336 = vmul.f32 %v6304, %v3204
    %v6337 = vmul.f32 %v6305, %v3209
    %v6338 = vmul.f32 %v6306, %v3209
    %v6339 = vmul.f32 %v6307, %v3214
    %v6340 = vmul.f32 %v6308, %v3214
    %v6341 = vmul.f32 %v6309, %v3219
    %v6342 = vmul.f32 %v6310, %v3219
    %v6343 = vmul.f32 %v6311, %v3224
    %v6344 = vmul.f32 %v6312, %v3224
    %v6345 = vmul.f32 %v6313, %v3229
    %v6346 = vmul.f32 %v6314, %v3229
    %v6347 = vmul.f32 %v6315, %v3234
    %v6348 = vmul.f32 %v6316, %v3234
    %v6349 = vmul.f32 %v6317, %v3239
    %v6350 = vmul.f32 %v6318, %v3239
    %v6351 = vadd.f32 %v6319, %v6321
    %v6352 = vadd.f32 %v6351, %v6323
    %v6353 = vadd.f32 %v6352, %v6325
    %v6354 = vadd.f32 %v6353, %v6327
    %v6355 = vadd.f32 %v6354, %v6329
    %v6356 = vadd.f32 %v6355, %v6331
    %v6357 = vadd.f32 %v6356, %v6333
    %v6358 = vadd.f32 %v6357, %v6335
    %v6359 = vadd.f32 %v6358, %v6337
    %v6360 = vadd.f32 %v6359, %v6339
    %v6361 = vadd.f32 %v6360, %v6341
    %v6362 = vadd.f32 %v6361, %v6343
    %v6363 = vadd.f32 %v6362, %v6345
    %v6364 = vadd.f32 %v6363, %v6347
    %v6365 = vadd.f32 %v6364, %v6349
    %v6366 = vrot.slane %v6365, 4
    %v6367 = vadd.f32 %v6365, %v6366
    %v6368 = vrot.slane %v6367, 2
    %v6369 = vadd.f32 %v6367, %v6368
    %v6370 = vrot.slane %v6369, 1
    %v6371 = vadd.f32 %v6369, %v6370
    %v6372 = vadd.f32 %v6320, %v6322
    %v6373 = vadd.f32 %v6372, %v6324
    %v6374 = vadd.f32 %v6373, %v6326
    %v6375 = vadd.f32 %v6374, %v6328
    %v6376 = vadd.f32 %v6375, %v6330
    %v6377 = vadd.f32 %v6376, %v6332
    %v6378 = vadd.f32 %v6377, %v6334
    %v6379 = vadd.f32 %v6378, %v6336
    %v6380 = vadd.f32 %v6379, %v6338
    %v6381 = vadd.f32 %v6380, %v6340
    %v6382 = vadd.f32 %v6381, %v6342
    %v6383 = vadd.f32 %v6382, %v6344
    %v6384 = vadd.f32 %v6383, %v6346
    %v6385 = vadd.f32 %v6384, %v6348
    %v6386 = vadd.f32 %v6385, %v6350
    %v6387 = vrot.slane %v6386, 4
    %v6388 = vadd.f32 %v6386, %v6387
    %v6389 = vrot.slane %v6388, 2
    %v6390 = vadd.f32 %v6388, %v6389
    %v6391 = vrot.slane %v6390, 1
    %v6392 = vadd.f32 %v6390, %v6391
    %v6393 = vadd.f32 %v6371, %v3323
    %v6394 = vadd.f32 %v6392, %v3323
    %v6397 = vcombine.low %v6393, %v6394
    %v6399 = vunpack.c.l.s4 1966171168
    %v6400 = vunpack.c.0.s8 %v6399
    %v6401 = vlaneseq
    %v6402 = vshrl.u32 %v6401, 7
    %v6403 = vsub.s32 %v6400, %v6402
    %v6404 = vrot.slane %v6397, %v6403
    %v6406 = vunpack.c.l.s4 1966171168
    %v6407 = vunpack.c.0.s8 %v6406
    %v6408 = vlaneseq
    %v6409 = vshrl.u32 %v6408, 7
    %v6410 = vsub.s32 %v6407, %v6409
    %v6411 = vrot.slane %v6404, %v6410
    %6413 = vst.msk [vmem:[#allocation3 + $0x2] sm:$0x3] %vm3347, %v6411
    // Predicated region
    $region34: #{tpu_custom_call.1} parent=1 // pred_check
      _
    $region35: #{tpu_custom_call.1} parent=1 // pred_check_branch
      %6415 = sbr.rel (0) target = $region37
    $region36: #{tpu_custom_call.1} parent=1 // pred_region
      %s6417 = ssub.s32 64, 64
      %6418 = vsyncadd [#allocation4], %s6417
      %s6420 = sshll.u32 [#allocation3], 4
      %s6421 = int_to_ptr.vmem [resolvable:$true] %s6420
      %6423 = dma.vmem_to_hbm [thread:$0]  %s6421, 64, %s8, [#allocation4]
    $region37: #{tpu_custom_call.1} parent=1 // pred_fallthru
      _
    // Predicated region
    $region38: #{tpu_custom_call.1} parent=1 // pred_check
      _
    $region39: #{tpu_custom_call.1} parent=1 // pred_check_branch
      %6425 = sbr.rel (0) target = $region41
    $region40: #{tpu_custom_call.1} parent=1 // pred_region
      %6426 = dma.done [#allocation4], 64
    $region41: #{tpu_custom_call.1} parent=1 // pred_fallthru
      _
    %6427 = vsyncpa [#allocation4], 1

</llo_original>
